<compile_context>
chip_gen: v6e
topology: v6e:2x2x1
jax: 0.10.0
libtpu: 0.0.40
codegen_flags: <defaults>
</compile_context>

<pallas_src>
import functools

import jax
import jax.numpy as jnp
from jax.experimental import pallas as pl
from jax.experimental.pallas import tpu as pltpu


def _round_up(v, m):
    return ((v + m - 1) // m) * m


# ---------------------------------------------------------------------------
# Fused Pallas kernel: whole GCNN forward in one launch
# ---------------------------------------------------------------------------

def _gcnn_fused_kernel(dst_ref, src_ref, ea_ref, batch_ref, x_ref,
                       w1r_ref, w1o_ref, b1_ref,
                       w2r_ref, w2o_ref, b2_ref,
                       w3_ref, b3_ref, w4_ref, b4_ref, w5_ref, b5_ref,
                       out_ref, gemb_ref, *, e_chunk):
    n = x_ref.shape[0]            # (padded) nodes
    e_pad = src_ref.shape[0]      # (padded) edges
    g = gemb_ref.shape[0]         # graphs
    n_chunks = e_pad // e_chunk

    # --- Dense edge-weighted adjacency A[dst, src], built chunk-by-chunk over the
    #     edge axis.  bf16 MXU inputs, f32 accumulation across chunks, one final
    #     cast to bf16.  Padded edges have ea=0 and src/dst=-1 -> contribute 0.
    dst_all = dst_ref[...]        # (1, e_pad) int32
    src_all = src_ref[...]        # (e_pad, 1) int32
    ea_all = ea_ref[...]          # (e_pad, 1) f32

    a_f32 = None
    for ci in range(n_chunks):
        lo, hi = ci * e_chunk, (ci + 1) * e_chunk
        dst_blk = dst_all[:, lo:hi]                                   # (1, ec)
        src_blk = src_all[lo:hi, :]                                   # (ec, 1)
        ea_blk = ea_all[lo:hi, :]                                     # (ec, 1)
        dst_oh = (jax.lax.broadcasted_iota(jnp.int32, (n, e_chunk), 0)
                  == dst_blk).astype(jnp.bfloat16)                    # (n, ec)
        src_oh = (jax.lax.broadcasted_iota(jnp.int32, (e_chunk, n), 1)
                  == src_blk)                                         # (ec, n)
        w_src = jnp.where(src_oh, ea_blk, 0.0).astype(jnp.bfloat16)   # (ec, n)
        blk = jnp.dot(dst_oh, w_src, preferred_element_type=jnp.float32)
        a_f32 = blk if a_f32 is None else a_f32 + blk
    a_b = a_f32.astype(jnp.bfloat16)                                  # (n, n)

    # --- Mean-pool matrix P[g, i] = 1/|graph g| for node i in graph g.
    #     Padded nodes have batch id == g -> no match -> excluded from P and counts.
    pool_oh = (jax.lax.broadcasted_iota(jnp.int32, (g, n), 0)
               == batch_ref[...]).astype(jnp.float32)                 # (g, n)
    counts = jnp.maximum(jnp.sum(pool_oh, axis=1, keepdims=True), 1.0)
    p = (pool_oh / counts).astype(jnp.bfloat16)

    def graphconv_relu(h, wr_ref, wo_ref, b_ref):
        # relu( (A@H) @ W_rel + H @ W_root + b ) -- no concat materialization,
        # H cast to bf16 once and reused for both terms.
        h_b = h.astype(jnp.bfloat16)
        agg = jnp.dot(a_b, h_b, preferred_element_type=jnp.float32)
        out = (jnp.dot(agg.astype(jnp.bfloat16), wr_ref[...],
                       preferred_element_type=jnp.float32)
               + jnp.dot(h_b, wo_ref[...],
                         preferred_element_type=jnp.float32)
               + b_ref[...])
        return jnp.maximum(out, 0.0)

    h = graphconv_relu(x_ref[...], w1r_ref, w1o_ref, b1_ref)          # (n, 512)
    h = graphconv_relu(h, w2r_ref, w2o_ref, b2_ref)                   # (n, 512)

    gemb = jnp.dot(p, h.astype(jnp.bfloat16),
                   preferred_element_type=jnp.float32)                # (g, 512)
    gemb_ref[...] = gemb

    def linear(z, w_ref, b_ref, relu):
        y = jnp.dot(z.astype(jnp.bfloat16), w_ref[...],
                    preferred_element_type=jnp.float32) + b_ref[...]
        return jnp.maximum(y, 0.0) if relu else y

    # TODO(synk): F.dropout reproduced in inference mode (identity); training-mode
    # stochastic mask is RNG-dependent and not reproduced.
    z = linear(gemb, w3_ref, b3_ref, True)
    z = linear(z, w4_ref, b4_ref, True)
    out_ref[...] = linear(z, w5_ref, b5_ref, False)


# ---------------------------------------------------------------------------
# Wrapper
# ---------------------------------------------------------------------------

def _vmem_limit_bytes():
    # Size the scoped-VMEM limit from the actual chip (v5e/v6e 128 MiB, v7x 64 MiB),
    # leaving Mosaic scratch headroom.  Fallback is safe on every generation.
    try:
        cap = int(pltpu.get_tpu_info().vmem_capacity_bytes)
        return int(min(cap - (16 << 20), 110 << 20))
    except Exception:
        return 48 << 20


def gcnn_forward(kparams, x, edge_index, edge_attr, batch, num_graphs,
                 return_graph_embedding=False):
    n, c = x.shape
    e = edge_index.shape[1]
    c_pad = kparams["w1_rel"].shape[0]           # static (from weight shape)

    # Host-side glue: pad n to a sublane multiple, pad/chunk-align the edge axis,
    # lane-pad the node features.
    n_pad = _round_up(max(n, 8), 8)
    e_chunk = min(512, _round_up(max(e, 1), 128))
    e_pad = _round_up(max(e, 1), e_chunk)

    x_p = jnp.zeros((n_pad, c_pad), jnp.float32).at[:n, :c].set(
        x.astype(jnp.float32))
    dst = jnp.full((1, e_pad), -1, jnp.int32).at[0, :e].set(
        edge_index[1].astype(jnp.int32))
    src = jnp.full((e_pad, 1), -1, jnp.int32).at[:e, 0].set(
        edge_index[0].astype(jnp.int32))
    ea = jnp.zeros((e_pad, 1), jnp.float32).at[:e, 0].set(
        edge_attr.reshape(-1).astype(jnp.float32))
    # Padded nodes -> batch id num_graphs (out of range) so they never pool.
    batch2d = jnp.full((1, n_pad), num_graphs, jnp.int32).at[0, :n].set(
        batch.astype(jnp.int32))

    h1 = kparams["w1_rel"].shape[1]
    h2 = kparams["w2_rel"].shape[1]
    m1, m2, m3 = (kparams["w3"].shape[1], kparams["w4"].shape[1],
                  kparams["w5"].shape[1])

    args = (dst, src, ea, batch2d, x_p,
            kparams["w1_rel"], kparams["w1_root"], kparams["b1"],
            kparams["w2_rel"], kparams["w2_root"], kparams["b2"],
            kparams["w3"], kparams["b3"], kparams["w4"], kparams["b4"],
            kparams["w5"], kparams["b5"])

    flops = 2 * (n_pad * e_pad * n_pad                               # adjacency
                 + n_pad * n_pad * c_pad + 2 * n_pad * c_pad * h1    # conv1
                 + n_pad * n_pad * h1 + 2 * n_pad * h1 * h2          # conv2
                 + num_graphs * n_pad * h2                           # pool
                 + num_graphs * (h2 * m1 + m1 * m2 + m2 * m3))       # MLP
    out_bytes = num_graphs * m3 * 4 + num_graphs * h2 * 4
    bytes_accessed = int(sum(int(a.size) * a.dtype.itemsize for a in args)
                         + out_bytes)

    vspec = lambda: pl.BlockSpec(memory_space=pltpu.MemorySpace.VMEM)
    kernel = functools.partial(_gcnn_fused_kernel, e_chunk=e_chunk)
    out, gemb = pl.pallas_call(
        kernel,
        out_shape=(jax.ShapeDtypeStruct((num_graphs, m3), jnp.float32),
                   jax.ShapeDtypeStruct((num_graphs, h2), jnp.float32)),
        in_specs=[vspec() for _ in args],
        out_specs=(vspec(), vspec()),
        compiler_params=pltpu.CompilerParams(
            vmem_limit_bytes=_vmem_limit_bytes()),
        cost_estimate=pl.CostEstimate(flops=int(flops), transcendentals=0,
                                      bytes_accessed=bytes_accessed),
    )(*args)
    return gemb if return_graph_embedding else out


# ---------------------------------------------------------------------------
# Parameter init (deterministic, PyTorch-Linear style uniform fan-in bounds)
# and kernel-side weight prep (pad conv1 input channels, cast to bf16).
# ---------------------------------------------------------------------------

def _lin_init(key, fan_in, fan_out, bias=True):
    k1, k2 = jax.random.split(key)
    bound = 1.0 / float(fan_in) ** 0.5
    w = jax.random.uniform(k1, (fan_in, fan_out), jnp.float32, -bound, bound)
    b = (jax.random.uniform(k2, (1, fan_out), jnp.float32, -bound, bound)
         if bias else None)
    return w, b


def init_gcnn_params(key, features_channels):
    ks = jax.random.split(key, 7)
    p = {}
    p["conv1_rel_w"], p["conv1_rel_b"] = _lin_init(ks[0], features_channels, 512)
    p["conv1_root_w"], _ = _lin_init(ks[1], features_channels, 512, bias=False)
    p["conv2_rel_w"], p["conv2_rel_b"] = _lin_init(ks[2], 512, 512)
    p["conv2_root_w"], _ = _lin_init(ks[3], 512, 512, bias=False)
    p["linconv1_w"], p["linconv1_b"] = _lin_init(ks[4], 512, 64)
    p["linconv2_w"], p["linconv2_b"] = _lin_init(ks[5], 64, 16)
    p["lin_w"], p["lin_b"] = _lin_init(ks[6], 16, 1)
    return p


def prepare_kernel_params(params):
    """One-time weight prep: pad conv1 input channels to a lane multiple and
    store matmul weights as bf16 (biases stay f32)."""
    c = params["conv1_rel_w"].shape[0]
    c_pad = _round_up(c, 128)

    def pad_rows(w):
        return jnp.zeros((c_pad, w.shape[1]), jnp.float32).at[:c].set(w)

    return {
        "w1_rel": pad_rows(params["conv1_rel_w"]).astype(jnp.bfloat16),
        "w1_root": pad_rows(params["conv1_root_w"]).astype(jnp.bfloat16),
        "b1": params["conv1_rel_b"],
        "w2_rel": params["conv2_rel_w"].astype(jnp.bfloat16),
        "w2_root": params["conv2_root_w"].astype(jnp.bfloat16),
        "b2": params["conv2_rel_b"],
        "w3": params["linconv1_w"].astype(jnp.bfloat16), "b3": params["linconv1_b"],
        "w4": params["linconv2_w"].astype(jnp.bfloat16), "b4": params["linconv2_b"],
        "w5": params["lin_w"].astype(jnp.bfloat16), "b5": params["lin_b"],
    }


# ---------------------------------------------------------------------------
# Pure-JAX references
# ---------------------------------------------------------------------------

def gcnn_reference_kernel_math(kparams, x, edge_index, edge_attr, batch,
                               num_graphs):
    """Mirrors the kernel's exact math (bf16 MXU inputs, f32 accumulation)."""
    n, c = x.shape
    e = edge_index.shape[1]
    c_pad = kparams["w1_rel"].shape[0]
    x_p = jnp.pad(x.astype(jnp.float32), ((0, 0), (0, c_pad - c)))
    src, dst = edge_index[0], edge_index[1]

    dst_oh = (jnp.arange(n)[:, None] == dst[None, :]).astype(jnp.bfloat16)
    src_oh = jnp.arange(n)[None, :] == src[:, None]
    w_src = jnp.where(src_oh, edge_attr.reshape(e, 1).astype(jnp.float32),
                      0.0).astype(jnp.bfloat16)
    a_b = jnp.dot(dst_oh, w_src,
                  preferred_element_type=jnp.float32).astype(jnp.bfloat16)

    pool_oh = (jnp.arange(num_graphs)[:, None] == batch[None, :]).astype(jnp.float32)
    counts = jnp.maximum(pool_oh.sum(axis=1, keepdims=True), 1.0)
    p = (pool_oh / counts).astype(jnp.bfloat16)

    def gconv(h, wr, wo, b):
        h_b = h.astype(jnp.bfloat16)
        agg = jnp.dot(a_b, h_b, preferred_element_type=jnp.float32)
        return jax.nn.relu(
            jnp.dot(agg.astype(jnp.bfloat16), wr, preferred_element_type=jnp.float32)
            + jnp.dot(h_b, wo, preferred_element_type=jnp.float32) + b)

    h = gconv(x_p, kparams["w1_rel"], kparams["w1_root"], kparams["b1"])
    h = gconv(h, kparams["w2_rel"], kparams["w2_root"], kparams["b2"])
    g = jnp.dot(p, h.astype(jnp.bfloat16), preferred_element_type=jnp.float32)

    def lin(z, w, b):
        return jnp.dot(z.astype(jnp.bfloat16), w,
                       preferred_element_type=jnp.float32) + b

    z = jax.nn.relu(lin(g, kparams["w3"], kparams["b3"]))
    z = jax.nn.relu(lin(z, kparams["w4"], kparams["b4"]))
    return lin(z, kparams["w5"], kparams["b5"])


def gcnn_reference_f32(params, x, edge_index, edge_attr, batch, num_graphs):
    """Pure f32 reference with the original module's math."""
    n = x.shape[0]
    src, dst = edge_index[0], edge_index[1]
    a = jnp.zeros((n, n), jnp.float32).at[dst, src].add(
        edge_attr.reshape(-1).astype(jnp.float32))
    onehot = (batch[None, :] == jnp.arange(num_graphs)[:, None]).astype(jnp.float32)
    p = onehot / jnp.maximum(onehot.sum(axis=1, keepdims=True), 1.0)

    def gconv(h, wr, wo, b):
        return jax.nn.relu((a @ h) @ wr + b + h @ wo)

    h = gconv(x, params["conv1_rel_w"], params["conv1_root_w"], params["conv1_rel_b"])
    h = gconv(h, params["conv2_rel_w"], params["conv2_root_w"], params["conv2_rel_b"])
    g = p @ h
    z = jax.nn.relu(g @ params["linconv1_w"] + params["linconv1_b"])
    z = jax.nn.relu(z @ params["linconv2_w"] + params["linconv2_b"])
    return z @ params["lin_w"] + params["lin_b"]


# ---------------------------------------------------------------------------
# Main
# ---------------------------------------------------------------------------

if __name__ == "__main__":
    key = jax.random.PRNGKey(0)
    k_param, k_x, k_edge, k_attr = jax.random.split(key, 4)

    features_channels = 8
    num_nodes = 16
    num_edges = 40
    num_graphs = 2

    params = init_gcnn_params(k_param, features_channels)
    kparams = prepare_kernel_params(params)

    x = jax.random.normal(k_x, (num_nodes, features_channels), jnp.float32)
    edge_index = jax.random.randint(k_edge, (2, num_edges), 0, num_nodes,
                                    dtype=jnp.int32)
    edge_attr = jax.random.uniform(k_attr, (num_edges,), jnp.float32, 0.1, 1.0)
    batch = jnp.concatenate([jnp.zeros((num_nodes // 2,), jnp.int32),
                             jnp.ones((num_nodes - num_nodes // 2,), jnp.int32)])

    fwd = jax.jit(gcnn_forward,
                  static_argnames=("num_graphs", "return_graph_embedding"))
    out = fwd(kparams, x, edge_index, edge_attr, batch, num_graphs=num_graphs)
    out = jax.block_until_ready(out)
    assert out.shape == (num_graphs, 1), out.shape

    # Tight check against a reference replicating the kernel's bf16/f32 math.
    ref_bf16 = gcnn_reference_kernel_math(kparams, x, edge_index, edge_attr,
                                          batch, num_graphs)
    assert jnp.allclose(out, ref_bf16, rtol=1e-2, atol=1e-2), (out, ref_bf16)

    # Loose check against pure-f32 original-module semantics (bf16 weights
    # introduce ~1% deviation).
    ref_f32 = gcnn_reference_f32(params, x, edge_index, edge_attr, batch,
                                 num_graphs)
    assert jnp.allclose(out, ref_f32, rtol=1e-1, atol=1e-1), (out, ref_f32)

    print("KERNEL_OK")
</pallas_src>

<mosaic_0001>
module attributes {stable_mosaic.version = 11 : i64} {
  func.func @_gcnn_fused_kernel(%arg0: memref<1x128xi32, #tpu.memory_space<vmem>>, %arg1: memref<128x1xi32, #tpu.memory_space<vmem>>, %arg2: memref<128x1xf32, #tpu.memory_space<vmem>>, %arg3: memref<1x16xi32, #tpu.memory_space<vmem>>, %arg4: memref<16x128xf32, #tpu.memory_space<vmem>>, %arg5: memref<128x512xbf16, #tpu.memory_space<vmem>>, %arg6: memref<128x512xbf16, #tpu.memory_space<vmem>>, %arg7: memref<1x512xf32, #tpu.memory_space<vmem>>, %arg8: memref<512x512xbf16, #tpu.memory_space<vmem>>, %arg9: memref<512x512xbf16, #tpu.memory_space<vmem>>, %arg10: memref<1x512xf32, #tpu.memory_space<vmem>>, %arg11: memref<512x64xbf16, #tpu.memory_space<vmem>>, %arg12: memref<1x64xf32, #tpu.memory_space<vmem>>, %arg13: memref<64x16xbf16, #tpu.memory_space<vmem>>, %arg14: memref<1x16xf32, #tpu.memory_space<vmem>>, %arg15: memref<16x1xbf16, #tpu.memory_space<vmem>>, %arg16: memref<1x1xf32, #tpu.memory_space<vmem>>, %arg17: memref<2x1xf32, #tpu.memory_space<vmem>>, %arg18: memref<2x512xf32, #tpu.memory_space<vmem>>) attributes {dimension_semantics = [], scalar_prefetch = 0 : i64, scratch_operands = 0 : i64, tpu.core_type = #tpu.core_type<tc>} {
    %c0 = arith.constant 0 : index
    %c0_0 = arith.constant 0 : index
    %0 = vector.load %arg0[%c0, %c0_0] : memref<1x128xi32, #tpu.memory_space<vmem>>, vector<1x128xi32>
    %c0_1 = arith.constant 0 : index
    %c0_2 = arith.constant 0 : index
    %1 = vector.load %arg1[%c0_1, %c0_2] : memref<128x1xi32, #tpu.memory_space<vmem>>, vector<128x1xi32>
    %c0_3 = arith.constant 0 : index
    %c0_4 = arith.constant 0 : index
    %2 = vector.load %arg2[%c0_3, %c0_4] : memref<128x1xf32, #tpu.memory_space<vmem>>, vector<128x1xf32>
    %3 = tpu.iota {dimensions = array<i32: 0>} : vector<16x128xi32>
    %4 = vector.broadcast %0 : vector<1x128xi32> to vector<16x128xi32>
    %5 = arith.cmpi eq, %3, %4 : vector<16x128xi32>
    %6 = arith.extui %5 : vector<16x128xi1> to vector<16x128xi32>
    %7 = arith.sitofp %6 : vector<16x128xi32> to vector<16x128xf32>
    %8 = arith.truncf %7 : vector<16x128xf32> to vector<16x128xbf16>
    %9 = tpu.iota {dimensions = array<i32: 1>} : vector<128x16xi32>
    %10 = vector.broadcast %1 : vector<128x1xi32> to vector<128x16xi32>
    %11 = arith.cmpi eq, %9, %10 : vector<128x16xi32>
    %cst = arith.constant 0.000000e+00 : f32
    %12 = vector.shape_cast %2 : vector<128x1xf32> to vector<128x1xf32>
    %13 = vector.broadcast %12 : vector<128x1xf32> to vector<128x16xf32>
    %14 = vector.broadcast %cst : f32 to vector<128x16xf32>
    %15 = arith.select %11, %13, %14 : vector<128x16xi1>, vector<128x16xf32>
    %16 = arith.truncf %15 : vector<128x16xf32> to vector<128x16xbf16>
    %cst_5 = arith.constant dense<0.000000e+00> : vector<16x16xf32>
    %17 = tpu.matmul %8, %16, %cst_5 {dimension_numbers = #tpu.dot_dimension_numbers<[1], [0], [0], [1], [0, 0, 1, 1], [], []>} : vector<16x128xbf16>, vector<128x16xbf16>, vector<16x16xf32> -> vector<16x16xf32>
    %18 = arith.truncf %17 : vector<16x16xf32> to vector<16x16xbf16>
    %19 = tpu.iota {dimensions = array<i32: 0>} : vector<2x16xi32>
    %c0_6 = arith.constant 0 : index
    %c0_7 = arith.constant 0 : index
    %20 = vector.load %arg3[%c0_6, %c0_7] : memref<1x16xi32, #tpu.memory_space<vmem>>, vector<1x16xi32>
    %21 = vector.broadcast %20 : vector<1x16xi32> to vector<2x16xi32>
    %22 = arith.cmpi eq, %19, %21 : vector<2x16xi32>
    %23 = arith.extui %22 : vector<2x16xi1> to vector<2x16xi32>
    %24 = arith.sitofp %23 : vector<2x16xi32> to vector<2x16xf32>
    %cst_8 = arith.constant dense<0.000000e+00> : vector<2xf32>
    %25 = vector.multi_reduction <add>, %24, %cst_8 [1] : vector<2x16xf32> to vector<2xf32>
    %26 = vector.shape_cast %25 : vector<2xf32> to vector<2x1xf32>
    %cst_9 = arith.constant 1.000000e+00 : f32
    %27 = vector.broadcast %cst_9 : f32 to vector<2x1xf32>
    %28 = arith.maximumf %26, %27 : vector<2x1xf32>
    %29 = vector.broadcast %28 : vector<2x1xf32> to vector<2x16xf32>
    %30 = arith.divf %24, %29 : vector<2x16xf32>
    %31 = arith.truncf %30 : vector<2x16xf32> to vector<2x16xbf16>
    %c0_10 = arith.constant 0 : index
    %c0_11 = arith.constant 0 : index
    %32 = vector.load %arg4[%c0_10, %c0_11] : memref<16x128xf32, #tpu.memory_space<vmem>>, vector<16x128xf32>
    %33 = arith.truncf %32 : vector<16x128xf32> to vector<16x128xbf16>
    %cst_12 = arith.constant dense<0.000000e+00> : vector<16x128xf32>
    %34 = tpu.matmul %18, %33, %cst_12 {dimension_numbers = #tpu.dot_dimension_numbers<[1], [0], [0], [1], [0, 0, 1, 1], [], []>} : vector<16x16xbf16>, vector<16x128xbf16>, vector<16x128xf32> -> vector<16x128xf32>
    %35 = arith.truncf %34 : vector<16x128xf32> to vector<16x128xbf16>
    %c0_13 = arith.constant 0 : index
    %c0_14 = arith.constant 0 : index
    %36 = vector.load %arg5[%c0_13, %c0_14] : memref<128x512xbf16, #tpu.memory_space<vmem>>, vector<128x512xbf16>
    %cst_15 = arith.constant dense<0.000000e+00> : vector<16x512xf32>
    %37 = tpu.matmul %35, %36, %cst_15 {dimension_numbers = #tpu.dot_dimension_numbers<[1], [0], [0], [1], [0, 0, 1, 1], [], []>} : vector<16x128xbf16>, vector<128x512xbf16>, vector<16x512xf32> -> vector<16x512xf32>
    %c0_16 = arith.constant 0 : index
    %c0_17 = arith.constant 0 : index
    %38 = vector.load %arg6[%c0_16, %c0_17] : memref<128x512xbf16, #tpu.memory_space<vmem>>, vector<128x512xbf16>
    %cst_18 = arith.constant dense<0.000000e+00> : vector<16x512xf32>
    %39 = tpu.matmul %33, %38, %cst_18 {dimension_numbers = #tpu.dot_dimension_numbers<[1], [0], [0], [1], [0, 0, 1, 1], [], []>} : vector<16x128xbf16>, vector<128x512xbf16>, vector<16x512xf32> -> vector<16x512xf32>
    %40 = arith.addf %37, %39 : vector<16x512xf32>
    %c0_19 = arith.constant 0 : index
    %c0_20 = arith.constant 0 : index
    %41 = vector.load %arg7[%c0_19, %c0_20] : memref<1x512xf32, #tpu.memory_space<vmem>>, vector<1x512xf32>
    %42 = vector.broadcast %41 : vector<1x512xf32> to vector<16x512xf32>
    %43 = arith.addf %40, %42 : vector<16x512xf32>
    %cst_21 = arith.constant 0.000000e+00 : f32
    %44 = vector.broadcast %cst_21 : f32 to vector<16x512xf32>
    %45 = arith.maximumf %43, %44 : vector<16x512xf32>
    %46 = arith.truncf %45 : vector<16x512xf32> to vector<16x512xbf16>
    %cst_22 = arith.constant dense<0.000000e+00> : vector<16x512xf32>
    %47 = tpu.matmul %18, %46, %cst_22 {dimension_numbers = #tpu.dot_dimension_numbers<[1], [0], [0], [1], [0, 0, 1, 1], [], []>} : vector<16x16xbf16>, vector<16x512xbf16>, vector<16x512xf32> -> vector<16x512xf32>
    %48 = arith.truncf %47 : vector<16x512xf32> to vector<16x512xbf16>
    %c0_23 = arith.constant 0 : index
    %c0_24 = arith.constant 0 : index
    %49 = vector.load %arg8[%c0_23, %c0_24] : memref<512x512xbf16, #tpu.memory_space<vmem>>, vector<512x512xbf16>
    %cst_25 = arith.constant dense<0.000000e+00> : vector<16x512xf32>
    %50 = tpu.matmul %48, %49, %cst_25 {dimension_numbers = #tpu.dot_dimension_numbers<[1], [0], [0], [1], [0, 0, 1, 1], [], []>} : vector<16x512xbf16>, vector<512x512xbf16>, vector<16x512xf32> -> vector<16x512xf32>
    %c0_26 = arith.constant 0 : index
    %c0_27 = arith.constant 0 : index
    %51 = vector.load %arg9[%c0_26, %c0_27] : memref<512x512xbf16, #tpu.memory_space<vmem>>, vector<512x512xbf16>
    %cst_28 = arith.constant dense<0.000000e+00> : vector<16x512xf32>
    %52 = tpu.matmul %46, %51, %cst_28 {dimension_numbers = #tpu.dot_dimension_numbers<[1], [0], [0], [1], [0, 0, 1, 1], [], []>} : vector<16x512xbf16>, vector<512x512xbf16>, vector<16x512xf32> -> vector<16x512xf32>
    %53 = arith.addf %50, %52 : vector<16x512xf32>
    %c0_29 = arith.constant 0 : index
    %c0_30 = arith.constant 0 : index
    %54 = vector.load %arg10[%c0_29, %c0_30] : memref<1x512xf32, #tpu.memory_space<vmem>>, vector<1x512xf32>
    %55 = vector.broadcast %54 : vector<1x512xf32> to vector<16x512xf32>
    %56 = arith.addf %53, %55 : vector<16x512xf32>
    %cst_31 = arith.constant 0.000000e+00 : f32
    %57 = vector.broadcast %cst_31 : f32 to vector<16x512xf32>
    %58 = arith.maximumf %56, %57 : vector<16x512xf32>
    %59 = arith.truncf %58 : vector<16x512xf32> to vector<16x512xbf16>
    %cst_32 = arith.constant dense<0.000000e+00> : vector<2x512xf32>
    %60 = tpu.matmul %31, %59, %cst_32 {dimension_numbers = #tpu.dot_dimension_numbers<[1], [0], [0], [1], [0, 0, 1, 1], [], []>} : vector<2x16xbf16>, vector<16x512xbf16>, vector<2x512xf32> -> vector<2x512xf32>
    %c0_33 = arith.constant 0 : index
    %c0_34 = arith.constant 0 : index
    %61 = vector.load %arg18[%c0_33, %c0_34] : memref<2x512xf32, #tpu.memory_space<vmem>>, vector<2x512xf32>
    tpu.vector_store %arg18[%c0_33, %c0_34], %60 {strides = array<i32>} : memref<2x512xf32, #tpu.memory_space<vmem>>, vector<2x512xf32>,
    %62 = arith.truncf %60 : vector<2x512xf32> to vector<2x512xbf16>
    %c0_35 = arith.constant 0 : index
    %c0_36 = arith.constant 0 : index
    %63 = vector.load %arg11[%c0_35, %c0_36] : memref<512x64xbf16, #tpu.memory_space<vmem>>, vector<512x64xbf16>
    %cst_37 = arith.constant dense<0.000000e+00> : vector<2x64xf32>
    %64 = tpu.matmul %62, %63, %cst_37 {dimension_numbers = #tpu.dot_dimension_numbers<[1], [0], [0], [1], [0, 0, 1, 1], [], []>} : vector<2x512xbf16>, vector<512x64xbf16>, vector<2x64xf32> -> vector<2x64xf32>
    %c0_38 = arith.constant 0 : index
    %c0_39 = arith.constant 0 : index
    %65 = vector.load %arg12[%c0_38, %c0_39] : memref<1x64xf32, #tpu.memory_space<vmem>>, vector<1x64xf32>
    %66 = vector.broadcast %65 : vector<1x64xf32> to vector<2x64xf32>
    %67 = arith.addf %64, %66 : vector<2x64xf32>
    %cst_40 = arith.constant 0.000000e+00 : f32
    %68 = vector.broadcast %cst_40 : f32 to vector<2x64xf32>
    %69 = arith.maximumf %67, %68 : vector<2x64xf32>
    %70 = arith.truncf %69 : vector<2x64xf32> to vector<2x64xbf16>
    %c0_41 = arith.constant 0 : index
    %c0_42 = arith.constant 0 : index
    %71 = vector.load %arg13[%c0_41, %c0_42] : memref<64x16xbf16, #tpu.memory_space<vmem>>, vector<64x16xbf16>
    %cst_43 = arith.constant dense<0.000000e+00> : vector<2x16xf32>
    %72 = tpu.matmul %70, %71, %cst_43 {dimension_numbers = #tpu.dot_dimension_numbers<[1], [0], [0], [1], [0, 0, 1, 1], [], []>} : vector<2x64xbf16>, vector<64x16xbf16>, vector<2x16xf32> -> vector<2x16xf32>
    %c0_44 = arith.constant 0 : index
    %c0_45 = arith.constant 0 : index
    %73 = vector.load %arg14[%c0_44, %c0_45] : memref<1x16xf32, #tpu.memory_space<vmem>>, vector<1x16xf32>
    %74 = vector.broadcast %73 : vector<1x16xf32> to vector<2x16xf32>
    %75 = arith.addf %72, %74 : vector<2x16xf32>
    %cst_46 = arith.constant 0.000000e+00 : f32
    %76 = vector.broadcast %cst_46 : f32 to vector<2x16xf32>
    %77 = arith.maximumf %75, %76 : vector<2x16xf32>
    %78 = arith.truncf %77 : vector<2x16xf32> to vector<2x16xbf16>
    %c0_47 = arith.constant 0 : index
    %c0_48 = arith.constant 0 : index
    %79 = vector.load %arg15[%c0_47, %c0_48] : memref<16x1xbf16, #tpu.memory_space<vmem>>, vector<16x1xbf16>
    %cst_49 = arith.constant dense<0.000000e+00> : vector<2x1xf32>
    %80 = tpu.matmul %78, %79, %cst_49 {dimension_numbers = #tpu.dot_dimension_numbers<[1], [0], [0], [1], [0, 0, 1, 1], [], []>} : vector<2x16xbf16>, vector<16x1xbf16>, vector<2x1xf32> -> vector<2x1xf32>
    %c0_50 = arith.constant 0 : index
    %c0_51 = arith.constant 0 : index
    %81 = vector.load %arg16[%c0_50, %c0_51] : memref<1x1xf32, #tpu.memory_space<vmem>>, vector<1x1xf32>
    %82 = vector.broadcast %81 : vector<1x1xf32> to vector<2x1xf32>
    %83 = arith.addf %80, %82 : vector<2x1xf32>
    %c0_52 = arith.constant 0 : index
    %c0_53 = arith.constant 0 : index
    %84 = vector.load %arg17[%c0_52, %c0_53] : memref<2x1xf32, #tpu.memory_space<vmem>>, vector<2x1xf32>
    tpu.vector_store %arg17[%c0_52, %c0_53], %83 {strides = array<i32>} : memref<2x1xf32, #tpu.memory_space<vmem>>, vector<2x1xf32>,
    return
  }
}

</mosaic_0001>

<llo_original>
// kernel: gcnn_forward.1
$region0: #{gcnn_forward.1}
  #allocation0 [shape = 'u32[]', space=smem, size = 0x4, offset = 0x4, fixed_abs, tag = 'smem constant byte address 0x4 - core index']
  #allocation1 [shape = 'u32[144,128]{1,0:T(1,128)}', space=vmem, size = 0x12000, scoped, tag = 'internal scratch']
  #allocation2 [shape = 'f32[1,1]{1,0:T(1,128)S(1)}', space=vmem, size = 0x200, scoped, tag = 'scoped memory for gcnn_forward.1']
  %s0 = inlined_call_operand.vmem [shape: s32[1,128], index: 0, kind: input, shape index: {}]
  %s1 = inlined_call_operand.vmem [shape: s32[128,1], index: 1, kind: input, shape index: {}]
  %s2 = inlined_call_operand.vmem [shape: f32[128,1], index: 2, kind: input, shape index: {}]
  %s3 = inlined_call_operand.vmem [shape: s32[1,16], index: 3, kind: input, shape index: {}]
  %s4 = inlined_call_operand.vmem [shape: f32[16,128], index: 4, kind: input, shape index: {}]
  %s5 = inlined_call_operand.vmem [shape: bf16[128,512], index: 5, kind: input, shape index: {}]
  %s6 = inlined_call_operand.vmem [shape: bf16[128,512], index: 6, kind: input, shape index: {}]
  %s7 = inlined_call_operand.vmem [shape: f32[1,512], index: 7, kind: input, shape index: {}]
  %s8 = inlined_call_operand.hbm [shape: bf16[512,512], index: 8, kind: input, shape index: {}]
  %s9 = inlined_call_operand.hbm [shape: bf16[512,512], index: 9, kind: input, shape index: {}]
  %s10 = inlined_call_operand.vmem [shape: f32[1,512], index: 10, kind: input, shape index: {}]
  %s11 = inlined_call_operand.vmem [shape: bf16[512,64], index: 11, kind: input, shape index: {}]
  %s12 = inlined_call_operand.vmem [shape: f32[1,64], index: 12, kind: input, shape index: {}]
  %s13 = inlined_call_operand.vmem [shape: bf16[64,16], index: 13, kind: input, shape index: {}]
  %s14 = inlined_call_operand.vmem [shape: f32[1,16], index: 14, kind: input, shape index: {}]
  %s15 = inlined_call_operand.vmem [shape: bf16[16,1], index: 15, kind: input, shape index: {}]
  %s16 = inlined_call_operand.<no memory space> [shape: f32[1,1], index: 16, kind: input, shape index: {}]
  %s17 = inlined_call_operand.vmem [shape: f32[2,1], index: 17, kind: output, shape index: {0}]
  %s18 = inlined_call_operand.hbm [shape: f32[2,512], index: 18, kind: output, shape index: {1}]
  %19 = xla_tuple %s17, %s18
  %s20 = sld [smem:[#allocation0]]
  $region94: #{gcnn_forward.1} parent=0
    _
  %s22 = ssub.s32 1, %s20
  %s23 = scalar_select 0, %s22, %s20
  %v24 = vstv %s16
  %25 = vst [vmem:[#allocation2] sm:$0x1] %v24
  $region1: #{gcnn_forward.1} parent=0
    #allocation3 [shape = 'u8[524288]{0}', space=vmem, size = 0x80000, scoped, tag = 'input window, operand 8, single buffered']
    #allocation4 [shape = 's32[1]{0}', space=sflag, size = 0x4, scoped, tag = 'scoped memory for gcnn_forward.1']
    #allocation5 [shape = 's32[1]{0}', space=sflag, size = 0x4, scoped, tag = 'scoped memory for gcnn_forward.1']
    #allocation6 [shape = 'u8[524288]{0}', space=vmem, size = 0x80000, scoped, tag = 'input window, operand 9, single buffered']
    #allocation7 [shape = 's32[1]{0}', space=sflag, size = 0x4, scoped, tag = 'scoped memory for gcnn_forward.1']
    #allocation8 [shape = 'u8[4096]{0}', space=vmem, size = 0x1000, scoped, tag = 'output window, operand 1, single buffered']
    %26 = vsyncpa [#allocation4], 0
    %27 = vsyncpa [#allocation7], 0
    %28 = vsyncpa [#allocation5], 0
    // Predicated region
    $region2: #{gcnn_forward.1} parent=1 // pred_check
      _
    $region3: #{gcnn_forward.1} parent=1 // pred_check_branch
      %30 = sbr.rel (0) target = $region5
    $region4: #{gcnn_forward.1} parent=1 // pred_region
      _
    $region5: #{gcnn_forward.1} parent=1 // pred_fallthru
      _
    // Predicated region
    $region6: #{gcnn_forward.1} parent=1 // pred_check
      _
    $region7: #{gcnn_forward.1} parent=1 // pred_check_branch
      %32 = sbr.rel (0) target = $region9
    $region8: #{gcnn_forward.1} parent=1 // pred_region
      _
    $region9: #{gcnn_forward.1} parent=1 // pred_fallthru
      _
    // Predicated region
    $region10: #{gcnn_forward.1} parent=1 // pred_check
      _
    $region11: #{gcnn_forward.1} parent=1 // pred_check_branch
      %34 = sbr.rel (0) target = $region13
    $region12: #{gcnn_forward.1} parent=1 // pred_region
      _
    $region13: #{gcnn_forward.1} parent=1 // pred_fallthru
      _
    // Predicated region
    $region14: #{gcnn_forward.1} parent=1 // pred_check
      _
    $region15: #{gcnn_forward.1} parent=1 // pred_check_branch
      %36 = sbr.rel (0) target = $region17
    $region16: #{gcnn_forward.1} parent=1 // pred_region
      _
    $region17: #{gcnn_forward.1} parent=1 // pred_fallthru
      _
    // Predicated region
    $region18: #{gcnn_forward.1} parent=1 // pred_check
      _
    $region19: #{gcnn_forward.1} parent=1 // pred_check_branch
      %38 = sbr.rel (0) target = $region21
    $region20: #{gcnn_forward.1} parent=1 // pred_region
      _
    $region21: #{gcnn_forward.1} parent=1 // pred_fallthru
      _
    // Predicated region
    $region22: #{gcnn_forward.1} parent=1 // pred_check
      _
    $region23: #{gcnn_forward.1} parent=1 // pred_check_branch
      %40 = sbr.rel (0) target = $region25
    $region24: #{gcnn_forward.1} parent=1 // pred_region
      _
    $region25: #{gcnn_forward.1} parent=1 // pred_fallthru
      _
    // Predicated region
    $region26: #{gcnn_forward.1} parent=1 // pred_check
      _
    $region27: #{gcnn_forward.1} parent=1 // pred_check_branch
      %42 = sbr.rel (0) target = $region29
    $region28: #{gcnn_forward.1} parent=1 // pred_region
      _
    $region29: #{gcnn_forward.1} parent=1 // pred_fallthru
      _
    // Predicated region
    $region30: #{gcnn_forward.1} parent=1 // pred_check
      _
    $region31: #{gcnn_forward.1} parent=1 // pred_check_branch
      %44 = sbr.rel (0) target = $region33
    $region32: #{gcnn_forward.1} parent=1 // pred_region
      _
    $region33: #{gcnn_forward.1} parent=1 // pred_fallthru
      _
    // Predicated region
    $region34: #{gcnn_forward.1} parent=1 // pred_check
      _
    $region35: #{gcnn_forward.1} parent=1 // pred_check_branch
      %46 = sbr.rel (0) target = $region37
    $region36: #{gcnn_forward.1} parent=1 // pred_region
      %s48 = ssub.s32 16384, 16384
      %49 = vsyncadd [#allocation4], %s48
      %s50 = sshll.u32 [#allocation3], 4
      %s51 = int_to_ptr.vmem [resolvable:$true] %s50
      %56 = dma.hbm_to_vmem [thread:$0]  %s8, 16384, %s51, [#allocation4], 256, 256, 16
    $region37: #{gcnn_forward.1} parent=1 // pred_fallthru
      _
    // Predicated region
    $region38: #{gcnn_forward.1} parent=1 // pred_check
      _
    $region39: #{gcnn_forward.1} parent=1 // pred_check_branch
      %58 = sbr.rel (0) target = $region41
    $region40: #{gcnn_forward.1} parent=1 // pred_region
      %s60 = ssub.s32 16384, 16384
      %61 = vsyncadd [#allocation7], %s60
      %s62 = sshll.u32 [#allocation6], 4
      %s63 = int_to_ptr.vmem [resolvable:$true] %s62
      %68 = dma.hbm_to_vmem [thread:$0]  %s9, 16384, %s63, [#allocation7], 256, 256, 16
    $region41: #{gcnn_forward.1} parent=1 // pred_fallthru
      _
    // Predicated region
    $region42: #{gcnn_forward.1} parent=1 // pred_check
      _
    $region43: #{gcnn_forward.1} parent=1 // pred_check_branch
      %70 = sbr.rel (0) target = $region45
    $region44: #{gcnn_forward.1} parent=1 // pred_region
      _
    $region45: #{gcnn_forward.1} parent=1 // pred_fallthru
      _
    // Predicated region
    $region46: #{gcnn_forward.1} parent=1 // pred_check
      _
    $region47: #{gcnn_forward.1} parent=1 // pred_check_branch
      %72 = sbr.rel (0) target = $region49
    $region48: #{gcnn_forward.1} parent=1 // pred_region
      _
    $region49: #{gcnn_forward.1} parent=1 // pred_fallthru
      _
    // Predicated region
    $region50: #{gcnn_forward.1} parent=1 // pred_check
      _
    $region51: #{gcnn_forward.1} parent=1 // pred_check_branch
      %74 = sbr.rel (0) target = $region53
    $region52: #{gcnn_forward.1} parent=1 // pred_region
      _
    $region53: #{gcnn_forward.1} parent=1 // pred_fallthru
      _
    // Predicated region
    $region54: #{gcnn_forward.1} parent=1 // pred_check
      _
    $region55: #{gcnn_forward.1} parent=1 // pred_check_branch
      %76 = sbr.rel (0) target = $region57
    $region56: #{gcnn_forward.1} parent=1 // pred_region
      _
    $region57: #{gcnn_forward.1} parent=1 // pred_fallthru
      _
    // Predicated region
    $region58: #{gcnn_forward.1} parent=1 // pred_check
      _
    $region59: #{gcnn_forward.1} parent=1 // pred_check_branch
      %78 = sbr.rel (0) target = $region61
    $region60: #{gcnn_forward.1} parent=1 // pred_region
      _
    $region61: #{gcnn_forward.1} parent=1 // pred_fallthru
      _
    // Predicated region
    $region62: #{gcnn_forward.1} parent=1 // pred_check
      _
    $region63: #{gcnn_forward.1} parent=1 // pred_check_branch
      %80 = sbr.rel (0) target = $region65
    $region64: #{gcnn_forward.1} parent=1 // pred_region
      _
    $region65: #{gcnn_forward.1} parent=1 // pred_fallthru
      _
    // Predicated region
    $region66: #{gcnn_forward.1} parent=1 // pred_check
      _
    $region67: #{gcnn_forward.1} parent=1 // pred_check_branch
      %82 = sbr.rel (0) target = $region69
    $region68: #{gcnn_forward.1} parent=1 // pred_region
      _
    $region69: #{gcnn_forward.1} parent=1 // pred_fallthru
      _
    // Predicated region
    $region70: #{gcnn_forward.1} parent=1 // pred_check
      _
    $region71: #{gcnn_forward.1} parent=1 // pred_check_branch
      %84 = sbr.rel (0) target = $region73
    $region72: #{gcnn_forward.1} parent=1 // pred_region
      %85 = dma.done [#allocation4], 16384
    $region73: #{gcnn_forward.1} parent=1 // pred_fallthru
      _
    // Predicated region
    $region74: #{gcnn_forward.1} parent=1 // pred_check
      _
    $region75: #{gcnn_forward.1} parent=1 // pred_check_branch
      %87 = sbr.rel (0) target = $region77
    $region76: #{gcnn_forward.1} parent=1 // pred_region
      %88 = dma.done [#allocation7], 16384
    $region77: #{gcnn_forward.1} parent=1 // pred_fallthru
      _
    %v90 = vld [vmem:[%s0] sm:$0x1]
    %v91 = vld [vmem:[%s1] sm:$0xff]
    %v92 = vld [vmem:[%s1 + $0x8] sm:$0xff]
    %v93 = vld [vmem:[%s1 + $0x10] sm:$0xff]
    %v94 = vld [vmem:[%s1 + $0x18] sm:$0xff]
    %v95 = vld [vmem:[%s1 + $0x20] sm:$0xff]
    %v96 = vld [vmem:[%s1 + $0x28] sm:$0xff]
    %v97 = vld [vmem:[%s1 + $0x30] sm:$0xff]
    %v98 = vld [vmem:[%s1 + $0x38] sm:$0xff]
    %v99 = vld [vmem:[%s1 + $0x40] sm:$0xff]
    %v100 = vld [vmem:[%s1 + $0x48] sm:$0xff]
    %v101 = vld [vmem:[%s1 + $0x50] sm:$0xff]
    %v102 = vld [vmem:[%s1 + $0x58] sm:$0xff]
    %v103 = vld [vmem:[%s1 + $0x60] sm:$0xff]
    %v104 = vld [vmem:[%s1 + $0x68] sm:$0xff]
    %v105 = vld [vmem:[%s1 + $0x70] sm:$0xff]
    %v106 = vld [vmem:[%s1 + $0x78] sm:$0xff]
    %v107 = vld [vmem:[%s2] sm:$0xff]
    %v108 = vld [vmem:[%s2 + $0x8] sm:$0xff]
    %v109 = vld [vmem:[%s2 + $0x10] sm:$0xff]
    %v110 = vld [vmem:[%s2 + $0x18] sm:$0xff]
    %v111 = vld [vmem:[%s2 + $0x20] sm:$0xff]
    %v112 = vld [vmem:[%s2 + $0x28] sm:$0xff]
    %v113 = vld [vmem:[%s2 + $0x30] sm:$0xff]
    %v114 = vld [vmem:[%s2 + $0x38] sm:$0xff]
    %v115 = vld [vmem:[%s2 + $0x40] sm:$0xff]
    %v116 = vld [vmem:[%s2 + $0x48] sm:$0xff]
    %v117 = vld [vmem:[%s2 + $0x50] sm:$0xff]
    %v118 = vld [vmem:[%s2 + $0x58] sm:$0xff]
    %v119 = vld [vmem:[%s2 + $0x60] sm:$0xff]
    %v120 = vld [vmem:[%s2 + $0x68] sm:$0xff]
    %v121 = vld [vmem:[%s2 + $0x70] sm:$0xff]
    %v122 = vld [vmem:[%s2 + $0x78] sm:$0xff]
    %v123 = vlaneseq
    %v124 = vshrl.u32 %v123, 7
    %v125 = vadd.s32 %v124, 8
    %v126 = vlaneseq
    %v127 = vshrl.u32 %v126, 7
    %v128 = vsub.s32 0, %v127
    %v129 = vrot.slane %v90, %v128
    %vm130 = vcmp.eq.s32.totalorder %v124, %v129
    %vm131 = vcmp.eq.s32.totalorder %v125, %v129
    %v132 = vsel %vm130, 1, 0
    %v133 = vsel %vm131, 1, 0
    %v134 = vcvt.s32.f32 %v132
    %v135 = vcvt.s32.f32 %v133
    %v136 = vpack.c.bf16 %v135, %v134
    %v137 = vlaneseq
    %v138 = vand.u32 %v137, 127
    %139 = vset.pattern.permute.xlu0 0
    %140 = vperm.xlu0 %139, %v91
    %v141 = vpop.permute.xlu0 %140
    %142 = vset.pattern.permute.xlu0 0
    %143 = vperm.xlu0 %142, %v92
    %v144 = vpop.permute.xlu0 %143
    %145 = vset.pattern.permute.xlu0 0
    %146 = vperm.xlu0 %145, %v93
    %v147 = vpop.permute.xlu0 %146
    %148 = vset.pattern.permute.xlu0 0
    %149 = vperm.xlu0 %148, %v94
    %v150 = vpop.permute.xlu0 %149
    %151 = vset.pattern.permute.xlu0 0
    %152 = vperm.xlu0 %151, %v95
    %v153 = vpop.permute.xlu0 %152
    %154 = vset.pattern.permute.xlu0 0
    %155 = vperm.xlu0 %154, %v96
    %v156 = vpop.permute.xlu0 %155
    %157 = vset.pattern.permute.xlu0 0
    %158 = vperm.xlu0 %157, %v97
    %v159 = vpop.permute.xlu0 %158
    %160 = vset.pattern.permute.xlu0 0
    %161 = vperm.xlu0 %160, %v98
    %v162 = vpop.permute.xlu0 %161
    %163 = vset.pattern.permute.xlu0 0
    %164 = vperm.xlu0 %163, %v99
    %v165 = vpop.permute.xlu0 %164
    %166 = vset.pattern.permute.xlu0 0
    %167 = vperm.xlu0 %166, %v100
    %v168 = vpop.permute.xlu0 %167
    %169 = vset.pattern.permute.xlu0 0
    %170 = vperm.xlu0 %169, %v101
    %v171 = vpop.permute.xlu0 %170
    %172 = vset.pattern.permute.xlu0 0
    %173 = vperm.xlu0 %172, %v102
    %v174 = vpop.permute.xlu0 %173
    %175 = vset.pattern.permute.xlu0 0
    %176 = vperm.xlu0 %175, %v103
    %v177 = vpop.permute.xlu0 %176
    %178 = vset.pattern.permute.xlu0 0
    %179 = vperm.xlu0 %178, %v104
    %v180 = vpop.permute.xlu0 %179
    %181 = vset.pattern.permute.xlu0 0
    %182 = vperm.xlu0 %181, %v105
    %v183 = vpop.permute.xlu0 %182
    %184 = vset.pattern.permute.xlu0 0
    %185 = vperm.xlu0 %184, %v106
    %v186 = vpop.permute.xlu0 %185
    %vm187 = vcmp.eq.s32.totalorder %v138, %v141
    %vm188 = vcmp.eq.s32.totalorder %v138, %v144
    %vm189 = vcmp.eq.s32.totalorder %v138, %v147
    %vm190 = vcmp.eq.s32.totalorder %v138, %v150
    %vm191 = vcmp.eq.s32.totalorder %v138, %v153
    %vm192 = vcmp.eq.s32.totalorder %v138, %v156
    %vm193 = vcmp.eq.s32.totalorder %v138, %v159
    %vm194 = vcmp.eq.s32.totalorder %v138, %v162
    %vm195 = vcmp.eq.s32.totalorder %v138, %v165
    %vm196 = vcmp.eq.s32.totalorder %v138, %v168
    %vm197 = vcmp.eq.s32.totalorder %v138, %v171
    %vm198 = vcmp.eq.s32.totalorder %v138, %v174
    %vm199 = vcmp.eq.s32.totalorder %v138, %v177
    %vm200 = vcmp.eq.s32.totalorder %v138, %v180
    %vm201 = vcmp.eq.s32.totalorder %v138, %v183
    %vm202 = vcmp.eq.s32.totalorder %v138, %v186
    %204 = vset.pattern.permute.xlu0 0
    %205 = vperm.xlu0 %204, %v107
    %v206 = vpop.permute.xlu0 %205
    %209 = vset.pattern.permute.xlu0 0
    %210 = vperm.xlu0 %209, %v108
    %v211 = vpop.permute.xlu0 %210
    %214 = vset.pattern.permute.xlu0 0
    %215 = vperm.xlu0 %214, %v109
    %v216 = vpop.permute.xlu0 %215
    %219 = vset.pattern.permute.xlu0 0
    %220 = vperm.xlu0 %219, %v110
    %v221 = vpop.permute.xlu0 %220
    %224 = vset.pattern.permute.xlu0 0
    %225 = vperm.xlu0 %224, %v111
    %v226 = vpop.permute.xlu0 %225
    %229 = vset.pattern.permute.xlu0 0
    %230 = vperm.xlu0 %229, %v112
    %v231 = vpop.permute.xlu0 %230
    %234 = vset.pattern.permute.xlu0 0
    %235 = vperm.xlu0 %234, %v113
    %v236 = vpop.permute.xlu0 %235
    %239 = vset.pattern.permute.xlu0 0
    %240 = vperm.xlu0 %239, %v114
    %v241 = vpop.permute.xlu0 %240
    %244 = vset.pattern.permute.xlu0 0
    %245 = vperm.xlu0 %244, %v115
    %v246 = vpop.permute.xlu0 %245
    %249 = vset.pattern.permute.xlu0 0
    %250 = vperm.xlu0 %249, %v116
    %v251 = vpop.permute.xlu0 %250
    %254 = vset.pattern.permute.xlu0 0
    %255 = vperm.xlu0 %254, %v117
    %v256 = vpop.permute.xlu0 %255
    %259 = vset.pattern.permute.xlu0 0
    %260 = vperm.xlu0 %259, %v118
    %v261 = vpop.permute.xlu0 %260
    %264 = vset.pattern.permute.xlu0 0
    %265 = vperm.xlu0 %264, %v119
    %v266 = vpop.permute.xlu0 %265
    %269 = vset.pattern.permute.xlu0 0
    %270 = vperm.xlu0 %269, %v120
    %v271 = vpop.permute.xlu0 %270
    %274 = vset.pattern.permute.xlu0 0
    %275 = vperm.xlu0 %274, %v121
    %v276 = vpop.permute.xlu0 %275
    %279 = vset.pattern.permute.xlu0 0
    %280 = vperm.xlu0 %279, %v122
    %v281 = vpop.permute.xlu0 %280
    %v283 = vsel %vm187, %v206, 0.0
    %v284 = vsel %vm188, %v211, 0.0
    %v285 = vsel %vm189, %v216, 0.0
    %v286 = vsel %vm190, %v221, 0.0
    %v287 = vsel %vm191, %v226, 0.0
    %v288 = vsel %vm192, %v231, 0.0
    %v289 = vsel %vm193, %v236, 0.0
    %v290 = vsel %vm194, %v241, 0.0
    %v291 = vsel %vm195, %v246, 0.0
    %v292 = vsel %vm196, %v251, 0.0
    %v293 = vsel %vm197, %v256, 0.0
    %v294 = vsel %vm198, %v261, 0.0
    %v295 = vsel %vm199, %v266, 0.0
    %v296 = vsel %vm200, %v271, 0.0
    %v297 = vsel %vm201, %v276, 0.0
    %v298 = vsel %vm202, %v281, 0.0
    %v299 = vpack.c.bf16 %v284, %v283
    %v300 = vpack.c.bf16 %v286, %v285
    %v301 = vpack.c.bf16 %v288, %v287
    %v302 = vpack.c.bf16 %v290, %v289
    %v303 = vpack.c.bf16 %v292, %v291
    %v304 = vpack.c.bf16 %v294, %v293
    %v305 = vpack.c.bf16 %v296, %v295
    %v306 = vpack.c.bf16 %v298, %v297
    %307 = vmatprep.subr.bf16.mxu0 0
    %308 = vmatpush1.bf16.msra.mxu0 %v306
    %309 = vmatprep.subr.bf16.mxu0 0
    %310 = vmatpush1.bf16.msra.mxu0 %v305
    %311 = vmatprep.subr.bf16.mxu0 0
    %312 = vmatpush1.bf16.msra.mxu0 %v304
    %313 = vmatprep.subr.bf16.mxu0 0
    %314 = vmatpush1.bf16.msra.mxu0 %v303
    %315 = vmatprep.subr.bf16.mxu0 0
    %316 = vmatpush1.bf16.msra.mxu0 %v302
    %317 = vmatprep.subr.bf16.mxu0 0
    %318 = vmatpush1.bf16.msra.mxu0 %v301
    %319 = vmatprep.subr.bf16.mxu0 0
    %320 = vmatpush1.bf16.msra.mxu0 %v300
    %321 = vmatprep.subr.bf16.mxu0 0
    %322 = vmatpush1.bf16.msra.mxu0 %v299
    %323 = vmatprep.subr.bf16.mxu0 0
    %324 = vmatpush2.bf16.msra.mxu0 0
    %325 = vmatprep.subr.bf16.mxu0 0
    %326 = vmatpush2.bf16.msra.mxu0 0
    %327 = vmatprep.subr.bf16.mxu0 0
    %328 = vmatpush2.bf16.msra.mxu0 0
    %329 = vmatprep.subr.bf16.mxu0 0
    %330 = vmatpush2.bf16.msra.mxu0 0
    %331 = vmatprep.subr.bf16.mxu0 0
    %332 = vmatpush2.bf16.msra.mxu0 0
    %333 = vmatprep.subr.bf16.mxu0 0
    %334 = vmatpush2.bf16.msra.mxu0 0
    %335 = vmatprep.subr.bf16.mxu0 0
    %336 = vmatpush2.bf16.msra.mxu0 0
    %337 = vmatprep.subr.bf16.mxu0 0
    %338 = vmatpush2.bf16.msra.mxu0 0
    %339 = vmatprep.mubr.bf16.mxu0 0
    %340 = vmatmul.mubr.bf16.gmra.mxu0 %v136
    %v341 = vpop.f32.mrf.mxu0
    %v342 = vadd.f32 0.0, %v341
    %v343 = vpop.f32.mrf.mxu0
    %v344 = vpop.f32.mrf.mxu0
    %v345 = vadd.f32 0.0, %v344
    %v346 = vpop.f32.mrf.mxu0
    %347 = vdwg.mxu0
    %v348 = vpack.c.bf16 %v345, %v342
    %v349 = vld [vmem:[%s3] sm:$0x1]
    %v350 = vlaneseq
    %v351 = vshrl.u32 %v350, 7
    %v352 = vsub.s32 0, %v351
    %v353 = vrot.slane %v349, %v352
    %vm354 = vcmp.eq.s32.totalorder %v124, %v353
    %v355 = vsel %vm354, 1, 0
    %v356 = vcvt.s32.f32 %v355
    %vm357 = vcmask 123904
    %v358 = vsel %vm357, %v356, 0.0
    %359 = vadd.xlane.f32.xlu0 %v358
    %v360 = vpop.xlane.xlu0 %359
    %v361 = vmax.f32 %v360, 1.0
    %v362 = vrcp.pop %v361
    %v363 = vmul.f32 %v356, %v362
    %v364 = vpack.c.bf16 %v363, %v363
    %v365 = vld [vmem:[%s4] sm:$0xff]
    %v366 = vld [vmem:[%s4 + $0x8] sm:$0xff]
    %v367 = vpack.c.bf16 %v366, %v365
    %vm368 = vcmask 130048
    %v370 = vsel %vm368, %v348, 0
    %372 = vmatprep.subr.bf16.mxu0 0
    %373 = vmatpush1.bf16.msra.mxu0 0
    %374 = vmatprep.subr.bf16.mxu0 0
    %375 = vmatpush1.bf16.msra.mxu0 0
    %376 = vmatprep.subr.bf16.mxu0 0
    %377 = vmatpush1.bf16.msra.mxu0 0
    %378 = vmatprep.subr.bf16.mxu0 0
    %379 = vmatpush1.bf16.msra.mxu0 0
    %380 = vmatprep.subr.bf16.mxu0 0
    %381 = vmatpush1.bf16.msra.mxu0 0
    %382 = vmatprep.subr.bf16.mxu0 0
    %383 = vmatpush1.bf16.msra.mxu0 0
    %384 = vmatprep.subr.bf16.mxu0 0
    %385 = vmatpush1.bf16.msra.mxu0 0
    %386 = vmatprep.subr.bf16.mxu0 0
    %387 = vmatpush1.bf16.msra.mxu0 %v367
    %388 = vmatprep.subr.bf16.mxu0 0
    %389 = vmatpush2.bf16.msra.mxu0 0
    %390 = vmatprep.subr.bf16.mxu0 0
    %391 = vmatpush2.bf16.msra.mxu0 0
    %392 = vmatprep.subr.bf16.mxu0 0
    %393 = vmatpush2.bf16.msra.mxu0 0
    %394 = vmatprep.subr.bf16.mxu0 0
    %395 = vmatpush2.bf16.msra.mxu0 0
    %396 = vmatprep.subr.bf16.mxu0 0
    %397 = vmatpush2.bf16.msra.mxu0 0
    %398 = vmatprep.subr.bf16.mxu0 0
    %399 = vmatpush2.bf16.msra.mxu0 0
    %400 = vmatprep.subr.bf16.mxu0 0
    %401 = vmatpush2.bf16.msra.mxu0 0
    %402 = vmatprep.subr.bf16.mxu0 0
    %403 = vmatpush2.bf16.msra.mxu0 0
    %404 = vmatprep.mubr.bf16.mxu0 0
    %405 = vmatmul.mubr.bf16.gmra.mxu0 %v370
    %v406 = vpop.f32.mrf.mxu0
    %v407 = vadd.f32 0.0, %v406
    %v408 = vpop.f32.mrf.mxu0
    %v409 = vpop.f32.mrf.mxu0
    %v410 = vadd.f32 0.0, %v409
    %v411 = vpop.f32.mrf.mxu0
    %412 = vdwg.mxu0
    %v413 = vpack.c.bf16 %v410, %v407
    %v414 = vld [vmem:[%s5] sm:$0xff]
    %v415 = vld [vmem:[%s5 + $0x8] sm:$0xff]
    %v416 = vld [vmem:[%s5 + $0x10] sm:$0xff]
    %v417 = vld [vmem:[%s5 + $0x18] sm:$0xff]
    %v418 = vld [vmem:[%s5 + $0x20] sm:$0xff]
    %v419 = vld [vmem:[%s5 + $0x28] sm:$0xff]
    %v420 = vld [vmem:[%s5 + $0x30] sm:$0xff]
    %v421 = vld [vmem:[%s5 + $0x38] sm:$0xff]
    %v422 = vld [vmem:[%s5 + $0x40] sm:$0xff]
    %v423 = vld [vmem:[%s5 + $0x48] sm:$0xff]
    %v424 = vld [vmem:[%s5 + $0x50] sm:$0xff]
    %v425 = vld [vmem:[%s5 + $0x58] sm:$0xff]
    %v426 = vld [vmem:[%s5 + $0x60] sm:$0xff]
    %v427 = vld [vmem:[%s5 + $0x68] sm:$0xff]
    %v428 = vld [vmem:[%s5 + $0x70] sm:$0xff]
    %v429 = vld [vmem:[%s5 + $0x78] sm:$0xff]
    %v430 = vld [vmem:[%s5 + $0x80] sm:$0xff]
    %v431 = vld [vmem:[%s5 + $0x88] sm:$0xff]
    %v432 = vld [vmem:[%s5 + $0x90] sm:$0xff]
    %v433 = vld [vmem:[%s5 + $0x98] sm:$0xff]
    %v434 = vld [vmem:[%s5 + $0xa0] sm:$0xff]
    %v435 = vld [vmem:[%s5 + $0xa8] sm:$0xff]
    %v436 = vld [vmem:[%s5 + $0xb0] sm:$0xff]
    %v437 = vld [vmem:[%s5 + $0xb8] sm:$0xff]
    %v438 = vld [vmem:[%s5 + $0xc0] sm:$0xff]
    %v439 = vld [vmem:[%s5 + $0xc8] sm:$0xff]
    %v440 = vld [vmem:[%s5 + $0xd0] sm:$0xff]
    %v441 = vld [vmem:[%s5 + $0xd8] sm:$0xff]
    %v442 = vld [vmem:[%s5 + $0xe0] sm:$0xff]
    %v443 = vld [vmem:[%s5 + $0xe8] sm:$0xff]
    %v444 = vld [vmem:[%s5 + $0xf0] sm:$0xff]
    %v445 = vld [vmem:[%s5 + $0xf8] sm:$0xff]
    %v446 = vld [vmem:[%s6] sm:$0xff]
    %v447 = vld [vmem:[%s6 + $0x8] sm:$0xff]
    %v448 = vld [vmem:[%s6 + $0x10] sm:$0xff]
    %v449 = vld [vmem:[%s6 + $0x18] sm:$0xff]
    %v450 = vld [vmem:[%s6 + $0x20] sm:$0xff]
    %v451 = vld [vmem:[%s6 + $0x28] sm:$0xff]
    %v452 = vld [vmem:[%s6 + $0x30] sm:$0xff]
    %v453 = vld [vmem:[%s6 + $0x38] sm:$0xff]
    %v454 = vld [vmem:[%s6 + $0x40] sm:$0xff]
    %v455 = vld [vmem:[%s6 + $0x48] sm:$0xff]
    %v456 = vld [vmem:[%s6 + $0x50] sm:$0xff]
    %v457 = vld [vmem:[%s6 + $0x58] sm:$0xff]
    %v458 = vld [vmem:[%s6 + $0x60] sm:$0xff]
    %v459 = vld [vmem:[%s6 + $0x68] sm:$0xff]
    %v460 = vld [vmem:[%s6 + $0x70] sm:$0xff]
    %v461 = vld [vmem:[%s6 + $0x78] sm:$0xff]
    %v462 = vld [vmem:[%s6 + $0x80] sm:$0xff]
    %v463 = vld [vmem:[%s6 + $0x88] sm:$0xff]
    %v464 = vld [vmem:[%s6 + $0x90] sm:$0xff]
    %v465 = vld [vmem:[%s6 + $0x98] sm:$0xff]
    %v466 = vld [vmem:[%s6 + $0xa0] sm:$0xff]
    %v467 = vld [vmem:[%s6 + $0xa8] sm:$0xff]
    %v468 = vld [vmem:[%s6 + $0xb0] sm:$0xff]
    %v469 = vld [vmem:[%s6 + $0xb8] sm:$0xff]
    %v470 = vld [vmem:[%s6 + $0xc0] sm:$0xff]
    %v471 = vld [vmem:[%s6 + $0xc8] sm:$0xff]
    %v472 = vld [vmem:[%s6 + $0xd0] sm:$0xff]
    %v473 = vld [vmem:[%s6 + $0xd8] sm:$0xff]
    %v474 = vld [vmem:[%s6 + $0xe0] sm:$0xff]
    %v475 = vld [vmem:[%s6 + $0xe8] sm:$0xff]
    %v476 = vld [vmem:[%s6 + $0xf0] sm:$0xff]
    %v477 = vld [vmem:[%s6 + $0xf8] sm:$0xff]
    %v510 = vunpack.c.l.b16 %v446
    %v511 = vunpack.c.h.b16 %v446
    %v512 = vunpack.c.l.b16 %v447
    %v513 = vunpack.c.h.b16 %v447
    %v514 = vunpack.c.l.b16 %v448
    %v515 = vunpack.c.h.b16 %v448
    %v516 = vunpack.c.l.b16 %v449
    %v517 = vunpack.c.h.b16 %v449
    %v518 = vunpack.c.l.b16 %v450
    %v519 = vunpack.c.h.b16 %v450
    %v520 = vunpack.c.l.b16 %v451
    %v521 = vunpack.c.h.b16 %v451
    %v522 = vunpack.c.l.b16 %v452
    %v523 = vunpack.c.h.b16 %v452
    %v524 = vunpack.c.l.b16 %v453
    %v525 = vunpack.c.h.b16 %v453
    %v526 = vunpack.c.l.b16 %v454
    %v527 = vunpack.c.h.b16 %v454
    %v528 = vunpack.c.l.b16 %v455
    %v529 = vunpack.c.h.b16 %v455
    %v530 = vunpack.c.l.b16 %v456
    %v531 = vunpack.c.h.b16 %v456
    %v532 = vunpack.c.l.b16 %v457
    %v533 = vunpack.c.h.b16 %v457
    %v534 = vunpack.c.l.b16 %v458
    %v535 = vunpack.c.h.b16 %v458
    %v536 = vunpack.c.l.b16 %v459
    %v537 = vunpack.c.h.b16 %v459
    %v538 = vunpack.c.l.b16 %v460
    %v539 = vunpack.c.h.b16 %v460
    %v540 = vunpack.c.l.b16 %v461
    %v541 = vunpack.c.h.b16 %v461
    %v542 = vunpack.c.l.b16 %v462
    %v543 = vunpack.c.h.b16 %v462
    %v544 = vunpack.c.l.b16 %v463
    %v545 = vunpack.c.h.b16 %v463
    %v546 = vunpack.c.l.b16 %v464
    %v547 = vunpack.c.h.b16 %v464
    %v548 = vunpack.c.l.b16 %v465
    %v549 = vunpack.c.h.b16 %v465
    %v550 = vunpack.c.l.b16 %v466
    %v551 = vunpack.c.h.b16 %v466
    %v552 = vunpack.c.l.b16 %v467
    %v553 = vunpack.c.h.b16 %v467
    %v554 = vunpack.c.l.b16 %v468
    %v555 = vunpack.c.h.b16 %v468
    %v556 = vunpack.c.l.b16 %v469
    %v557 = vunpack.c.h.b16 %v469
    %v558 = vunpack.c.l.b16 %v470
    %v559 = vunpack.c.h.b16 %v470
    %v560 = vunpack.c.l.b16 %v471
    %v561 = vunpack.c.h.b16 %v471
    %v562 = vunpack.c.l.b16 %v472
    %v563 = vunpack.c.h.b16 %v472
    %v564 = vunpack.c.l.b16 %v473
    %v565 = vunpack.c.h.b16 %v473
    %v566 = vunpack.c.l.b16 %v474
    %v567 = vunpack.c.h.b16 %v474
    %v568 = vunpack.c.l.b16 %v475
    %v569 = vunpack.c.h.b16 %v475
    %v570 = vunpack.c.l.b16 %v476
    %v571 = vunpack.c.h.b16 %v476
    %v572 = vunpack.c.l.b16 %v477
    %v573 = vunpack.c.h.b16 %v477
    %v574 = vpack.c.b16 %v514, %v510
    %v575 = vpack.c.b16 %v515, %v511
    %v576 = vpack.c.b16 %v516, %v512
    %v577 = vpack.c.b16 %v517, %v513
    %v578 = vpack.c.b16 %v522, %v518
    %v579 = vpack.c.b16 %v523, %v519
    %v580 = vpack.c.b16 %v524, %v520
    %v581 = vpack.c.b16 %v525, %v521
    %v582 = vpack.c.b16 %v530, %v526
    %v583 = vpack.c.b16 %v531, %v527
    %v584 = vpack.c.b16 %v532, %v528
    %v585 = vpack.c.b16 %v533, %v529
    %v586 = vpack.c.b16 %v538, %v534
    %v587 = vpack.c.b16 %v539, %v535
    %v588 = vpack.c.b16 %v540, %v536
    %v589 = vpack.c.b16 %v541, %v537
    %v590 = vpack.c.b16 %v546, %v542
    %v591 = vpack.c.b16 %v547, %v543
    %v592 = vpack.c.b16 %v548, %v544
    %v593 = vpack.c.b16 %v549, %v545
    %v594 = vpack.c.b16 %v554, %v550
    %v595 = vpack.c.b16 %v555, %v551
    %v596 = vpack.c.b16 %v556, %v552
    %v597 = vpack.c.b16 %v557, %v553
    %v598 = vpack.c.b16 %v562, %v558
    %v599 = vpack.c.b16 %v563, %v559
    %v600 = vpack.c.b16 %v564, %v560
    %v601 = vpack.c.b16 %v565, %v561
    %v602 = vpack.c.b16 %v570, %v566
    %v603 = vpack.c.b16 %v571, %v567
    %v604 = vpack.c.b16 %v572, %v568
    %v605 = vpack.c.b16 %v573, %v569
    %638 = vmatprep.subr.bf16.mxu0 %v603
    %639 = vmatpush1.bf16.msra.mxu0 %v602
    %640 = vmatprep.subr.bf16.mxu0 %v599
    %641 = vmatpush1.bf16.msra.mxu0 %v598
    %642 = vmatprep.subr.bf16.mxu0 %v595
    %643 = vmatpush1.bf16.msra.mxu0 %v594
    %644 = vmatprep.subr.bf16.mxu0 %v591
    %645 = vmatpush1.bf16.msra.mxu0 %v590
    %646 = vmatprep.subr.bf16.mxu0 %v587
    %647 = vmatpush1.bf16.msra.mxu0 %v586
    %648 = vmatprep.subr.bf16.mxu0 %v583
    %649 = vmatpush1.bf16.msra.mxu0 %v582
    %650 = vmatprep.subr.bf16.mxu0 %v579
    %651 = vmatpush1.bf16.msra.mxu0 %v578
    %652 = vmatprep.subr.bf16.mxu0 %v575
    %653 = vmatpush1.bf16.msra.mxu0 %v574
    %654 = vmatprep.subr.bf16.mxu0 0
    %655 = vmatpush2.bf16.msra.mxu0 0
    %656 = vmatprep.subr.bf16.mxu0 0
    %657 = vmatpush2.bf16.msra.mxu0 0
    %658 = vmatprep.subr.bf16.mxu0 0
    %659 = vmatpush2.bf16.msra.mxu0 0
    %660 = vmatprep.subr.bf16.mxu0 0
    %661 = vmatpush2.bf16.msra.mxu0 0
    %662 = vmatprep.subr.bf16.mxu0 0
    %663 = vmatpush2.bf16.msra.mxu0 0
    %664 = vmatprep.subr.bf16.mxu0 0
    %665 = vmatpush2.bf16.msra.mxu0 0
    %666 = vmatprep.subr.bf16.mxu0 0
    %667 = vmatpush2.bf16.msra.mxu0 0
    %668 = vmatprep.subr.bf16.mxu0 0
    %669 = vmatpush2.bf16.msra.mxu0 0
    %670 = vmatprep.mubr.bf16.mxu0 0
    %671 = vmatmul.mubr.bf16.gmra.mxu0 %v367
    %v672 = vpop.f32.mrf.mxu0
    %v673 = vadd.f32 0.0, %v672
    %v674 = vpop.f32.mrf.mxu0
    %v675 = vadd.f32 0.0, %v674
    %v676 = vpop.f32.mrf.mxu0
    %v677 = vadd.f32 0.0, %v676
    %v678 = vpop.f32.mrf.mxu0
    %v679 = vadd.f32 0.0, %v678
    %680 = vdwg.mxu0
    %681 = vmatprep.subr.bf16.mxu0 %v605
    %682 = vmatpush1.bf16.msra.mxu0 %v604
    %683 = vmatprep.subr.bf16.mxu0 %v601
    %684 = vmatpush1.bf16.msra.mxu0 %v600
    %685 = vmatprep.subr.bf16.mxu0 %v597
    %686 = vmatpush1.bf16.msra.mxu0 %v596
    %687 = vmatprep.subr.bf16.mxu0 %v593
    %688 = vmatpush1.bf16.msra.mxu0 %v592
    %689 = vmatprep.subr.bf16.mxu0 %v589
    %690 = vmatpush1.bf16.msra.mxu0 %v588
    %691 = vmatprep.subr.bf16.mxu0 %v585
    %692 = vmatpush1.bf16.msra.mxu0 %v584
    %693 = vmatprep.subr.bf16.mxu0 %v581
    %694 = vmatpush1.bf16.msra.mxu0 %v580
    %695 = vmatprep.subr.bf16.mxu0 %v577
    %696 = vmatpush1.bf16.msra.mxu0 %v576
    %697 = vmatprep.subr.bf16.mxu0 0
    %698 = vmatpush2.bf16.msra.mxu0 0
    %699 = vmatprep.subr.bf16.mxu0 0
    %700 = vmatpush2.bf16.msra.mxu0 0
    %701 = vmatprep.subr.bf16.mxu0 0
    %702 = vmatpush2.bf16.msra.mxu0 0
    %703 = vmatprep.subr.bf16.mxu0 0
    %704 = vmatpush2.bf16.msra.mxu0 0
    %705 = vmatprep.subr.bf16.mxu0 0
    %706 = vmatpush2.bf16.msra.mxu0 0
    %707 = vmatprep.subr.bf16.mxu0 0
    %708 = vmatpush2.bf16.msra.mxu0 0
    %709 = vmatprep.subr.bf16.mxu0 0
    %710 = vmatpush2.bf16.msra.mxu0 0
    %711 = vmatprep.subr.bf16.mxu0 0
    %712 = vmatpush2.bf16.msra.mxu0 0
    %713 = vmatprep.mubr.bf16.mxu0 0
    %714 = vmatmul.mubr.bf16.gmra.mxu0 %v367
    %v715 = vpop.f32.mrf.mxu0
    %v716 = vadd.f32 0.0, %v715
    %v717 = vpop.f32.mrf.mxu0
    %v718 = vadd.f32 0.0, %v717
    %v719 = vpop.f32.mrf.mxu0
    %v720 = vadd.f32 0.0, %v719
    %v721 = vpop.f32.mrf.mxu0
    %v722 = vadd.f32 0.0, %v721
    %723 = vdwg.mxu0
    %v756 = vunpack.c.l.b16 %v414
    %v757 = vunpack.c.h.b16 %v414
    %v758 = vunpack.c.l.b16 %v415
    %v759 = vunpack.c.h.b16 %v415
    %v760 = vunpack.c.l.b16 %v416
    %v761 = vunpack.c.h.b16 %v416
    %v762 = vunpack.c.l.b16 %v417
    %v763 = vunpack.c.h.b16 %v417
    %v764 = vunpack.c.l.b16 %v418
    %v765 = vunpack.c.h.b16 %v418
    %v766 = vunpack.c.l.b16 %v419
    %v767 = vunpack.c.h.b16 %v419
    %v768 = vunpack.c.l.b16 %v420
    %v769 = vunpack.c.h.b16 %v420
    %v770 = vunpack.c.l.b16 %v421
    %v771 = vunpack.c.h.b16 %v421
    %v772 = vunpack.c.l.b16 %v422
    %v773 = vunpack.c.h.b16 %v422
    %v774 = vunpack.c.l.b16 %v423
    %v775 = vunpack.c.h.b16 %v423
    %v776 = vunpack.c.l.b16 %v424
    %v777 = vunpack.c.h.b16 %v424
    %v778 = vunpack.c.l.b16 %v425
    %v779 = vunpack.c.h.b16 %v425
    %v780 = vunpack.c.l.b16 %v426
    %v781 = vunpack.c.h.b16 %v426
    %v782 = vunpack.c.l.b16 %v427
    %v783 = vunpack.c.h.b16 %v427
    %v784 = vunpack.c.l.b16 %v428
    %v785 = vunpack.c.h.b16 %v428
    %v786 = vunpack.c.l.b16 %v429
    %v787 = vunpack.c.h.b16 %v429
    %v788 = vunpack.c.l.b16 %v430
    %v789 = vunpack.c.h.b16 %v430
    %v790 = vunpack.c.l.b16 %v431
    %v791 = vunpack.c.h.b16 %v431
    %v792 = vunpack.c.l.b16 %v432
    %v793 = vunpack.c.h.b16 %v432
    %v794 = vunpack.c.l.b16 %v433
    %v795 = vunpack.c.h.b16 %v433
    %v796 = vunpack.c.l.b16 %v434
    %v797 = vunpack.c.h.b16 %v434
    %v798 = vunpack.c.l.b16 %v435
    %v799 = vunpack.c.h.b16 %v435
    %v800 = vunpack.c.l.b16 %v436
    %v801 = vunpack.c.h.b16 %v436
    %v802 = vunpack.c.l.b16 %v437
    %v803 = vunpack.c.h.b16 %v437
    %v804 = vunpack.c.l.b16 %v438
    %v805 = vunpack.c.h.b16 %v438
    %v806 = vunpack.c.l.b16 %v439
    %v807 = vunpack.c.h.b16 %v439
    %v808 = vunpack.c.l.b16 %v440
    %v809 = vunpack.c.h.b16 %v440
    %v810 = vunpack.c.l.b16 %v441
    %v811 = vunpack.c.h.b16 %v441
    %v812 = vunpack.c.l.b16 %v442
    %v813 = vunpack.c.h.b16 %v442
    %v814 = vunpack.c.l.b16 %v443
    %v815 = vunpack.c.h.b16 %v443
    %v816 = vunpack.c.l.b16 %v444
    %v817 = vunpack.c.h.b16 %v444
    %v818 = vunpack.c.l.b16 %v445
    %v819 = vunpack.c.h.b16 %v445
    %v820 = vpack.c.b16 %v760, %v756
    %v821 = vpack.c.b16 %v761, %v757
    %v822 = vpack.c.b16 %v762, %v758
    %v823 = vpack.c.b16 %v763, %v759
    %v824 = vpack.c.b16 %v768, %v764
    %v825 = vpack.c.b16 %v769, %v765
    %v826 = vpack.c.b16 %v770, %v766
    %v827 = vpack.c.b16 %v771, %v767
    %v828 = vpack.c.b16 %v776, %v772
    %v829 = vpack.c.b16 %v777, %v773
    %v830 = vpack.c.b16 %v778, %v774
    %v831 = vpack.c.b16 %v779, %v775
    %v832 = vpack.c.b16 %v784, %v780
    %v833 = vpack.c.b16 %v785, %v781
    %v834 = vpack.c.b16 %v786, %v782
    %v835 = vpack.c.b16 %v787, %v783
    %v836 = vpack.c.b16 %v792, %v788
    %v837 = vpack.c.b16 %v793, %v789
    %v838 = vpack.c.b16 %v794, %v790
    %v839 = vpack.c.b16 %v795, %v791
    %v840 = vpack.c.b16 %v800, %v796
    %v841 = vpack.c.b16 %v801, %v797
    %v842 = vpack.c.b16 %v802, %v798
    %v843 = vpack.c.b16 %v803, %v799
    %v844 = vpack.c.b16 %v808, %v804
    %v845 = vpack.c.b16 %v809, %v805
    %v846 = vpack.c.b16 %v810, %v806
    %v847 = vpack.c.b16 %v811, %v807
    %v848 = vpack.c.b16 %v816, %v812
    %v849 = vpack.c.b16 %v817, %v813
    %v850 = vpack.c.b16 %v818, %v814
    %v851 = vpack.c.b16 %v819, %v815
    %884 = vmatprep.subr.bf16.mxu0 %v849
    %885 = vmatpush1.bf16.msra.mxu0 %v848
    %886 = vmatprep.subr.bf16.mxu0 %v845
    %887 = vmatpush1.bf16.msra.mxu0 %v844
    %888 = vmatprep.subr.bf16.mxu0 %v841
    %889 = vmatpush1.bf16.msra.mxu0 %v840
    %890 = vmatprep.subr.bf16.mxu0 %v837
    %891 = vmatpush1.bf16.msra.mxu0 %v836
    %892 = vmatprep.subr.bf16.mxu0 %v833
    %893 = vmatpush1.bf16.msra.mxu0 %v832
    %894 = vmatprep.subr.bf16.mxu0 %v829
    %895 = vmatpush1.bf16.msra.mxu0 %v828
    %896 = vmatprep.subr.bf16.mxu0 %v825
    %897 = vmatpush1.bf16.msra.mxu0 %v824
    %898 = vmatprep.subr.bf16.mxu0 %v821
    %899 = vmatpush1.bf16.msra.mxu0 %v820
    %900 = vmatprep.subr.bf16.mxu0 0
    %901 = vmatpush2.bf16.msra.mxu0 0
    %902 = vmatprep.subr.bf16.mxu0 0
    %903 = vmatpush2.bf16.msra.mxu0 0
    %904 = vmatprep.subr.bf16.mxu0 0
    %905 = vmatpush2.bf16.msra.mxu0 0
    %906 = vmatprep.subr.bf16.mxu0 0
    %907 = vmatpush2.bf16.msra.mxu0 0
    %908 = vmatprep.subr.bf16.mxu0 0
    %909 = vmatpush2.bf16.msra.mxu0 0
    %910 = vmatprep.subr.bf16.mxu0 0
    %911 = vmatpush2.bf16.msra.mxu0 0
    %912 = vmatprep.subr.bf16.mxu0 0
    %913 = vmatpush2.bf16.msra.mxu0 0
    %914 = vmatprep.subr.bf16.mxu0 0
    %915 = vmatpush2.bf16.msra.mxu0 0
    %916 = vmatprep.mubr.bf16.mxu0 0
    %917 = vmatmul.mubr.bf16.gmra.mxu0 %v413
    %v918 = vpop.f32.mrf.mxu0
    %v919 = vadd.f32 %v673, %v918
    %v920 = vpop.f32.mrf.mxu0
    %v921 = vadd.f32 %v675, %v920
    %v922 = vpop.f32.mrf.mxu0
    %v923 = vadd.f32 %v677, %v922
    %v924 = vpop.f32.mrf.mxu0
    %v925 = vadd.f32 %v679, %v924
    %926 = vdwg.mxu0
    %927 = vmatprep.subr.bf16.mxu0 %v851
    %928 = vmatpush1.bf16.msra.mxu0 %v850
    %929 = vmatprep.subr.bf16.mxu0 %v847
    %930 = vmatpush1.bf16.msra.mxu0 %v846
    %931 = vmatprep.subr.bf16.mxu0 %v843
    %932 = vmatpush1.bf16.msra.mxu0 %v842
    %933 = vmatprep.subr.bf16.mxu0 %v839
    %934 = vmatpush1.bf16.msra.mxu0 %v838
    %935 = vmatprep.subr.bf16.mxu0 %v835
    %936 = vmatpush1.bf16.msra.mxu0 %v834
    %937 = vmatprep.subr.bf16.mxu0 %v831
    %938 = vmatpush1.bf16.msra.mxu0 %v830
    %939 = vmatprep.subr.bf16.mxu0 %v827
    %940 = vmatpush1.bf16.msra.mxu0 %v826
    %941 = vmatprep.subr.bf16.mxu0 %v823
    %942 = vmatpush1.bf16.msra.mxu0 %v822
    %943 = vmatprep.subr.bf16.mxu0 0
    %944 = vmatpush2.bf16.msra.mxu0 0
    %945 = vmatprep.subr.bf16.mxu0 0
    %946 = vmatpush2.bf16.msra.mxu0 0
    %947 = vmatprep.subr.bf16.mxu0 0
    %948 = vmatpush2.bf16.msra.mxu0 0
    %949 = vmatprep.subr.bf16.mxu0 0
    %950 = vmatpush2.bf16.msra.mxu0 0
    %951 = vmatprep.subr.bf16.mxu0 0
    %952 = vmatpush2.bf16.msra.mxu0 0
    %953 = vmatprep.subr.bf16.mxu0 0
    %954 = vmatpush2.bf16.msra.mxu0 0
    %955 = vmatprep.subr.bf16.mxu0 0
    %956 = vmatpush2.bf16.msra.mxu0 0
    %957 = vmatprep.subr.bf16.mxu0 0
    %958 = vmatpush2.bf16.msra.mxu0 0
    %959 = vmatprep.mubr.bf16.mxu0 0
    %960 = vmatmul.mubr.bf16.gmra.mxu0 %v413
    %v961 = vpop.f32.mrf.mxu0
    %v962 = vadd.f32 %v716, %v961
    %v963 = vpop.f32.mrf.mxu0
    %v964 = vadd.f32 %v718, %v963
    %v965 = vpop.f32.mrf.mxu0
    %v966 = vadd.f32 %v720, %v965
    %v967 = vpop.f32.mrf.mxu0
    %v968 = vadd.f32 %v722, %v967
    %969 = vdwg.mxu0
    %v970 = vld [vmem:[%s7] sm:$0xf]
    %v972 = vlaneseq
    %v973 = vshrl.u32 %v972, 7
    %v974 = vsub.s32 0, %v973
    %v975 = vrot.slane %v970, %v974
    %v976 = vlaneseq
    %v977 = vshrl.u32 %v976, 7
    %v978 = vsub.s32 1, %v977
    %v979 = vrot.slane %v970, %v978
    %v980 = vlaneseq
    %v981 = vshrl.u32 %v980, 7
    %v982 = vsub.s32 2, %v981
    %v983 = vrot.slane %v970, %v982
    %v984 = vlaneseq
    %v985 = vshrl.u32 %v984, 7
    %v986 = vsub.s32 3, %v985
    %v987 = vrot.slane %v970, %v986
    %v992 = vadd.f32 %v919, %v975
    %v993 = vadd.f32 %v921, %v979
    %v994 = vadd.f32 %v962, %v983
    %v995 = vadd.f32 %v964, %v987
    %v996 = vadd.f32 %v923, %v975
    %v997 = vadd.f32 %v925, %v979
    %v998 = vadd.f32 %v966, %v983
    %v999 = vadd.f32 %v968, %v987
    %v1000 = vmax.f32 %v992, 0.0
    %v1001 = vmax.f32 %v993, 0.0
    %v1002 = vmax.f32 %v994, 0.0
    %v1003 = vmax.f32 %v995, 0.0
    %v1004 = vmax.f32 %v996, 0.0
    %v1005 = vmax.f32 %v997, 0.0
    %v1006 = vmax.f32 %v998, 0.0
    %v1007 = vmax.f32 %v999, 0.0
    %v1008 = vpack.c.bf16 %v1004, %v1000
    %v1009 = vpack.c.bf16 %v1005, %v1001
    %v1010 = vpack.c.bf16 %v1006, %v1002
    %v1011 = vpack.c.bf16 %v1007, %v1003
    %1012 = vmatprep.subr.bf16.mxu0 0
    %1013 = vmatpush1.bf16.msra.mxu0 0
    %1014 = vmatprep.subr.bf16.mxu0 0
    %1015 = vmatpush1.bf16.msra.mxu0 0
    %1016 = vmatprep.subr.bf16.mxu0 0
    %1017 = vmatpush1.bf16.msra.mxu0 0
    %1018 = vmatprep.subr.bf16.mxu0 0
    %1019 = vmatpush1.bf16.msra.mxu0 0
    %1020 = vmatprep.subr.bf16.mxu0 0
    %1021 = vmatpush1.bf16.msra.mxu0 0
    %1022 = vmatprep.subr.bf16.mxu0 0
    %1023 = vmatpush1.bf16.msra.mxu0 0
    %1024 = vmatprep.subr.bf16.mxu0 0
    %1025 = vmatpush1.bf16.msra.mxu0 0
    %1026 = vmatprep.subr.bf16.mxu0 %v1009
    %1027 = vmatpush1.bf16.msra.mxu0 %v1008
    %1028 = vmatprep.subr.bf16.mxu0 0
    %1029 = vmatpush2.bf16.msra.mxu0 0
    %1030 = vmatprep.subr.bf16.mxu0 0
    %1031 = vmatpush2.bf16.msra.mxu0 0
    %1032 = vmatprep.subr.bf16.mxu0 0
    %1033 = vmatpush2.bf16.msra.mxu0 0
    %1034 = vmatprep.subr.bf16.mxu0 0
    %1035 = vmatpush2.bf16.msra.mxu0 0
    %1036 = vmatprep.subr.bf16.mxu0 0
    %1037 = vmatpush2.bf16.msra.mxu0 0
    %1038 = vmatprep.subr.bf16.mxu0 0
    %1039 = vmatpush2.bf16.msra.mxu0 0
    %1040 = vmatprep.subr.bf16.mxu0 0
    %1041 = vmatpush2.bf16.msra.mxu0 0
    %1042 = vmatprep.subr.bf16.mxu0 0
    %1043 = vmatpush2.bf16.msra.mxu0 0
    %1044 = vmatprep.mubr.bf16.mxu0 0
    %1045 = vmatmul.mubr.bf16.gmra.mxu0 %v370
    %v1046 = vpop.f32.mrf.mxu0
    %v1047 = vadd.f32 0.0, %v1046
    %v1048 = vpop.f32.mrf.mxu0
    %v1049 = vadd.f32 0.0, %v1048
    %v1050 = vpop.f32.mrf.mxu0
    %v1051 = vadd.f32 0.0, %v1050
    %v1052 = vpop.f32.mrf.mxu0
    %v1053 = vadd.f32 0.0, %v1052
    %1054 = vdwg.mxu0
    %1055 = vmatprep.subr.bf16.mxu0 0
    %1056 = vmatpush1.bf16.msra.mxu0 0
    %1057 = vmatprep.subr.bf16.mxu0 0
    %1058 = vmatpush1.bf16.msra.mxu0 0
    %1059 = vmatprep.subr.bf16.mxu0 0
    %1060 = vmatpush1.bf16.msra.mxu0 0
    %1061 = vmatprep.subr.bf16.mxu0 0
    %1062 = vmatpush1.bf16.msra.mxu0 0
    %1063 = vmatprep.subr.bf16.mxu0 0
    %1064 = vmatpush1.bf16.msra.mxu0 0
    %1065 = vmatprep.subr.bf16.mxu0 0
    %1066 = vmatpush1.bf16.msra.mxu0 0
    %1067 = vmatprep.subr.bf16.mxu0 0
    %1068 = vmatpush1.bf16.msra.mxu0 0
    %1069 = vmatprep.subr.bf16.mxu0 %v1011
    %1070 = vmatpush1.bf16.msra.mxu0 %v1010
    %1071 = vmatprep.subr.bf16.mxu0 0
    %1072 = vmatpush2.bf16.msra.mxu0 0
    %1073 = vmatprep.subr.bf16.mxu0 0
    %1074 = vmatpush2.bf16.msra.mxu0 0
    %1075 = vmatprep.subr.bf16.mxu0 0
    %1076 = vmatpush2.bf16.msra.mxu0 0
    %1077 = vmatprep.subr.bf16.mxu0 0
    %1078 = vmatpush2.bf16.msra.mxu0 0
    %1079 = vmatprep.subr.bf16.mxu0 0
    %1080 = vmatpush2.bf16.msra.mxu0 0
    %1081 = vmatprep.subr.bf16.mxu0 0
    %1082 = vmatpush2.bf16.msra.mxu0 0
    %1083 = vmatprep.subr.bf16.mxu0 0
    %1084 = vmatpush2.bf16.msra.mxu0 0
    %1085 = vmatprep.subr.bf16.mxu0 0
    %1086 = vmatpush2.bf16.msra.mxu0 0
    %1087 = vmatprep.mubr.bf16.mxu0 0
    %1088 = vmatmul.mubr.bf16.gmra.mxu0 %v370
    %v1089 = vpop.f32.mrf.mxu0
    %v1090 = vadd.f32 0.0, %v1089
    %v1091 = vpop.f32.mrf.mxu0
    %v1092 = vadd.f32 0.0, %v1091
    %v1093 = vpop.f32.mrf.mxu0
    %v1094 = vadd.f32 0.0, %v1093
    %v1095 = vpop.f32.mrf.mxu0
    %v1096 = vadd.f32 0.0, %v1095
    %1097 = vdwg.mxu0
    %v1098 = vpack.c.bf16 %v1051, %v1047
    %v1099 = vpack.c.bf16 %v1053, %v1049
    %v1100 = vpack.c.bf16 %v1094, %v1090
    %v1101 = vpack.c.bf16 %v1096, %v1092
    %v1102 = vld [vmem:[#allocation3] sm:$0xff]
    %v1103 = vld [vmem:[#allocation3 + $0x8] sm:$0xff]
    %v1104 = vld [vmem:[#allocation3 + $0x10] sm:$0xff]
    %v1105 = vld [vmem:[#allocation3 + $0x18] sm:$0xff]
    %v1106 = vld [vmem:[#allocation3 + $0x20] sm:$0xff]
    %v1107 = vld [vmem:[#allocation3 + $0x28] sm:$0xff]
    %v1108 = vld [vmem:[#allocation3 + $0x30] sm:$0xff]
    %v1109 = vld [vmem:[#allocation3 + $0x38] sm:$0xff]
    %v1110 = vld [vmem:[#allocation3 + $0x40] sm:$0xff]
    %v1111 = vld [vmem:[#allocation3 + $0x48] sm:$0xff]
    %v1112 = vld [vmem:[#allocation3 + $0x50] sm:$0xff]
    %v1113 = vld [vmem:[#allocation3 + $0x58] sm:$0xff]
    %v1114 = vld [vmem:[#allocation3 + $0x60] sm:$0xff]
    %v1115 = vld [vmem:[#allocation3 + $0x68] sm:$0xff]
    %v1116 = vld [vmem:[#allocation3 + $0x70] sm:$0xff]
    %v1117 = vld [vmem:[#allocation3 + $0x78] sm:$0xff]
    %v1118 = vld [vmem:[#allocation3 + $0x80] sm:$0xff]
    %v1119 = vld [vmem:[#allocation3 + $0x88] sm:$0xff]
    %v1120 = vld [vmem:[#allocation3 + $0x90] sm:$0xff]
    %v1121 = vld [vmem:[#allocation3 + $0x98] sm:$0xff]
    %v1122 = vld [vmem:[#allocation3 + $0xa0] sm:$0xff]
    %v1123 = vld [vmem:[#allocation3 + $0xa8] sm:$0xff]
    %v1124 = vld [vmem:[#allocation3 + $0xb0] sm:$0xff]
    %v1125 = vld [vmem:[#allocation3 + $0xb8] sm:$0xff]
    %v1126 = vld [vmem:[#allocation3 + $0xc0] sm:$0xff]
    %v1127 = vld [vmem:[#allocation3 + $0xc8] sm:$0xff]
    %v1128 = vld [vmem:[#allocation3 + $0xd0] sm:$0xff]
    %v1129 = vld [vmem:[#allocation3 + $0xd8] sm:$0xff]
    %v1130 = vld [vmem:[#allocation3 + $0xe0] sm:$0xff]
    %v1131 = vld [vmem:[#allocation3 + $0xe8] sm:$0xff]
    %v1132 = vld [vmem:[#allocation3 + $0xf0] sm:$0xff]
    %v1133 = vld [vmem:[#allocation3 + $0xf8] sm:$0xff]
    %v1134 = vld [vmem:[#allocation3 + $0x100] sm:$0xff]
    %v1135 = vld [vmem:[#allocation3 + $0x108] sm:$0xff]
    %v1136 = vld [vmem:[#allocation3 + $0x110] sm:$0xff]
    %v1137 = vld [vmem:[#allocation3 + $0x118] sm:$0xff]
    %v1138 = vld [vmem:[#allocation3 + $0x120] sm:$0xff]
    %v1139 = vld [vmem:[#allocation3 + $0x128] sm:$0xff]
    %v1140 = vld [vmem:[#allocation3 + $0x130] sm:$0xff]
    %v1141 = vld [vmem:[#allocation3 + $0x138] sm:$0xff]
    %v1142 = vld [vmem:[#allocation3 + $0x140] sm:$0xff]
    %v1143 = vld [vmem:[#allocation3 + $0x148] sm:$0xff]
    %v1144 = vld [vmem:[#allocation3 + $0x150] sm:$0xff]
    %v1145 = vld [vmem:[#allocation3 + $0x158] sm:$0xff]
    %v1146 = vld [vmem:[#allocation3 + $0x160] sm:$0xff]
    %v1147 = vld [vmem:[#allocation3 + $0x168] sm:$0xff]
    %v1148 = vld [vmem:[#allocation3 + $0x170] sm:$0xff]
    %v1149 = vld [vmem:[#allocation3 + $0x178] sm:$0xff]
    %v1150 = vld [vmem:[#allocation3 + $0x180] sm:$0xff]
    %v1151 = vld [vmem:[#allocation3 + $0x188] sm:$0xff]
    %v1152 = vld [vmem:[#allocation3 + $0x190] sm:$0xff]
    %v1153 = vld [vmem:[#allocation3 + $0x198] sm:$0xff]
    %v1154 = vld [vmem:[#allocation3 + $0x1a0] sm:$0xff]
    %v1155 = vld [vmem:[#allocation3 + $0x1a8] sm:$0xff]
    %v1156 = vld [vmem:[#allocation3 + $0x1b0] sm:$0xff]
    %v1157 = vld [vmem:[#allocation3 + $0x1b8] sm:$0xff]
    %v1158 = vld [vmem:[#allocation3 + $0x1c0] sm:$0xff]
    %v1159 = vld [vmem:[#allocation3 + $0x1c8] sm:$0xff]
    %v1160 = vld [vmem:[#allocation3 + $0x1d0] sm:$0xff]
    %v1161 = vld [vmem:[#allocation3 + $0x1d8] sm:$0xff]
    %v1162 = vld [vmem:[#allocation3 + $0x1e0] sm:$0xff]
    %v1163 = vld [vmem:[#allocation3 + $0x1e8] sm:$0xff]
    %v1164 = vld [vmem:[#allocation3 + $0x1f0] sm:$0xff]
    %v1165 = vld [vmem:[#allocation3 + $0x1f8] sm:$0xff]
    %v1166 = vld [vmem:[#allocation3 + $0x200] sm:$0xff]
    %v1167 = vld [vmem:[#allocation3 + $0x208] sm:$0xff]
    %v1168 = vld [vmem:[#allocation3 + $0x210] sm:$0xff]
    %v1169 = vld [vmem:[#allocation3 + $0x218] sm:$0xff]
    %v1170 = vld [vmem:[#allocation3 + $0x220] sm:$0xff]
    %v1171 = vld [vmem:[#allocation3 + $0x228] sm:$0xff]
    %v1172 = vld [vmem:[#allocation3 + $0x230] sm:$0xff]
    %v1173 = vld [vmem:[#allocation3 + $0x238] sm:$0xff]
    %v1174 = vld [vmem:[#allocation3 + $0x240] sm:$0xff]
    %v1175 = vld [vmem:[#allocation3 + $0x248] sm:$0xff]
    %v1176 = vld [vmem:[#allocation3 + $0x250] sm:$0xff]
    %v1177 = vld [vmem:[#allocation3 + $0x258] sm:$0xff]
    %v1178 = vld [vmem:[#allocation3 + $0x260] sm:$0xff]
    %v1179 = vld [vmem:[#allocation3 + $0x268] sm:$0xff]
    %v1180 = vld [vmem:[#allocation3 + $0x270] sm:$0xff]
    %v1181 = vld [vmem:[#allocation3 + $0x278] sm:$0xff]
    %v1182 = vld [vmem:[#allocation3 + $0x280] sm:$0xff]
    %v1183 = vld [vmem:[#allocation3 + $0x288] sm:$0xff]
    %v1184 = vld [vmem:[#allocation3 + $0x290] sm:$0xff]
    %v1185 = vld [vmem:[#allocation3 + $0x298] sm:$0xff]
    %v1186 = vld [vmem:[#allocation3 + $0x2a0] sm:$0xff]
    %v1187 = vld [vmem:[#allocation3 + $0x2a8] sm:$0xff]
    %v1188 = vld [vmem:[#allocation3 + $0x2b0] sm:$0xff]
    %v1189 = vld [vmem:[#allocation3 + $0x2b8] sm:$0xff]
    %v1190 = vld [vmem:[#allocation3 + $0x2c0] sm:$0xff]
    %v1191 = vld [vmem:[#allocation3 + $0x2c8] sm:$0xff]
    %v1192 = vld [vmem:[#allocation3 + $0x2d0] sm:$0xff]
    %v1193 = vld [vmem:[#allocation3 + $0x2d8] sm:$0xff]
    %v1194 = vld [vmem:[#allocation3 + $0x2e0] sm:$0xff]
    %v1195 = vld [vmem:[#allocation3 + $0x2e8] sm:$0xff]
    %v1196 = vld [vmem:[#allocation3 + $0x2f0] sm:$0xff]
    %v1197 = vld [vmem:[#allocation3 + $0x2f8] sm:$0xff]
    %v1198 = vld [vmem:[#allocation3 + $0x300] sm:$0xff]
    %v1199 = vld [vmem:[#allocation3 + $0x308] sm:$0xff]
    %v1200 = vld [vmem:[#allocation3 + $0x310] sm:$0xff]
    %v1201 = vld [vmem:[#allocation3 + $0x318] sm:$0xff]
    %v1202 = vld [vmem:[#allocation3 + $0x320] sm:$0xff]
    %v1203 = vld [vmem:[#allocation3 + $0x328] sm:$0xff]
    %v1204 = vld [vmem:[#allocation3 + $0x330] sm:$0xff]
    %v1205 = vld [vmem:[#allocation3 + $0x338] sm:$0xff]
    %v1206 = vld [vmem:[#allocation3 + $0x340] sm:$0xff]
    %v1207 = vld [vmem:[#allocation3 + $0x348] sm:$0xff]
    %v1208 = vld [vmem:[#allocation3 + $0x350] sm:$0xff]
    %v1209 = vld [vmem:[#allocation3 + $0x358] sm:$0xff]
    %v1210 = vld [vmem:[#allocation3 + $0x360] sm:$0xff]
    %v1211 = vld [vmem:[#allocation3 + $0x368] sm:$0xff]
    %v1212 = vld [vmem:[#allocation3 + $0x370] sm:$0xff]
    %v1213 = vld [vmem:[#allocation3 + $0x378] sm:$0xff]
    %v1214 = vld [vmem:[#allocation3 + $0x380] sm:$0xff]
    %v1215 = vld [vmem:[#allocation3 + $0x388] sm:$0xff]
    %v1216 = vld [vmem:[#allocation3 + $0x390] sm:$0xff]
    %v1217 = vld [vmem:[#allocation3 + $0x398] sm:$0xff]
    %v1218 = vld [vmem:[#allocation3 + $0x3a0] sm:$0xff]
    %v1219 = vld [vmem:[#allocation3 + $0x3a8] sm:$0xff]
    %v1220 = vld [vmem:[#allocation3 + $0x3b0] sm:$0xff]
    %v1221 = vld [vmem:[#allocation3 + $0x3b8] sm:$0xff]
    %v1222 = vld [vmem:[#allocation3 + $0x3c0] sm:$0xff]
    %v1223 = vld [vmem:[#allocation3 + $0x3c8] sm:$0xff]
    %v1224 = vld [vmem:[#allocation3 + $0x3d0] sm:$0xff]
    %v1225 = vld [vmem:[#allocation3 + $0x3d8] sm:$0xff]
    %v1226 = vld [vmem:[#allocation3 + $0x3e0] sm:$0xff]
    %v1227 = vld [vmem:[#allocation3 + $0x3e8] sm:$0xff]
    %v1228 = vld [vmem:[#allocation3 + $0x3f0] sm:$0xff]
    %v1229 = vld [vmem:[#allocation3 + $0x3f8] sm:$0xff]
    %v1230 = vld [vmem:[#allocation6] sm:$0xff]
    %v1231 = vld [vmem:[#allocation6 + $0x8] sm:$0xff]
    %v1232 = vld [vmem:[#allocation6 + $0x10] sm:$0xff]
    %v1233 = vld [vmem:[#allocation6 + $0x18] sm:$0xff]
    %v1234 = vld [vmem:[#allocation6 + $0x20] sm:$0xff]
    %v1235 = vld [vmem:[#allocation6 + $0x28] sm:$0xff]
    %v1236 = vld [vmem:[#allocation6 + $0x30] sm:$0xff]
    %v1237 = vld [vmem:[#allocation6 + $0x38] sm:$0xff]
    %v1238 = vld [vmem:[#allocation6 + $0x40] sm:$0xff]
    %v1239 = vld [vmem:[#allocation6 + $0x48] sm:$0xff]
    %v1240 = vld [vmem:[#allocation6 + $0x50] sm:$0xff]
    %v1241 = vld [vmem:[#allocation6 + $0x58] sm:$0xff]
    %v1242 = vld [vmem:[#allocation6 + $0x60] sm:$0xff]
    %v1243 = vld [vmem:[#allocation6 + $0x68] sm:$0xff]
    %v1244 = vld [vmem:[#allocation6 + $0x70] sm:$0xff]
    %v1245 = vld [vmem:[#allocation6 + $0x78] sm:$0xff]
    %v1246 = vld [vmem:[#allocation6 + $0x80] sm:$0xff]
    %v1247 = vld [vmem:[#allocation6 + $0x88] sm:$0xff]
    %v1248 = vld [vmem:[#allocation6 + $0x90] sm:$0xff]
    %v1249 = vld [vmem:[#allocation6 + $0x98] sm:$0xff]
    %v1250 = vld [vmem:[#allocation6 + $0xa0] sm:$0xff]
    %v1251 = vld [vmem:[#allocation6 + $0xa8] sm:$0xff]
    %v1252 = vld [vmem:[#allocation6 + $0xb0] sm:$0xff]
    %v1253 = vld [vmem:[#allocation6 + $0xb8] sm:$0xff]
    %v1254 = vld [vmem:[#allocation6 + $0xc0] sm:$0xff]
    %v1255 = vld [vmem:[#allocation6 + $0xc8] sm:$0xff]
    %v1256 = vld [vmem:[#allocation6 + $0xd0] sm:$0xff]
    %v1257 = vld [vmem:[#allocation6 + $0xd8] sm:$0xff]
    %v1258 = vld [vmem:[#allocation6 + $0xe0] sm:$0xff]
    %v1259 = vld [vmem:[#allocation6 + $0xe8] sm:$0xff]
    %v1260 = vld [vmem:[#allocation6 + $0xf0] sm:$0xff]
    %v1261 = vld [vmem:[#allocation6 + $0xf8] sm:$0xff]
    %v1262 = vld [vmem:[#allocation6 + $0x100] sm:$0xff]
    %v1263 = vld [vmem:[#allocation6 + $0x108] sm:$0xff]
    %v1264 = vld [vmem:[#allocation6 + $0x110] sm:$0xff]
    %v1265 = vld [vmem:[#allocation6 + $0x118] sm:$0xff]
    %v1266 = vld [vmem:[#allocation6 + $0x120] sm:$0xff]
    %v1267 = vld [vmem:[#allocation6 + $0x128] sm:$0xff]
    %v1268 = vld [vmem:[#allocation6 + $0x130] sm:$0xff]
    %v1269 = vld [vmem:[#allocation6 + $0x138] sm:$0xff]
    %v1270 = vld [vmem:[#allocation6 + $0x140] sm:$0xff]
    %v1271 = vld [vmem:[#allocation6 + $0x148] sm:$0xff]
    %v1272 = vld [vmem:[#allocation6 + $0x150] sm:$0xff]
    %v1273 = vld [vmem:[#allocation6 + $0x158] sm:$0xff]
    %v1274 = vld [vmem:[#allocation6 + $0x160] sm:$0xff]
    %v1275 = vld [vmem:[#allocation6 + $0x168] sm:$0xff]
    %v1276 = vld [vmem:[#allocation6 + $0x170] sm:$0xff]
    %v1277 = vld [vmem:[#allocation6 + $0x178] sm:$0xff]
    %v1278 = vld [vmem:[#allocation6 + $0x180] sm:$0xff]
    %v1279 = vld [vmem:[#allocation6 + $0x188] sm:$0xff]
    %v1280 = vld [vmem:[#allocation6 + $0x190] sm:$0xff]
    %v1281 = vld [vmem:[#allocation6 + $0x198] sm:$0xff]
    %v1282 = vld [vmem:[#allocation6 + $0x1a0] sm:$0xff]
    %v1283 = vld [vmem:[#allocation6 + $0x1a8] sm:$0xff]
    %v1284 = vld [vmem:[#allocation6 + $0x1b0] sm:$0xff]
    %v1285 = vld [vmem:[#allocation6 + $0x1b8] sm:$0xff]
    %v1286 = vld [vmem:[#allocation6 + $0x1c0] sm:$0xff]
    %v1287 = vld [vmem:[#allocation6 + $0x1c8] sm:$0xff]
    %v1288 = vld [vmem:[#allocation6 + $0x1d0] sm:$0xff]
    %v1289 = vld [vmem:[#allocation6 + $0x1d8] sm:$0xff]
    %v1290 = vld [vmem:[#allocation6 + $0x1e0] sm:$0xff]
    %v1291 = vld [vmem:[#allocation6 + $0x1e8] sm:$0xff]
    %v1292 = vld [vmem:[#allocation6 + $0x1f0] sm:$0xff]
    %v1293 = vld [vmem:[#allocation6 + $0x1f8] sm:$0xff]
    %v1294 = vld [vmem:[#allocation6 + $0x200] sm:$0xff]
    %v1295 = vld [vmem:[#allocation6 + $0x208] sm:$0xff]
    %v1296 = vld [vmem:[#allocation6 + $0x210] sm:$0xff]
    %v1297 = vld [vmem:[#allocation6 + $0x218] sm:$0xff]
    %v1298 = vld [vmem:[#allocation6 + $0x220] sm:$0xff]
    %v1299 = vld [vmem:[#allocation6 + $0x228] sm:$0xff]
    %v1300 = vld [vmem:[#allocation6 + $0x230] sm:$0xff]
    %v1301 = vld [vmem:[#allocation6 + $0x238] sm:$0xff]
    %v1302 = vld [vmem:[#allocation6 + $0x240] sm:$0xff]
    %v1303 = vld [vmem:[#allocation6 + $0x248] sm:$0xff]
    %v1304 = vld [vmem:[#allocation6 + $0x250] sm:$0xff]
    %v1305 = vld [vmem:[#allocation6 + $0x258] sm:$0xff]
    %v1306 = vld [vmem:[#allocation6 + $0x260] sm:$0xff]
    %v1307 = vld [vmem:[#allocation6 + $0x268] sm:$0xff]
    %v1308 = vld [vmem:[#allocation6 + $0x270] sm:$0xff]
    %v1309 = vld [vmem:[#allocation6 + $0x278] sm:$0xff]
    %v1310 = vld [vmem:[#allocation6 + $0x280] sm:$0xff]
    %v1311 = vld [vmem:[#allocation6 + $0x288] sm:$0xff]
    %v1312 = vld [vmem:[#allocation6 + $0x290] sm:$0xff]
    %v1313 = vld [vmem:[#allocation6 + $0x298] sm:$0xff]
    %v1314 = vld [vmem:[#allocation6 + $0x2a0] sm:$0xff]
    %v1315 = vld [vmem:[#allocation6 + $0x2a8] sm:$0xff]
    %v1316 = vld [vmem:[#allocation6 + $0x2b0] sm:$0xff]
    %v1317 = vld [vmem:[#allocation6 + $0x2b8] sm:$0xff]
    %v1318 = vld [vmem:[#allocation6 + $0x2c0] sm:$0xff]
    %v1319 = vld [vmem:[#allocation6 + $0x2c8] sm:$0xff]
    %v1320 = vld [vmem:[#allocation6 + $0x2d0] sm:$0xff]
    %v1321 = vld [vmem:[#allocation6 + $0x2d8] sm:$0xff]
    %v1322 = vld [vmem:[#allocation6 + $0x2e0] sm:$0xff]
    %v1323 = vld [vmem:[#allocation6 + $0x2e8] sm:$0xff]
    %v1324 = vld [vmem:[#allocation6 + $0x2f0] sm:$0xff]
    %v1325 = vld [vmem:[#allocation6 + $0x2f8] sm:$0xff]
    %v1326 = vld [vmem:[#allocation6 + $0x300] sm:$0xff]
    %v1327 = vld [vmem:[#allocation6 + $0x308] sm:$0xff]
    %v1328 = vld [vmem:[#allocation6 + $0x310] sm:$0xff]
    %v1329 = vld [vmem:[#allocation6 + $0x318] sm:$0xff]
    %v1330 = vld [vmem:[#allocation6 + $0x320] sm:$0xff]
    %v1331 = vld [vmem:[#allocation6 + $0x328] sm:$0xff]
    %v1332 = vld [vmem:[#allocation6 + $0x330] sm:$0xff]
    %v1333 = vld [vmem:[#allocation6 + $0x338] sm:$0xff]
    %v1334 = vld [vmem:[#allocation6 + $0x340] sm:$0xff]
    %v1335 = vld [vmem:[#allocation6 + $0x348] sm:$0xff]
    %v1336 = vld [vmem:[#allocation6 + $0x350] sm:$0xff]
    %v1337 = vld [vmem:[#allocation6 + $0x358] sm:$0xff]
    %v1338 = vld [vmem:[#allocation6 + $0x360] sm:$0xff]
    %v1339 = vld [vmem:[#allocation6 + $0x368] sm:$0xff]
    %v1340 = vld [vmem:[#allocation6 + $0x370] sm:$0xff]
    %v1341 = vld [vmem:[#allocation6 + $0x378] sm:$0xff]
    %v1342 = vld [vmem:[#allocation6 + $0x380] sm:$0xff]
    %v1343 = vld [vmem:[#allocation6 + $0x388] sm:$0xff]
    %v1344 = vld [vmem:[#allocation6 + $0x390] sm:$0xff]
    %v1345 = vld [vmem:[#allocation6 + $0x398] sm:$0xff]
    %v1346 = vld [vmem:[#allocation6 + $0x3a0] sm:$0xff]
    %v1347 = vld [vmem:[#allocation6 + $0x3a8] sm:$0xff]
    %v1348 = vld [vmem:[#allocation6 + $0x3b0] sm:$0xff]
    %v1349 = vld [vmem:[#allocation6 + $0x3b8] sm:$0xff]
    %v1350 = vld [vmem:[#allocation6 + $0x3c0] sm:$0xff]
    %v1351 = vld [vmem:[#allocation6 + $0x3c8] sm:$0xff]
    %v1352 = vld [vmem:[#allocation6 + $0x3d0] sm:$0xff]
    %v1353 = vld [vmem:[#allocation6 + $0x3d8] sm:$0xff]
    %v1354 = vld [vmem:[#allocation6 + $0x3e0] sm:$0xff]
    %v1355 = vld [vmem:[#allocation6 + $0x3e8] sm:$0xff]
    %v1356 = vld [vmem:[#allocation6 + $0x3f0] sm:$0xff]
    %v1357 = vld [vmem:[#allocation6 + $0x3f8] sm:$0xff]
    %v1486 = vunpack.c.l.b16 %v1230
    %v1487 = vunpack.c.h.b16 %v1230
    %v1488 = vunpack.c.l.b16 %v1231
    %v1489 = vunpack.c.h.b16 %v1231
    %v1490 = vunpack.c.l.b16 %v1232
    %v1491 = vunpack.c.h.b16 %v1232
    %v1492 = vunpack.c.l.b16 %v1233
    %v1493 = vunpack.c.h.b16 %v1233
    %v1494 = vunpack.c.l.b16 %v1234
    %v1495 = vunpack.c.h.b16 %v1234
    %v1496 = vunpack.c.l.b16 %v1235
    %v1497 = vunpack.c.h.b16 %v1235
    %v1498 = vunpack.c.l.b16 %v1236
    %v1499 = vunpack.c.h.b16 %v1236
    %v1500 = vunpack.c.l.b16 %v1237
    %v1501 = vunpack.c.h.b16 %v1237
    %v1502 = vunpack.c.l.b16 %v1238
    %v1503 = vunpack.c.h.b16 %v1238
    %v1504 = vunpack.c.l.b16 %v1239
    %v1505 = vunpack.c.h.b16 %v1239
    %v1506 = vunpack.c.l.b16 %v1240
    %v1507 = vunpack.c.h.b16 %v1240
    %v1508 = vunpack.c.l.b16 %v1241
    %v1509 = vunpack.c.h.b16 %v1241
    %v1510 = vunpack.c.l.b16 %v1242
    %v1511 = vunpack.c.h.b16 %v1242
    %v1512 = vunpack.c.l.b16 %v1243
    %v1513 = vunpack.c.h.b16 %v1243
    %v1514 = vunpack.c.l.b16 %v1244
    %v1515 = vunpack.c.h.b16 %v1244
    %v1516 = vunpack.c.l.b16 %v1245
    %v1517 = vunpack.c.h.b16 %v1245
    %v1518 = vunpack.c.l.b16 %v1246
    %v1519 = vunpack.c.h.b16 %v1246
    %v1520 = vunpack.c.l.b16 %v1247
    %v1521 = vunpack.c.h.b16 %v1247
    %v1522 = vunpack.c.l.b16 %v1248
    %v1523 = vunpack.c.h.b16 %v1248
    %v1524 = vunpack.c.l.b16 %v1249
    %v1525 = vunpack.c.h.b16 %v1249
    %v1526 = vunpack.c.l.b16 %v1250
    %v1527 = vunpack.c.h.b16 %v1250
    %v1528 = vunpack.c.l.b16 %v1251
    %v1529 = vunpack.c.h.b16 %v1251
    %v1530 = vunpack.c.l.b16 %v1252
    %v1531 = vunpack.c.h.b16 %v1252
    %v1532 = vunpack.c.l.b16 %v1253
    %v1533 = vunpack.c.h.b16 %v1253
    %v1534 = vunpack.c.l.b16 %v1254
    %v1535 = vunpack.c.h.b16 %v1254
    %v1536 = vunpack.c.l.b16 %v1255
    %v1537 = vunpack.c.h.b16 %v1255
    %v1538 = vunpack.c.l.b16 %v1256
    %v1539 = vunpack.c.h.b16 %v1256
    %v1540 = vunpack.c.l.b16 %v1257
    %v1541 = vunpack.c.h.b16 %v1257
    %v1542 = vunpack.c.l.b16 %v1258
    %v1543 = vunpack.c.h.b16 %v1258
    %v1544 = vunpack.c.l.b16 %v1259
    %v1545 = vunpack.c.h.b16 %v1259
    %v1546 = vunpack.c.l.b16 %v1260
    %v1547 = vunpack.c.h.b16 %v1260
    %v1548 = vunpack.c.l.b16 %v1261
    %v1549 = vunpack.c.h.b16 %v1261
    %v1550 = vunpack.c.l.b16 %v1262
    %v1551 = vunpack.c.h.b16 %v1262
    %v1552 = vunpack.c.l.b16 %v1263
    %v1553 = vunpack.c.h.b16 %v1263
    %v1554 = vunpack.c.l.b16 %v1264
    %v1555 = vunpack.c.h.b16 %v1264
    %v1556 = vunpack.c.l.b16 %v1265
    %v1557 = vunpack.c.h.b16 %v1265
    %v1558 = vunpack.c.l.b16 %v1266
    %v1559 = vunpack.c.h.b16 %v1266
    %v1560 = vunpack.c.l.b16 %v1267
    %v1561 = vunpack.c.h.b16 %v1267
    %v1562 = vunpack.c.l.b16 %v1268
    %v1563 = vunpack.c.h.b16 %v1268
    %v1564 = vunpack.c.l.b16 %v1269
    %v1565 = vunpack.c.h.b16 %v1269
    %v1566 = vunpack.c.l.b16 %v1270
    %v1567 = vunpack.c.h.b16 %v1270
    %v1568 = vunpack.c.l.b16 %v1271
    %v1569 = vunpack.c.h.b16 %v1271
    %v1570 = vunpack.c.l.b16 %v1272
    %v1571 = vunpack.c.h.b16 %v1272
    %v1572 = vunpack.c.l.b16 %v1273
    %v1573 = vunpack.c.h.b16 %v1273
    %v1574 = vunpack.c.l.b16 %v1274
    %v1575 = vunpack.c.h.b16 %v1274
    %v1576 = vunpack.c.l.b16 %v1275
    %v1577 = vunpack.c.h.b16 %v1275
    %v1578 = vunpack.c.l.b16 %v1276
    %v1579 = vunpack.c.h.b16 %v1276
    %v1580 = vunpack.c.l.b16 %v1277
    %v1581 = vunpack.c.h.b16 %v1277
    %v1582 = vunpack.c.l.b16 %v1278
    %v1583 = vunpack.c.h.b16 %v1278
    %v1584 = vunpack.c.l.b16 %v1279
    %v1585 = vunpack.c.h.b16 %v1279
    %v1586 = vunpack.c.l.b16 %v1280
    %v1587 = vunpack.c.h.b16 %v1280
    %v1588 = vunpack.c.l.b16 %v1281
    %v1589 = vunpack.c.h.b16 %v1281
    %v1590 = vunpack.c.l.b16 %v1282
    %v1591 = vunpack.c.h.b16 %v1282
    %v1592 = vunpack.c.l.b16 %v1283
    %v1593 = vunpack.c.h.b16 %v1283
    %v1594 = vunpack.c.l.b16 %v1284
    %v1595 = vunpack.c.h.b16 %v1284
    %v1596 = vunpack.c.l.b16 %v1285
    %v1597 = vunpack.c.h.b16 %v1285
    %v1598 = vunpack.c.l.b16 %v1286
    %v1599 = vunpack.c.h.b16 %v1286
    %v1600 = vunpack.c.l.b16 %v1287
    %v1601 = vunpack.c.h.b16 %v1287
    %v1602 = vunpack.c.l.b16 %v1288
    %v1603 = vunpack.c.h.b16 %v1288
    %v1604 = vunpack.c.l.b16 %v1289
    %v1605 = vunpack.c.h.b16 %v1289
    %v1606 = vunpack.c.l.b16 %v1290
    %v1607 = vunpack.c.h.b16 %v1290
    %v1608 = vunpack.c.l.b16 %v1291
    %v1609 = vunpack.c.h.b16 %v1291
    %v1610 = vunpack.c.l.b16 %v1292
    %v1611 = vunpack.c.h.b16 %v1292
    %v1612 = vunpack.c.l.b16 %v1293
    %v1613 = vunpack.c.h.b16 %v1293
    %v1614 = vunpack.c.l.b16 %v1294
    %v1615 = vunpack.c.h.b16 %v1294
    %v1616 = vunpack.c.l.b16 %v1295
    %v1617 = vunpack.c.h.b16 %v1295
    %v1618 = vunpack.c.l.b16 %v1296
    %v1619 = vunpack.c.h.b16 %v1296
    %v1620 = vunpack.c.l.b16 %v1297
    %v1621 = vunpack.c.h.b16 %v1297
    %v1622 = vunpack.c.l.b16 %v1298
    %v1623 = vunpack.c.h.b16 %v1298
    %v1624 = vunpack.c.l.b16 %v1299
    %v1625 = vunpack.c.h.b16 %v1299
    %v1626 = vunpack.c.l.b16 %v1300
    %v1627 = vunpack.c.h.b16 %v1300
    %v1628 = vunpack.c.l.b16 %v1301
    %v1629 = vunpack.c.h.b16 %v1301
    %v1630 = vunpack.c.l.b16 %v1302
    %v1631 = vunpack.c.h.b16 %v1302
    %v1632 = vunpack.c.l.b16 %v1303
    %v1633 = vunpack.c.h.b16 %v1303
    %v1634 = vunpack.c.l.b16 %v1304
    %v1635 = vunpack.c.h.b16 %v1304
    %v1636 = vunpack.c.l.b16 %v1305
    %v1637 = vunpack.c.h.b16 %v1305
    %v1638 = vunpack.c.l.b16 %v1306
    %v1639 = vunpack.c.h.b16 %v1306
    %v1640 = vunpack.c.l.b16 %v1307
    %v1641 = vunpack.c.h.b16 %v1307
    %v1642 = vunpack.c.l.b16 %v1308
    %v1643 = vunpack.c.h.b16 %v1308
    %v1644 = vunpack.c.l.b16 %v1309
    %v1645 = vunpack.c.h.b16 %v1309
    %v1646 = vunpack.c.l.b16 %v1310
    %v1647 = vunpack.c.h.b16 %v1310
    %v1648 = vunpack.c.l.b16 %v1311
    %v1649 = vunpack.c.h.b16 %v1311
    %v1650 = vunpack.c.l.b16 %v1312
    %v1651 = vunpack.c.h.b16 %v1312
    %v1652 = vunpack.c.l.b16 %v1313
    %v1653 = vunpack.c.h.b16 %v1313
    %v1654 = vunpack.c.l.b16 %v1314
    %v1655 = vunpack.c.h.b16 %v1314
    %v1656 = vunpack.c.l.b16 %v1315
    %v1657 = vunpack.c.h.b16 %v1315
    %v1658 = vunpack.c.l.b16 %v1316
    %v1659 = vunpack.c.h.b16 %v1316
    %v1660 = vunpack.c.l.b16 %v1317
    %v1661 = vunpack.c.h.b16 %v1317
    %v1662 = vunpack.c.l.b16 %v1318
    %v1663 = vunpack.c.h.b16 %v1318
    %v1664 = vunpack.c.l.b16 %v1319
    %v1665 = vunpack.c.h.b16 %v1319
    %v1666 = vunpack.c.l.b16 %v1320
    %v1667 = vunpack.c.h.b16 %v1320
    %v1668 = vunpack.c.l.b16 %v1321
    %v1669 = vunpack.c.h.b16 %v1321
    %v1670 = vunpack.c.l.b16 %v1322
    %v1671 = vunpack.c.h.b16 %v1322
    %v1672 = vunpack.c.l.b16 %v1323
    %v1673 = vunpack.c.h.b16 %v1323
    %v1674 = vunpack.c.l.b16 %v1324
    %v1675 = vunpack.c.h.b16 %v1324
    %v1676 = vunpack.c.l.b16 %v1325
    %v1677 = vunpack.c.h.b16 %v1325
    %v1678 = vunpack.c.l.b16 %v1326
    %v1679 = vunpack.c.h.b16 %v1326
    %v1680 = vunpack.c.l.b16 %v1327
    %v1681 = vunpack.c.h.b16 %v1327
    %v1682 = vunpack.c.l.b16 %v1328
    %v1683 = vunpack.c.h.b16 %v1328
    %v1684 = vunpack.c.l.b16 %v1329
    %v1685 = vunpack.c.h.b16 %v1329
    %v1686 = vunpack.c.l.b16 %v1330
    %v1687 = vunpack.c.h.b16 %v1330
    %v1688 = vunpack.c.l.b16 %v1331
    %v1689 = vunpack.c.h.b16 %v1331
    %v1690 = vunpack.c.l.b16 %v1332
    %v1691 = vunpack.c.h.b16 %v1332
    %v1692 = vunpack.c.l.b16 %v1333
    %v1693 = vunpack.c.h.b16 %v1333
    %v1694 = vunpack.c.l.b16 %v1334
    %v1695 = vunpack.c.h.b16 %v1334
    %v1696 = vunpack.c.l.b16 %v1335
    %v1697 = vunpack.c.h.b16 %v1335
    %v1698 = vunpack.c.l.b16 %v1336
    %v1699 = vunpack.c.h.b16 %v1336
    %v1700 = vunpack.c.l.b16 %v1337
    %v1701 = vunpack.c.h.b16 %v1337
    %v1702 = vunpack.c.l.b16 %v1338
    %v1703 = vunpack.c.h.b16 %v1338
    %v1704 = vunpack.c.l.b16 %v1339
    %v1705 = vunpack.c.h.b16 %v1339
    %v1706 = vunpack.c.l.b16 %v1340
    %v1707 = vunpack.c.h.b16 %v1340
    %v1708 = vunpack.c.l.b16 %v1341
    %v1709 = vunpack.c.h.b16 %v1341
    %v1710 = vunpack.c.l.b16 %v1342
    %v1711 = vunpack.c.h.b16 %v1342
    %v1712 = vunpack.c.l.b16 %v1343
    %v1713 = vunpack.c.h.b16 %v1343
    %v1714 = vunpack.c.l.b16 %v1344
    %v1715 = vunpack.c.h.b16 %v1344
    %v1716 = vunpack.c.l.b16 %v1345
    %v1717 = vunpack.c.h.b16 %v1345
    %v1718 = vunpack.c.l.b16 %v1346
    %v1719 = vunpack.c.h.b16 %v1346
    %v1720 = vunpack.c.l.b16 %v1347
    %v1721 = vunpack.c.h.b16 %v1347
    %v1722 = vunpack.c.l.b16 %v1348
    %v1723 = vunpack.c.h.b16 %v1348
    %v1724 = vunpack.c.l.b16 %v1349
    %v1725 = vunpack.c.h.b16 %v1349
    %v1726 = vunpack.c.l.b16 %v1350
    %v1727 = vunpack.c.h.b16 %v1350
    %v1728 = vunpack.c.l.b16 %v1351
    %v1729 = vunpack.c.h.b16 %v1351
    %v1730 = vunpack.c.l.b16 %v1352
    %v1731 = vunpack.c.h.b16 %v1352
    %v1732 = vunpack.c.l.b16 %v1353
    %v1733 = vunpack.c.h.b16 %v1353
    %v1734 = vunpack.c.l.b16 %v1354
    %v1735 = vunpack.c.h.b16 %v1354
    %v1736 = vunpack.c.l.b16 %v1355
    %v1737 = vunpack.c.h.b16 %v1355
    %v1738 = vunpack.c.l.b16 %v1356
    %v1739 = vunpack.c.h.b16 %v1356
    %v1740 = vunpack.c.l.b16 %v1357
    %v1741 = vunpack.c.h.b16 %v1357
    %v1742 = vpack.c.b16 %v1490, %v1486
    %v1743 = vpack.c.b16 %v1491, %v1487
    %v1744 = vpack.c.b16 %v1492, %v1488
    %v1745 = vpack.c.b16 %v1493, %v1489
    %v1746 = vpack.c.b16 %v1498, %v1494
    %v1747 = vpack.c.b16 %v1499, %v1495
    %v1748 = vpack.c.b16 %v1500, %v1496
    %v1749 = vpack.c.b16 %v1501, %v1497
    %v1750 = vpack.c.b16 %v1506, %v1502
    %v1751 = vpack.c.b16 %v1507, %v1503
    %v1752 = vpack.c.b16 %v1508, %v1504
    %v1753 = vpack.c.b16 %v1509, %v1505
    %v1754 = vpack.c.b16 %v1514, %v1510
    %v1755 = vpack.c.b16 %v1515, %v1511
    %v1756 = vpack.c.b16 %v1516, %v1512
    %v1757 = vpack.c.b16 %v1517, %v1513
    %v1758 = vpack.c.b16 %v1522, %v1518
    %v1759 = vpack.c.b16 %v1523, %v1519
    %v1760 = vpack.c.b16 %v1524, %v1520
    %v1761 = vpack.c.b16 %v1525, %v1521
    %v1762 = vpack.c.b16 %v1530, %v1526
    %v1763 = vpack.c.b16 %v1531, %v1527
    %v1764 = vpack.c.b16 %v1532, %v1528
    %v1765 = vpack.c.b16 %v1533, %v1529
    %v1766 = vpack.c.b16 %v1538, %v1534
    %v1767 = vpack.c.b16 %v1539, %v1535
    %v1768 = vpack.c.b16 %v1540, %v1536
    %v1769 = vpack.c.b16 %v1541, %v1537
    %v1770 = vpack.c.b16 %v1546, %v1542
    %v1771 = vpack.c.b16 %v1547, %v1543
    %v1772 = vpack.c.b16 %v1548, %v1544
    %v1773 = vpack.c.b16 %v1549, %v1545
    %v1774 = vpack.c.b16 %v1554, %v1550
    %v1775 = vpack.c.b16 %v1555, %v1551
    %v1776 = vpack.c.b16 %v1556, %v1552
    %v1777 = vpack.c.b16 %v1557, %v1553
    %v1778 = vpack.c.b16 %v1562, %v1558
    %v1779 = vpack.c.b16 %v1563, %v1559
    %v1780 = vpack.c.b16 %v1564, %v1560
    %v1781 = vpack.c.b16 %v1565, %v1561
    %v1782 = vpack.c.b16 %v1570, %v1566
    %v1783 = vpack.c.b16 %v1571, %v1567
    %v1784 = vpack.c.b16 %v1572, %v1568
    %v1785 = vpack.c.b16 %v1573, %v1569
    %v1786 = vpack.c.b16 %v1578, %v1574
    %v1787 = vpack.c.b16 %v1579, %v1575
    %v1788 = vpack.c.b16 %v1580, %v1576
    %v1789 = vpack.c.b16 %v1581, %v1577
    %v1790 = vpack.c.b16 %v1586, %v1582
    %v1791 = vpack.c.b16 %v1587, %v1583
    %v1792 = vpack.c.b16 %v1588, %v1584
    %v1793 = vpack.c.b16 %v1589, %v1585
    %v1794 = vpack.c.b16 %v1594, %v1590
    %v1795 = vpack.c.b16 %v1595, %v1591
    %v1796 = vpack.c.b16 %v1596, %v1592
    %v1797 = vpack.c.b16 %v1597, %v1593
    %v1798 = vpack.c.b16 %v1602, %v1598
    %v1799 = vpack.c.b16 %v1603, %v1599
    %v1800 = vpack.c.b16 %v1604, %v1600
    %v1801 = vpack.c.b16 %v1605, %v1601
    %v1802 = vpack.c.b16 %v1610, %v1606
    %v1803 = vpack.c.b16 %v1611, %v1607
    %v1804 = vpack.c.b16 %v1612, %v1608
    %v1805 = vpack.c.b16 %v1613, %v1609
    %v1806 = vpack.c.b16 %v1618, %v1614
    %v1807 = vpack.c.b16 %v1619, %v1615
    %v1808 = vpack.c.b16 %v1620, %v1616
    %v1809 = vpack.c.b16 %v1621, %v1617
    %v1810 = vpack.c.b16 %v1626, %v1622
    %v1811 = vpack.c.b16 %v1627, %v1623
    %v1812 = vpack.c.b16 %v1628, %v1624
    %v1813 = vpack.c.b16 %v1629, %v1625
    %v1814 = vpack.c.b16 %v1634, %v1630
    %v1815 = vpack.c.b16 %v1635, %v1631
    %v1816 = vpack.c.b16 %v1636, %v1632
    %v1817 = vpack.c.b16 %v1637, %v1633
    %v1818 = vpack.c.b16 %v1642, %v1638
    %v1819 = vpack.c.b16 %v1643, %v1639
    %v1820 = vpack.c.b16 %v1644, %v1640
    %v1821 = vpack.c.b16 %v1645, %v1641
    %v1822 = vpack.c.b16 %v1650, %v1646
    %v1823 = vpack.c.b16 %v1651, %v1647
    %v1824 = vpack.c.b16 %v1652, %v1648
    %v1825 = vpack.c.b16 %v1653, %v1649
    %v1826 = vpack.c.b16 %v1658, %v1654
    %v1827 = vpack.c.b16 %v1659, %v1655
    %v1828 = vpack.c.b16 %v1660, %v1656
    %v1829 = vpack.c.b16 %v1661, %v1657
    %v1830 = vpack.c.b16 %v1666, %v1662
    %v1831 = vpack.c.b16 %v1667, %v1663
    %v1832 = vpack.c.b16 %v1668, %v1664
    %v1833 = vpack.c.b16 %v1669, %v1665
    %v1834 = vpack.c.b16 %v1674, %v1670
    %v1835 = vpack.c.b16 %v1675, %v1671
    %v1836 = vpack.c.b16 %v1676, %v1672
    %v1837 = vpack.c.b16 %v1677, %v1673
    %v1838 = vpack.c.b16 %v1682, %v1678
    %v1839 = vpack.c.b16 %v1683, %v1679
    %v1840 = vpack.c.b16 %v1684, %v1680
    %v1841 = vpack.c.b16 %v1685, %v1681
    %v1842 = vpack.c.b16 %v1690, %v1686
    %v1843 = vpack.c.b16 %v1691, %v1687
    %v1844 = vpack.c.b16 %v1692, %v1688
    %v1845 = vpack.c.b16 %v1693, %v1689
    %v1846 = vpack.c.b16 %v1698, %v1694
    %v1847 = vpack.c.b16 %v1699, %v1695
    %v1848 = vpack.c.b16 %v1700, %v1696
    %v1849 = vpack.c.b16 %v1701, %v1697
    %v1850 = vpack.c.b16 %v1706, %v1702
    %v1851 = vpack.c.b16 %v1707, %v1703
    %v1852 = vpack.c.b16 %v1708, %v1704
    %v1853 = vpack.c.b16 %v1709, %v1705
    %v1854 = vpack.c.b16 %v1714, %v1710
    %v1855 = vpack.c.b16 %v1715, %v1711
    %v1856 = vpack.c.b16 %v1716, %v1712
    %v1857 = vpack.c.b16 %v1717, %v1713
    %v1858 = vpack.c.b16 %v1722, %v1718
    %v1859 = vpack.c.b16 %v1723, %v1719
    %v1860 = vpack.c.b16 %v1724, %v1720
    %v1861 = vpack.c.b16 %v1725, %v1721
    %v1862 = vpack.c.b16 %v1730, %v1726
    %v1863 = vpack.c.b16 %v1731, %v1727
    %v1864 = vpack.c.b16 %v1732, %v1728
    %v1865 = vpack.c.b16 %v1733, %v1729
    %v1866 = vpack.c.b16 %v1738, %v1734
    %v1867 = vpack.c.b16 %v1739, %v1735
    %v1868 = vpack.c.b16 %v1740, %v1736
    %v1869 = vpack.c.b16 %v1741, %v1737
    %1998 = vmatprep.subr.bf16.mxu0 %v1771
    %1999 = vmatpush1.bf16.msra.mxu0 %v1770
    %2000 = vmatprep.subr.bf16.mxu0 %v1767
    %2001 = vmatpush1.bf16.msra.mxu0 %v1766
    %2002 = vmatprep.subr.bf16.mxu0 %v1763
    %2003 = vmatpush1.bf16.msra.mxu0 %v1762
    %2004 = vmatprep.subr.bf16.mxu0 %v1759
    %2005 = vmatpush1.bf16.msra.mxu0 %v1758
    %2006 = vmatprep.subr.bf16.mxu0 %v1755
    %2007 = vmatpush1.bf16.msra.mxu0 %v1754
    %2008 = vmatprep.subr.bf16.mxu0 %v1751
    %2009 = vmatpush1.bf16.msra.mxu0 %v1750
    %2010 = vmatprep.subr.bf16.mxu0 %v1747
    %2011 = vmatpush1.bf16.msra.mxu0 %v1746
    %2012 = vmatprep.subr.bf16.mxu0 %v1743
    %2013 = vmatpush1.bf16.msra.mxu0 %v1742
    %2014 = vmatprep.subr.bf16.mxu0 %v1803
    %2015 = vmatpush2.bf16.msra.mxu0 %v1802
    %2016 = vmatprep.subr.bf16.mxu0 %v1799
    %2017 = vmatpush2.bf16.msra.mxu0 %v1798
    %2018 = vmatprep.subr.bf16.mxu0 %v1795
    %2019 = vmatpush2.bf16.msra.mxu0 %v1794
    %2020 = vmatprep.subr.bf16.mxu0 %v1791
    %2021 = vmatpush2.bf16.msra.mxu0 %v1790
    %2022 = vmatprep.subr.bf16.mxu0 %v1787
    %2023 = vmatpush2.bf16.msra.mxu0 %v1786
    %2024 = vmatprep.subr.bf16.mxu0 %v1783
    %2025 = vmatpush2.bf16.msra.mxu0 %v1782
    %2026 = vmatprep.subr.bf16.mxu0 %v1779
    %2027 = vmatpush2.bf16.msra.mxu0 %v1778
    %2028 = vmatprep.subr.bf16.mxu0 %v1775
    %2029 = vmatpush2.bf16.msra.mxu0 %v1774
    %2030 = vmatprep.mubr.bf16.mxu0 %v1009
    %2031 = vmatmul.mubr.bf16.gmra.mxu0 %v1008
    %v2032 = vpop.f32.mrf.mxu0
    %v2033 = vadd.f32 0.0, %v2032
    %v2034 = vpop.f32.mrf.mxu0
    %v2035 = vadd.f32 0.0, %v2034
    %v2036 = vpop.f32.mrf.mxu0
    %v2037 = vadd.f32 0.0, %v2036
    %v2038 = vpop.f32.mrf.mxu0
    %v2039 = vadd.f32 0.0, %v2038
    %2040 = vdwg.mxu0
    %2041 = vmatprep.subr.bf16.mxu0 %v1835
    %2042 = vmatpush1.bf16.msra.mxu0 %v1834
    %2043 = vmatprep.subr.bf16.mxu0 %v1831
    %2044 = vmatpush1.bf16.msra.mxu0 %v1830
    %2045 = vmatprep.subr.bf16.mxu0 %v1827
    %2046 = vmatpush1.bf16.msra.mxu0 %v1826
    %2047 = vmatprep.subr.bf16.mxu0 %v1823
    %2048 = vmatpush1.bf16.msra.mxu0 %v1822
    %2049 = vmatprep.subr.bf16.mxu0 %v1819
    %2050 = vmatpush1.bf16.msra.mxu0 %v1818
    %2051 = vmatprep.subr.bf16.mxu0 %v1815
    %2052 = vmatpush1.bf16.msra.mxu0 %v1814
    %2053 = vmatprep.subr.bf16.mxu0 %v1811
    %2054 = vmatpush1.bf16.msra.mxu0 %v1810
    %2055 = vmatprep.subr.bf16.mxu0 %v1807
    %2056 = vmatpush1.bf16.msra.mxu0 %v1806
    %2057 = vmatprep.subr.bf16.mxu0 %v1867
    %2058 = vmatpush2.bf16.msra.mxu0 %v1866
    %2059 = vmatprep.subr.bf16.mxu0 %v1863
    %2060 = vmatpush2.bf16.msra.mxu0 %v1862
    %2061 = vmatprep.subr.bf16.mxu0 %v1859
    %2062 = vmatpush2.bf16.msra.mxu0 %v1858
    %2063 = vmatprep.subr.bf16.mxu0 %v1855
    %2064 = vmatpush2.bf16.msra.mxu0 %v1854
    %2065 = vmatprep.subr.bf16.mxu0 %v1851
    %2066 = vmatpush2.bf16.msra.mxu0 %v1850
    %2067 = vmatprep.subr.bf16.mxu0 %v1847
    %2068 = vmatpush2.bf16.msra.mxu0 %v1846
    %2069 = vmatprep.subr.bf16.mxu0 %v1843
    %2070 = vmatpush2.bf16.msra.mxu0 %v1842
    %2071 = vmatprep.subr.bf16.mxu0 %v1839
    %2072 = vmatpush2.bf16.msra.mxu0 %v1838
    %2073 = vmatprep.mubr.bf16.mxu0 %v1011
    %2074 = vmatmul.mubr.bf16.gmra.mxu0 %v1010
    %v2075 = vpop.f32.mrf.mxu0
    %v2076 = vadd.f32 %v2033, %v2075
    %v2077 = vpop.f32.mrf.mxu0
    %v2078 = vadd.f32 %v2035, %v2077
    %v2079 = vpop.f32.mrf.mxu0
    %v2080 = vadd.f32 %v2037, %v2079
    %v2081 = vpop.f32.mrf.mxu0
    %v2082 = vadd.f32 %v2039, %v2081
    %2083 = vdwg.mxu0
    %2084 = vmatprep.subr.bf16.mxu0 %v1773
    %2085 = vmatpush1.bf16.msra.mxu0 %v1772
    %2086 = vmatprep.subr.bf16.mxu0 %v1769
    %2087 = vmatpush1.bf16.msra.mxu0 %v1768
    %2088 = vmatprep.subr.bf16.mxu0 %v1765
    %2089 = vmatpush1.bf16.msra.mxu0 %v1764
    %2090 = vmatprep.subr.bf16.mxu0 %v1761
    %2091 = vmatpush1.bf16.msra.mxu0 %v1760
    %2092 = vmatprep.subr.bf16.mxu0 %v1757
    %2093 = vmatpush1.bf16.msra.mxu0 %v1756
    %2094 = vmatprep.subr.bf16.mxu0 %v1753
    %2095 = vmatpush1.bf16.msra.mxu0 %v1752
    %2096 = vmatprep.subr.bf16.mxu0 %v1749
    %2097 = vmatpush1.bf16.msra.mxu0 %v1748
    %2098 = vmatprep.subr.bf16.mxu0 %v1745
    %2099 = vmatpush1.bf16.msra.mxu0 %v1744
    %2100 = vmatprep.subr.bf16.mxu0 %v1805
    %2101 = vmatpush2.bf16.msra.mxu0 %v1804
    %2102 = vmatprep.subr.bf16.mxu0 %v1801
    %2103 = vmatpush2.bf16.msra.mxu0 %v1800
    %2104 = vmatprep.subr.bf16.mxu0 %v1797
    %2105 = vmatpush2.bf16.msra.mxu0 %v1796
    %2106 = vmatprep.subr.bf16.mxu0 %v1793
    %2107 = vmatpush2.bf16.msra.mxu0 %v1792
    %2108 = vmatprep.subr.bf16.mxu0 %v1789
    %2109 = vmatpush2.bf16.msra.mxu0 %v1788
    %2110 = vmatprep.subr.bf16.mxu0 %v1785
    %2111 = vmatpush2.bf16.msra.mxu0 %v1784
    %2112 = vmatprep.subr.bf16.mxu0 %v1781
    %2113 = vmatpush2.bf16.msra.mxu0 %v1780
    %2114 = vmatprep.subr.bf16.mxu0 %v1777
    %2115 = vmatpush2.bf16.msra.mxu0 %v1776
    %2116 = vmatprep.mubr.bf16.mxu0 %v1009
    %2117 = vmatmul.mubr.bf16.gmra.mxu0 %v1008
    %v2118 = vpop.f32.mrf.mxu0
    %v2119 = vadd.f32 0.0, %v2118
    %v2120 = vpop.f32.mrf.mxu0
    %v2121 = vadd.f32 0.0, %v2120
    %v2122 = vpop.f32.mrf.mxu0
    %v2123 = vadd.f32 0.0, %v2122
    %v2124 = vpop.f32.mrf.mxu0
    %v2125 = vadd.f32 0.0, %v2124
    %2126 = vdwg.mxu0
    %2127 = vmatprep.subr.bf16.mxu0 %v1837
    %2128 = vmatpush1.bf16.msra.mxu0 %v1836
    %2129 = vmatprep.subr.bf16.mxu0 %v1833
    %2130 = vmatpush1.bf16.msra.mxu0 %v1832
    %2131 = vmatprep.subr.bf16.mxu0 %v1829
    %2132 = vmatpush1.bf16.msra.mxu0 %v1828
    %2133 = vmatprep.subr.bf16.mxu0 %v1825
    %2134 = vmatpush1.bf16.msra.mxu0 %v1824
    %2135 = vmatprep.subr.bf16.mxu0 %v1821
    %2136 = vmatpush1.bf16.msra.mxu0 %v1820
    %2137 = vmatprep.subr.bf16.mxu0 %v1817
    %2138 = vmatpush1.bf16.msra.mxu0 %v1816
    %2139 = vmatprep.subr.bf16.mxu0 %v1813
    %2140 = vmatpush1.bf16.msra.mxu0 %v1812
    %2141 = vmatprep.subr.bf16.mxu0 %v1809
    %2142 = vmatpush1.bf16.msra.mxu0 %v1808
    %2143 = vmatprep.subr.bf16.mxu0 %v1869
    %2144 = vmatpush2.bf16.msra.mxu0 %v1868
    %2145 = vmatprep.subr.bf16.mxu0 %v1865
    %2146 = vmatpush2.bf16.msra.mxu0 %v1864
    %2147 = vmatprep.subr.bf16.mxu0 %v1861
    %2148 = vmatpush2.bf16.msra.mxu0 %v1860
    %2149 = vmatprep.subr.bf16.mxu0 %v1857
    %2150 = vmatpush2.bf16.msra.mxu0 %v1856
    %2151 = vmatprep.subr.bf16.mxu0 %v1853
    %2152 = vmatpush2.bf16.msra.mxu0 %v1852
    %2153 = vmatprep.subr.bf16.mxu0 %v1849
    %2154 = vmatpush2.bf16.msra.mxu0 %v1848
    %2155 = vmatprep.subr.bf16.mxu0 %v1845
    %2156 = vmatpush2.bf16.msra.mxu0 %v1844
    %2157 = vmatprep.subr.bf16.mxu0 %v1841
    %2158 = vmatpush2.bf16.msra.mxu0 %v1840
    %2159 = vmatprep.mubr.bf16.mxu0 %v1011
    %2160 = vmatmul.mubr.bf16.gmra.mxu0 %v1010
    %v2161 = vpop.f32.mrf.mxu0
    %v2162 = vadd.f32 %v2119, %v2161
    %v2163 = vpop.f32.mrf.mxu0
    %v2164 = vadd.f32 %v2121, %v2163
    %v2165 = vpop.f32.mrf.mxu0
    %v2166 = vadd.f32 %v2123, %v2165
    %v2167 = vpop.f32.mrf.mxu0
    %v2168 = vadd.f32 %v2125, %v2167
    %2169 = vdwg.mxu0
    %v2298 = vunpack.c.l.b16 %v1102
    %v2299 = vunpack.c.h.b16 %v1102
    %v2300 = vunpack.c.l.b16 %v1103
    %v2301 = vunpack.c.h.b16 %v1103
    %v2302 = vunpack.c.l.b16 %v1104
    %v2303 = vunpack.c.h.b16 %v1104
    %v2304 = vunpack.c.l.b16 %v1105
    %v2305 = vunpack.c.h.b16 %v1105
    %v2306 = vunpack.c.l.b16 %v1106
    %v2307 = vunpack.c.h.b16 %v1106
    %v2308 = vunpack.c.l.b16 %v1107
    %v2309 = vunpack.c.h.b16 %v1107
    %v2310 = vunpack.c.l.b16 %v1108
    %v2311 = vunpack.c.h.b16 %v1108
    %v2312 = vunpack.c.l.b16 %v1109
    %v2313 = vunpack.c.h.b16 %v1109
    %v2314 = vunpack.c.l.b16 %v1110
    %v2315 = vunpack.c.h.b16 %v1110
    %v2316 = vunpack.c.l.b16 %v1111
    %v2317 = vunpack.c.h.b16 %v1111
    %v2318 = vunpack.c.l.b16 %v1112
    %v2319 = vunpack.c.h.b16 %v1112
    %v2320 = vunpack.c.l.b16 %v1113
    %v2321 = vunpack.c.h.b16 %v1113
    %v2322 = vunpack.c.l.b16 %v1114
    %v2323 = vunpack.c.h.b16 %v1114
    %v2324 = vunpack.c.l.b16 %v1115
    %v2325 = vunpack.c.h.b16 %v1115
    %v2326 = vunpack.c.l.b16 %v1116
    %v2327 = vunpack.c.h.b16 %v1116
    %v2328 = vunpack.c.l.b16 %v1117
    %v2329 = vunpack.c.h.b16 %v1117
    %v2330 = vunpack.c.l.b16 %v1118
    %v2331 = vunpack.c.h.b16 %v1118
    %v2332 = vunpack.c.l.b16 %v1119
    %v2333 = vunpack.c.h.b16 %v1119
    %v2334 = vunpack.c.l.b16 %v1120
    %v2335 = vunpack.c.h.b16 %v1120
    %v2336 = vunpack.c.l.b16 %v1121
    %v2337 = vunpack.c.h.b16 %v1121
    %v2338 = vunpack.c.l.b16 %v1122
    %v2339 = vunpack.c.h.b16 %v1122
    %v2340 = vunpack.c.l.b16 %v1123
    %v2341 = vunpack.c.h.b16 %v1123
    %v2342 = vunpack.c.l.b16 %v1124
    %v2343 = vunpack.c.h.b16 %v1124
    %v2344 = vunpack.c.l.b16 %v1125
    %v2345 = vunpack.c.h.b16 %v1125
    %v2346 = vunpack.c.l.b16 %v1126
    %v2347 = vunpack.c.h.b16 %v1126
    %v2348 = vunpack.c.l.b16 %v1127
    %v2349 = vunpack.c.h.b16 %v1127
    %v2350 = vunpack.c.l.b16 %v1128
    %v2351 = vunpack.c.h.b16 %v1128
    %v2352 = vunpack.c.l.b16 %v1129
    %v2353 = vunpack.c.h.b16 %v1129
    %v2354 = vunpack.c.l.b16 %v1130
    %v2355 = vunpack.c.h.b16 %v1130
    %v2356 = vunpack.c.l.b16 %v1131
    %v2357 = vunpack.c.h.b16 %v1131
    %v2358 = vunpack.c.l.b16 %v1132
    %v2359 = vunpack.c.h.b16 %v1132
    %v2360 = vunpack.c.l.b16 %v1133
    %v2361 = vunpack.c.h.b16 %v1133
    %v2362 = vunpack.c.l.b16 %v1134
    %v2363 = vunpack.c.h.b16 %v1134
    %v2364 = vunpack.c.l.b16 %v1135
    %v2365 = vunpack.c.h.b16 %v1135
    %v2366 = vunpack.c.l.b16 %v1136
    %v2367 = vunpack.c.h.b16 %v1136
    %v2368 = vunpack.c.l.b16 %v1137
    %v2369 = vunpack.c.h.b16 %v1137
    %v2370 = vunpack.c.l.b16 %v1138
    %v2371 = vunpack.c.h.b16 %v1138
    %v2372 = vunpack.c.l.b16 %v1139
    %v2373 = vunpack.c.h.b16 %v1139
    %v2374 = vunpack.c.l.b16 %v1140
    %v2375 = vunpack.c.h.b16 %v1140
    %v2376 = vunpack.c.l.b16 %v1141
    %v2377 = vunpack.c.h.b16 %v1141
    %v2378 = vunpack.c.l.b16 %v1142
    %v2379 = vunpack.c.h.b16 %v1142
    %v2380 = vunpack.c.l.b16 %v1143
    %v2381 = vunpack.c.h.b16 %v1143
    %v2382 = vunpack.c.l.b16 %v1144
    %v2383 = vunpack.c.h.b16 %v1144
    %v2384 = vunpack.c.l.b16 %v1145
    %v2385 = vunpack.c.h.b16 %v1145
    %v2386 = vunpack.c.l.b16 %v1146
    %v2387 = vunpack.c.h.b16 %v1146
    %v2388 = vunpack.c.l.b16 %v1147
    %v2389 = vunpack.c.h.b16 %v1147
    %v2390 = vunpack.c.l.b16 %v1148
    %v2391 = vunpack.c.h.b16 %v1148
    %v2392 = vunpack.c.l.b16 %v1149
    %v2393 = vunpack.c.h.b16 %v1149
    %v2394 = vunpack.c.l.b16 %v1150
    %v2395 = vunpack.c.h.b16 %v1150
    %v2396 = vunpack.c.l.b16 %v1151
    %v2397 = vunpack.c.h.b16 %v1151
    %v2398 = vunpack.c.l.b16 %v1152
    %v2399 = vunpack.c.h.b16 %v1152
    %v2400 = vunpack.c.l.b16 %v1153
    %v2401 = vunpack.c.h.b16 %v1153
    %v2402 = vunpack.c.l.b16 %v1154
    %v2403 = vunpack.c.h.b16 %v1154
    %v2404 = vunpack.c.l.b16 %v1155
    %v2405 = vunpack.c.h.b16 %v1155
    %v2406 = vunpack.c.l.b16 %v1156
    %v2407 = vunpack.c.h.b16 %v1156
    %v2408 = vunpack.c.l.b16 %v1157
    %v2409 = vunpack.c.h.b16 %v1157
    %v2410 = vunpack.c.l.b16 %v1158
    %v2411 = vunpack.c.h.b16 %v1158
    %v2412 = vunpack.c.l.b16 %v1159
    %v2413 = vunpack.c.h.b16 %v1159
    %v2414 = vunpack.c.l.b16 %v1160
    %v2415 = vunpack.c.h.b16 %v1160
    %v2416 = vunpack.c.l.b16 %v1161
    %v2417 = vunpack.c.h.b16 %v1161
    %v2418 = vunpack.c.l.b16 %v1162
    %v2419 = vunpack.c.h.b16 %v1162
    %v2420 = vunpack.c.l.b16 %v1163
    %v2421 = vunpack.c.h.b16 %v1163
    %v2422 = vunpack.c.l.b16 %v1164
    %v2423 = vunpack.c.h.b16 %v1164
    %v2424 = vunpack.c.l.b16 %v1165
    %v2425 = vunpack.c.h.b16 %v1165
    %v2426 = vunpack.c.l.b16 %v1166
    %v2427 = vunpack.c.h.b16 %v1166
    %v2428 = vunpack.c.l.b16 %v1167
    %v2429 = vunpack.c.h.b16 %v1167
    %v2430 = vunpack.c.l.b16 %v1168
    %v2431 = vunpack.c.h.b16 %v1168
    %v2432 = vunpack.c.l.b16 %v1169
    %v2433 = vunpack.c.h.b16 %v1169
    %v2434 = vunpack.c.l.b16 %v1170
    %v2435 = vunpack.c.h.b16 %v1170
    %v2436 = vunpack.c.l.b16 %v1171
    %v2437 = vunpack.c.h.b16 %v1171
    %v2438 = vunpack.c.l.b16 %v1172
    %v2439 = vunpack.c.h.b16 %v1172
    %v2440 = vunpack.c.l.b16 %v1173
    %v2441 = vunpack.c.h.b16 %v1173
    %v2442 = vunpack.c.l.b16 %v1174
    %v2443 = vunpack.c.h.b16 %v1174
    %v2444 = vunpack.c.l.b16 %v1175
    %v2445 = vunpack.c.h.b16 %v1175
    %v2446 = vunpack.c.l.b16 %v1176
    %v2447 = vunpack.c.h.b16 %v1176
    %v2448 = vunpack.c.l.b16 %v1177
    %v2449 = vunpack.c.h.b16 %v1177
    %v2450 = vunpack.c.l.b16 %v1178
    %v2451 = vunpack.c.h.b16 %v1178
    %v2452 = vunpack.c.l.b16 %v1179
    %v2453 = vunpack.c.h.b16 %v1179
    %v2454 = vunpack.c.l.b16 %v1180
    %v2455 = vunpack.c.h.b16 %v1180
    %v2456 = vunpack.c.l.b16 %v1181
    %v2457 = vunpack.c.h.b16 %v1181
    %v2458 = vunpack.c.l.b16 %v1182
    %v2459 = vunpack.c.h.b16 %v1182
    %v2460 = vunpack.c.l.b16 %v1183
    %v2461 = vunpack.c.h.b16 %v1183
    %v2462 = vunpack.c.l.b16 %v1184
    %v2463 = vunpack.c.h.b16 %v1184
    %v2464 = vunpack.c.l.b16 %v1185
    %v2465 = vunpack.c.h.b16 %v1185
    %v2466 = vunpack.c.l.b16 %v1186
    %v2467 = vunpack.c.h.b16 %v1186
    %v2468 = vunpack.c.l.b16 %v1187
    %v2469 = vunpack.c.h.b16 %v1187
    %v2470 = vunpack.c.l.b16 %v1188
    %v2471 = vunpack.c.h.b16 %v1188
    %v2472 = vunpack.c.l.b16 %v1189
    %v2473 = vunpack.c.h.b16 %v1189
    %v2474 = vunpack.c.l.b16 %v1190
    %v2475 = vunpack.c.h.b16 %v1190
    %v2476 = vunpack.c.l.b16 %v1191
    %v2477 = vunpack.c.h.b16 %v1191
    %v2478 = vunpack.c.l.b16 %v1192
    %v2479 = vunpack.c.h.b16 %v1192
    %v2480 = vunpack.c.l.b16 %v1193
    %v2481 = vunpack.c.h.b16 %v1193
    %v2482 = vunpack.c.l.b16 %v1194
    %v2483 = vunpack.c.h.b16 %v1194
    %v2484 = vunpack.c.l.b16 %v1195
    %v2485 = vunpack.c.h.b16 %v1195
    %v2486 = vunpack.c.l.b16 %v1196
    %v2487 = vunpack.c.h.b16 %v1196
    %v2488 = vunpack.c.l.b16 %v1197
    %v2489 = vunpack.c.h.b16 %v1197
    %v2490 = vunpack.c.l.b16 %v1198
    %v2491 = vunpack.c.h.b16 %v1198
    %v2492 = vunpack.c.l.b16 %v1199
    %v2493 = vunpack.c.h.b16 %v1199
    %v2494 = vunpack.c.l.b16 %v1200
    %v2495 = vunpack.c.h.b16 %v1200
    %v2496 = vunpack.c.l.b16 %v1201
    %v2497 = vunpack.c.h.b16 %v1201
    %v2498 = vunpack.c.l.b16 %v1202
    %v2499 = vunpack.c.h.b16 %v1202
    %v2500 = vunpack.c.l.b16 %v1203
    %v2501 = vunpack.c.h.b16 %v1203
    %v2502 = vunpack.c.l.b16 %v1204
    %v2503 = vunpack.c.h.b16 %v1204
    %v2504 = vunpack.c.l.b16 %v1205
    %v2505 = vunpack.c.h.b16 %v1205
    %v2506 = vunpack.c.l.b16 %v1206
    %v2507 = vunpack.c.h.b16 %v1206
    %v2508 = vunpack.c.l.b16 %v1207
    %v2509 = vunpack.c.h.b16 %v1207
    %v2510 = vunpack.c.l.b16 %v1208
    %v2511 = vunpack.c.h.b16 %v1208
    %v2512 = vunpack.c.l.b16 %v1209
    %v2513 = vunpack.c.h.b16 %v1209
    %v2514 = vunpack.c.l.b16 %v1210
    %v2515 = vunpack.c.h.b16 %v1210
    %v2516 = vunpack.c.l.b16 %v1211
    %v2517 = vunpack.c.h.b16 %v1211
    %v2518 = vunpack.c.l.b16 %v1212
    %v2519 = vunpack.c.h.b16 %v1212
    %v2520 = vunpack.c.l.b16 %v1213
    %v2521 = vunpack.c.h.b16 %v1213
    %v2522 = vunpack.c.l.b16 %v1214
    %v2523 = vunpack.c.h.b16 %v1214
    %v2524 = vunpack.c.l.b16 %v1215
    %v2525 = vunpack.c.h.b16 %v1215
    %v2526 = vunpack.c.l.b16 %v1216
    %v2527 = vunpack.c.h.b16 %v1216
    %v2528 = vunpack.c.l.b16 %v1217
    %v2529 = vunpack.c.h.b16 %v1217
    %v2530 = vunpack.c.l.b16 %v1218
    %v2531 = vunpack.c.h.b16 %v1218
    %v2532 = vunpack.c.l.b16 %v1219
    %v2533 = vunpack.c.h.b16 %v1219
    %v2534 = vunpack.c.l.b16 %v1220
    %v2535 = vunpack.c.h.b16 %v1220
    %v2536 = vunpack.c.l.b16 %v1221
    %v2537 = vunpack.c.h.b16 %v1221
    %v2538 = vunpack.c.l.b16 %v1222
    %v2539 = vunpack.c.h.b16 %v1222
    %v2540 = vunpack.c.l.b16 %v1223
    %v2541 = vunpack.c.h.b16 %v1223
    %v2542 = vunpack.c.l.b16 %v1224
    %v2543 = vunpack.c.h.b16 %v1224
    %v2544 = vunpack.c.l.b16 %v1225
    %v2545 = vunpack.c.h.b16 %v1225
    %v2546 = vunpack.c.l.b16 %v1226
    %v2547 = vunpack.c.h.b16 %v1226
    %v2548 = vunpack.c.l.b16 %v1227
    %v2549 = vunpack.c.h.b16 %v1227
    %v2550 = vunpack.c.l.b16 %v1228
    %v2551 = vunpack.c.h.b16 %v1228
    %v2552 = vunpack.c.l.b16 %v1229
    %v2553 = vunpack.c.h.b16 %v1229
    %v2554 = vpack.c.b16 %v2302, %v2298
    %v2555 = vpack.c.b16 %v2303, %v2299
    %v2556 = vpack.c.b16 %v2304, %v2300
    %v2557 = vpack.c.b16 %v2305, %v2301
    %v2558 = vpack.c.b16 %v2310, %v2306
    %v2559 = vpack.c.b16 %v2311, %v2307
    %v2560 = vpack.c.b16 %v2312, %v2308
    %v2561 = vpack.c.b16 %v2313, %v2309
    %v2562 = vpack.c.b16 %v2318, %v2314
    %v2563 = vpack.c.b16 %v2319, %v2315
    %v2564 = vpack.c.b16 %v2320, %v2316
    %v2565 = vpack.c.b16 %v2321, %v2317
    %v2566 = vpack.c.b16 %v2326, %v2322
    %v2567 = vpack.c.b16 %v2327, %v2323
    %v2568 = vpack.c.b16 %v2328, %v2324
    %v2569 = vpack.c.b16 %v2329, %v2325
    %v2570 = vpack.c.b16 %v2334, %v2330
    %v2571 = vpack.c.b16 %v2335, %v2331
    %v2572 = vpack.c.b16 %v2336, %v2332
    %v2573 = vpack.c.b16 %v2337, %v2333
    %v2574 = vpack.c.b16 %v2342, %v2338
    %v2575 = vpack.c.b16 %v2343, %v2339
    %v2576 = vpack.c.b16 %v2344, %v2340
    %v2577 = vpack.c.b16 %v2345, %v2341
    %v2578 = vpack.c.b16 %v2350, %v2346
    %v2579 = vpack.c.b16 %v2351, %v2347
    %v2580 = vpack.c.b16 %v2352, %v2348
    %v2581 = vpack.c.b16 %v2353, %v2349
    %v2582 = vpack.c.b16 %v2358, %v2354
    %v2583 = vpack.c.b16 %v2359, %v2355
    %v2584 = vpack.c.b16 %v2360, %v2356
    %v2585 = vpack.c.b16 %v2361, %v2357
    %v2586 = vpack.c.b16 %v2366, %v2362
    %v2587 = vpack.c.b16 %v2367, %v2363
    %v2588 = vpack.c.b16 %v2368, %v2364
    %v2589 = vpack.c.b16 %v2369, %v2365
    %v2590 = vpack.c.b16 %v2374, %v2370
    %v2591 = vpack.c.b16 %v2375, %v2371
    %v2592 = vpack.c.b16 %v2376, %v2372
    %v2593 = vpack.c.b16 %v2377, %v2373
    %v2594 = vpack.c.b16 %v2382, %v2378
    %v2595 = vpack.c.b16 %v2383, %v2379
    %v2596 = vpack.c.b16 %v2384, %v2380
    %v2597 = vpack.c.b16 %v2385, %v2381
    %v2598 = vpack.c.b16 %v2390, %v2386
    %v2599 = vpack.c.b16 %v2391, %v2387
    %v2600 = vpack.c.b16 %v2392, %v2388
    %v2601 = vpack.c.b16 %v2393, %v2389
    %v2602 = vpack.c.b16 %v2398, %v2394
    %v2603 = vpack.c.b16 %v2399, %v2395
    %v2604 = vpack.c.b16 %v2400, %v2396
    %v2605 = vpack.c.b16 %v2401, %v2397
    %v2606 = vpack.c.b16 %v2406, %v2402
    %v2607 = vpack.c.b16 %v2407, %v2403
    %v2608 = vpack.c.b16 %v2408, %v2404
    %v2609 = vpack.c.b16 %v2409, %v2405
    %v2610 = vpack.c.b16 %v2414, %v2410
    %v2611 = vpack.c.b16 %v2415, %v2411
    %v2612 = vpack.c.b16 %v2416, %v2412
    %v2613 = vpack.c.b16 %v2417, %v2413
    %v2614 = vpack.c.b16 %v2422, %v2418
    %v2615 = vpack.c.b16 %v2423, %v2419
    %v2616 = vpack.c.b16 %v2424, %v2420
    %v2617 = vpack.c.b16 %v2425, %v2421
    %v2618 = vpack.c.b16 %v2430, %v2426
    %v2619 = vpack.c.b16 %v2431, %v2427
    %v2620 = vpack.c.b16 %v2432, %v2428
    %v2621 = vpack.c.b16 %v2433, %v2429
    %v2622 = vpack.c.b16 %v2438, %v2434
    %v2623 = vpack.c.b16 %v2439, %v2435
    %v2624 = vpack.c.b16 %v2440, %v2436
    %v2625 = vpack.c.b16 %v2441, %v2437
    %v2626 = vpack.c.b16 %v2446, %v2442
    %v2627 = vpack.c.b16 %v2447, %v2443
    %v2628 = vpack.c.b16 %v2448, %v2444
    %v2629 = vpack.c.b16 %v2449, %v2445
    %v2630 = vpack.c.b16 %v2454, %v2450
    %v2631 = vpack.c.b16 %v2455, %v2451
    %v2632 = vpack.c.b16 %v2456, %v2452
    %v2633 = vpack.c.b16 %v2457, %v2453
    %v2634 = vpack.c.b16 %v2462, %v2458
    %v2635 = vpack.c.b16 %v2463, %v2459
    %v2636 = vpack.c.b16 %v2464, %v2460
    %v2637 = vpack.c.b16 %v2465, %v2461
    %v2638 = vpack.c.b16 %v2470, %v2466
    %v2639 = vpack.c.b16 %v2471, %v2467
    %v2640 = vpack.c.b16 %v2472, %v2468
    %v2641 = vpack.c.b16 %v2473, %v2469
    %v2642 = vpack.c.b16 %v2478, %v2474
    %v2643 = vpack.c.b16 %v2479, %v2475
    %v2644 = vpack.c.b16 %v2480, %v2476
    %v2645 = vpack.c.b16 %v2481, %v2477
    %v2646 = vpack.c.b16 %v2486, %v2482
    %v2647 = vpack.c.b16 %v2487, %v2483
    %v2648 = vpack.c.b16 %v2488, %v2484
    %v2649 = vpack.c.b16 %v2489, %v2485
    %v2650 = vpack.c.b16 %v2494, %v2490
    %v2651 = vpack.c.b16 %v2495, %v2491
    %v2652 = vpack.c.b16 %v2496, %v2492
    %v2653 = vpack.c.b16 %v2497, %v2493
    %v2654 = vpack.c.b16 %v2502, %v2498
    %v2655 = vpack.c.b16 %v2503, %v2499
    %v2656 = vpack.c.b16 %v2504, %v2500
    %v2657 = vpack.c.b16 %v2505, %v2501
    %v2658 = vpack.c.b16 %v2510, %v2506
    %v2659 = vpack.c.b16 %v2511, %v2507
    %v2660 = vpack.c.b16 %v2512, %v2508
    %v2661 = vpack.c.b16 %v2513, %v2509
    %v2662 = vpack.c.b16 %v2518, %v2514
    %v2663 = vpack.c.b16 %v2519, %v2515
    %v2664 = vpack.c.b16 %v2520, %v2516
    %v2665 = vpack.c.b16 %v2521, %v2517
    %v2666 = vpack.c.b16 %v2526, %v2522
    %v2667 = vpack.c.b16 %v2527, %v2523
    %v2668 = vpack.c.b16 %v2528, %v2524
    %v2669 = vpack.c.b16 %v2529, %v2525
    %v2670 = vpack.c.b16 %v2534, %v2530
    %v2671 = vpack.c.b16 %v2535, %v2531
    %v2672 = vpack.c.b16 %v2536, %v2532
    %v2673 = vpack.c.b16 %v2537, %v2533
    %v2674 = vpack.c.b16 %v2542, %v2538
    %v2675 = vpack.c.b16 %v2543, %v2539
    %v2676 = vpack.c.b16 %v2544, %v2540
    %v2677 = vpack.c.b16 %v2545, %v2541
    %v2678 = vpack.c.b16 %v2550, %v2546
    %v2679 = vpack.c.b16 %v2551, %v2547
    %v2680 = vpack.c.b16 %v2552, %v2548
    %v2681 = vpack.c.b16 %v2553, %v2549
    %2810 = vmatprep.subr.bf16.mxu0 %v2583
    %2811 = vmatpush1.bf16.msra.mxu0 %v2582
    %2812 = vmatprep.subr.bf16.mxu0 %v2579
    %2813 = vmatpush1.bf16.msra.mxu0 %v2578
    %2814 = vmatprep.subr.bf16.mxu0 %v2575
    %2815 = vmatpush1.bf16.msra.mxu0 %v2574
    %2816 = vmatprep.subr.bf16.mxu0 %v2571
    %2817 = vmatpush1.bf16.msra.mxu0 %v2570
    %2818 = vmatprep.subr.bf16.mxu0 %v2567
    %2819 = vmatpush1.bf16.msra.mxu0 %v2566
    %2820 = vmatprep.subr.bf16.mxu0 %v2563
    %2821 = vmatpush1.bf16.msra.mxu0 %v2562
    %2822 = vmatprep.subr.bf16.mxu0 %v2559
    %2823 = vmatpush1.bf16.msra.mxu0 %v2558
    %2824 = vmatprep.subr.bf16.mxu0 %v2555
    %2825 = vmatpush1.bf16.msra.mxu0 %v2554
    %2826 = vmatprep.subr.bf16.mxu0 %v2615
    %2827 = vmatpush2.bf16.msra.mxu0 %v2614
    %2828 = vmatprep.subr.bf16.mxu0 %v2611
    %2829 = vmatpush2.bf16.msra.mxu0 %v2610
    %2830 = vmatprep.subr.bf16.mxu0 %v2607
    %2831 = vmatpush2.bf16.msra.mxu0 %v2606
    %2832 = vmatprep.subr.bf16.mxu0 %v2603
    %2833 = vmatpush2.bf16.msra.mxu0 %v2602
    %2834 = vmatprep.subr.bf16.mxu0 %v2599
    %2835 = vmatpush2.bf16.msra.mxu0 %v2598
    %2836 = vmatprep.subr.bf16.mxu0 %v2595
    %2837 = vmatpush2.bf16.msra.mxu0 %v2594
    %2838 = vmatprep.subr.bf16.mxu0 %v2591
    %2839 = vmatpush2.bf16.msra.mxu0 %v2590
    %2840 = vmatprep.subr.bf16.mxu0 %v2587
    %2841 = vmatpush2.bf16.msra.mxu0 %v2586
    %2842 = vmatprep.mubr.bf16.mxu0 %v1099
    %2843 = vmatmul.mubr.bf16.gmra.mxu0 %v1098
    %v2844 = vpop.f32.mrf.mxu0
    %v2845 = vadd.f32 %v2076, %v2844
    %v2846 = vpop.f32.mrf.mxu0
    %v2847 = vadd.f32 %v2078, %v2846
    %v2848 = vpop.f32.mrf.mxu0
    %v2849 = vadd.f32 %v2080, %v2848
    %v2850 = vpop.f32.mrf.mxu0
    %v2851 = vadd.f32 %v2082, %v2850
    %2852 = vdwg.mxu0
    %2853 = vmatprep.subr.bf16.mxu0 %v2647
    %2854 = vmatpush1.bf16.msra.mxu0 %v2646
    %2855 = vmatprep.subr.bf16.mxu0 %v2643
    %2856 = vmatpush1.bf16.msra.mxu0 %v2642
    %2857 = vmatprep.subr.bf16.mxu0 %v2639
    %2858 = vmatpush1.bf16.msra.mxu0 %v2638
    %2859 = vmatprep.subr.bf16.mxu0 %v2635
    %2860 = vmatpush1.bf16.msra.mxu0 %v2634
    %2861 = vmatprep.subr.bf16.mxu0 %v2631
    %2862 = vmatpush1.bf16.msra.mxu0 %v2630
    %2863 = vmatprep.subr.bf16.mxu0 %v2627
    %2864 = vmatpush1.bf16.msra.mxu0 %v2626
    %2865 = vmatprep.subr.bf16.mxu0 %v2623
    %2866 = vmatpush1.bf16.msra.mxu0 %v2622
    %2867 = vmatprep.subr.bf16.mxu0 %v2619
    %2868 = vmatpush1.bf16.msra.mxu0 %v2618
    %2869 = vmatprep.subr.bf16.mxu0 %v2679
    %2870 = vmatpush2.bf16.msra.mxu0 %v2678
    %2871 = vmatprep.subr.bf16.mxu0 %v2675
    %2872 = vmatpush2.bf16.msra.mxu0 %v2674
    %2873 = vmatprep.subr.bf16.mxu0 %v2671
    %2874 = vmatpush2.bf16.msra.mxu0 %v2670
    %2875 = vmatprep.subr.bf16.mxu0 %v2667
    %2876 = vmatpush2.bf16.msra.mxu0 %v2666
    %2877 = vmatprep.subr.bf16.mxu0 %v2663
    %2878 = vmatpush2.bf16.msra.mxu0 %v2662
    %2879 = vmatprep.subr.bf16.mxu0 %v2659
    %2880 = vmatpush2.bf16.msra.mxu0 %v2658
    %2881 = vmatprep.subr.bf16.mxu0 %v2655
    %2882 = vmatpush2.bf16.msra.mxu0 %v2654
    %2883 = vmatprep.subr.bf16.mxu0 %v2651
    %2884 = vmatpush2.bf16.msra.mxu0 %v2650
    %2885 = vmatprep.mubr.bf16.mxu0 %v1101
    %2886 = vmatmul.mubr.bf16.gmra.mxu0 %v1100
    %v2887 = vpop.f32.mrf.mxu0
    %v2888 = vadd.f32 %v2845, %v2887
    %v2889 = vpop.f32.mrf.mxu0
    %v2890 = vadd.f32 %v2847, %v2889
    %v2891 = vpop.f32.mrf.mxu0
    %v2892 = vadd.f32 %v2849, %v2891
    %v2893 = vpop.f32.mrf.mxu0
    %v2894 = vadd.f32 %v2851, %v2893
    %2895 = vdwg.mxu0
    %2896 = vmatprep.subr.bf16.mxu0 %v2585
    %2897 = vmatpush1.bf16.msra.mxu0 %v2584
    %2898 = vmatprep.subr.bf16.mxu0 %v2581
    %2899 = vmatpush1.bf16.msra.mxu0 %v2580
    %2900 = vmatprep.subr.bf16.mxu0 %v2577
    %2901 = vmatpush1.bf16.msra.mxu0 %v2576
    %2902 = vmatprep.subr.bf16.mxu0 %v2573
    %2903 = vmatpush1.bf16.msra.mxu0 %v2572
    %2904 = vmatprep.subr.bf16.mxu0 %v2569
    %2905 = vmatpush1.bf16.msra.mxu0 %v2568
    %2906 = vmatprep.subr.bf16.mxu0 %v2565
    %2907 = vmatpush1.bf16.msra.mxu0 %v2564
    %2908 = vmatprep.subr.bf16.mxu0 %v2561
    %2909 = vmatpush1.bf16.msra.mxu0 %v2560
    %2910 = vmatprep.subr.bf16.mxu0 %v2557
    %2911 = vmatpush1.bf16.msra.mxu0 %v2556
    %2912 = vmatprep.subr.bf16.mxu0 %v2617
    %2913 = vmatpush2.bf16.msra.mxu0 %v2616
    %2914 = vmatprep.subr.bf16.mxu0 %v2613
    %2915 = vmatpush2.bf16.msra.mxu0 %v2612
    %2916 = vmatprep.subr.bf16.mxu0 %v2609
    %2917 = vmatpush2.bf16.msra.mxu0 %v2608
    %2918 = vmatprep.subr.bf16.mxu0 %v2605
    %2919 = vmatpush2.bf16.msra.mxu0 %v2604
    %2920 = vmatprep.subr.bf16.mxu0 %v2601
    %2921 = vmatpush2.bf16.msra.mxu0 %v2600
    %2922 = vmatprep.subr.bf16.mxu0 %v2597
    %2923 = vmatpush2.bf16.msra.mxu0 %v2596
    %2924 = vmatprep.subr.bf16.mxu0 %v2593
    %2925 = vmatpush2.bf16.msra.mxu0 %v2592
    %2926 = vmatprep.subr.bf16.mxu0 %v2589
    %2927 = vmatpush2.bf16.msra.mxu0 %v2588
    %2928 = vmatprep.mubr.bf16.mxu0 %v1099
    %2929 = vmatmul.mubr.bf16.gmra.mxu0 %v1098
    %v2930 = vpop.f32.mrf.mxu0
    %v2931 = vadd.f32 %v2162, %v2930
    %v2932 = vpop.f32.mrf.mxu0
    %v2933 = vadd.f32 %v2164, %v2932
    %v2934 = vpop.f32.mrf.mxu0
    %v2935 = vadd.f32 %v2166, %v2934
    %v2936 = vpop.f32.mrf.mxu0
    %v2937 = vadd.f32 %v2168, %v2936
    %2938 = vdwg.mxu0
    %2939 = vmatprep.subr.bf16.mxu0 %v2649
    %2940 = vmatpush1.bf16.msra.mxu0 %v2648
    %2941 = vmatprep.subr.bf16.mxu0 %v2645
    %2942 = vmatpush1.bf16.msra.mxu0 %v2644
    %2943 = vmatprep.subr.bf16.mxu0 %v2641
    %2944 = vmatpush1.bf16.msra.mxu0 %v2640
    %2945 = vmatprep.subr.bf16.mxu0 %v2637
    %2946 = vmatpush1.bf16.msra.mxu0 %v2636
    %2947 = vmatprep.subr.bf16.mxu0 %v2633
    %2948 = vmatpush1.bf16.msra.mxu0 %v2632
    %2949 = vmatprep.subr.bf16.mxu0 %v2629
    %2950 = vmatpush1.bf16.msra.mxu0 %v2628
    %2951 = vmatprep.subr.bf16.mxu0 %v2625
    %2952 = vmatpush1.bf16.msra.mxu0 %v2624
    %2953 = vmatprep.subr.bf16.mxu0 %v2621
    %2954 = vmatpush1.bf16.msra.mxu0 %v2620
    %2955 = vmatprep.subr.bf16.mxu0 %v2681
    %2956 = vmatpush2.bf16.msra.mxu0 %v2680
    %2957 = vmatprep.subr.bf16.mxu0 %v2677
    %2958 = vmatpush2.bf16.msra.mxu0 %v2676
    %2959 = vmatprep.subr.bf16.mxu0 %v2673
    %2960 = vmatpush2.bf16.msra.mxu0 %v2672
    %2961 = vmatprep.subr.bf16.mxu0 %v2669
    %2962 = vmatpush2.bf16.msra.mxu0 %v2668
    %2963 = vmatprep.subr.bf16.mxu0 %v2665
    %2964 = vmatpush2.bf16.msra.mxu0 %v2664
    %2965 = vmatprep.subr.bf16.mxu0 %v2661
    %2966 = vmatpush2.bf16.msra.mxu0 %v2660
    %2967 = vmatprep.subr.bf16.mxu0 %v2657
    %2968 = vmatpush2.bf16.msra.mxu0 %v2656
    %2969 = vmatprep.subr.bf16.mxu0 %v2653
    %2970 = vmatpush2.bf16.msra.mxu0 %v2652
    %2971 = vmatprep.mubr.bf16.mxu0 %v1101
    %2972 = vmatmul.mubr.bf16.gmra.mxu0 %v1100
    %v2973 = vpop.f32.mrf.mxu0
    %v2974 = vadd.f32 %v2931, %v2973
    %v2975 = vpop.f32.mrf.mxu0
    %v2976 = vadd.f32 %v2933, %v2975
    %v2977 = vpop.f32.mrf.mxu0
    %v2978 = vadd.f32 %v2935, %v2977
    %v2979 = vpop.f32.mrf.mxu0
    %v2980 = vadd.f32 %v2937, %v2979
    %2981 = vdwg.mxu0
    %v2982 = vld [vmem:[%s10] sm:$0xf]
    %v2984 = vlaneseq
    %v2985 = vshrl.u32 %v2984, 7
    %v2986 = vsub.s32 0, %v2985
    %v2987 = vrot.slane %v2982, %v2986
    %v2988 = vlaneseq
    %v2989 = vshrl.u32 %v2988, 7
    %v2990 = vsub.s32 1, %v2989
    %v2991 = vrot.slane %v2982, %v2990
    %v2992 = vlaneseq
    %v2993 = vshrl.u32 %v2992, 7
    %v2994 = vsub.s32 2, %v2993
    %v2995 = vrot.slane %v2982, %v2994
    %v2996 = vlaneseq
    %v2997 = vshrl.u32 %v2996, 7
    %v2998 = vsub.s32 3, %v2997
    %v2999 = vrot.slane %v2982, %v2998
    %v3004 = vadd.f32 %v2888, %v2987
    %v3005 = vadd.f32 %v2890, %v2991
    %v3006 = vadd.f32 %v2974, %v2995
    %v3007 = vadd.f32 %v2976, %v2999
    %v3008 = vadd.f32 %v2892, %v2987
    %v3009 = vadd.f32 %v2894, %v2991
    %v3010 = vadd.f32 %v2978, %v2995
    %v3011 = vadd.f32 %v2980, %v2999
    %v3012 = vmax.f32 %v3004, 0.0
    %v3013 = vmax.f32 %v3005, 0.0
    %v3014 = vmax.f32 %v3006, 0.0
    %v3015 = vmax.f32 %v3007, 0.0
    %v3016 = vmax.f32 %v3008, 0.0
    %v3017 = vmax.f32 %v3009, 0.0
    %v3018 = vmax.f32 %v3010, 0.0
    %v3019 = vmax.f32 %v3011, 0.0
    %v3020 = vpack.c.bf16 %v3016, %v3012
    %v3021 = vpack.c.bf16 %v3017, %v3013
    %v3022 = vpack.c.bf16 %v3018, %v3014
    %v3023 = vpack.c.bf16 %v3019, %v3015
    %v3025 = vsel %vm368, %v364, 0
    %3027 = vmatprep.subr.bf16.mxu0 0
    %3028 = vmatpush1.bf16.msra.mxu0 0
    %3029 = vmatprep.subr.bf16.mxu0 0
    %3030 = vmatpush1.bf16.msra.mxu0 0
    %3031 = vmatprep.subr.bf16.mxu0 0
    %3032 = vmatpush1.bf16.msra.mxu0 0
    %3033 = vmatprep.subr.bf16.mxu0 0
    %3034 = vmatpush1.bf16.msra.mxu0 0
    %3035 = vmatprep.subr.bf16.mxu0 0
    %3036 = vmatpush1.bf16.msra.mxu0 0
    %3037 = vmatprep.subr.bf16.mxu0 0
    %3038 = vmatpush1.bf16.msra.mxu0 0
    %3039 = vmatprep.subr.bf16.mxu0 0
    %3040 = vmatpush1.bf16.msra.mxu0 0
    %3041 = vmatprep.subr.bf16.mxu0 %v3021
    %3042 = vmatpush1.bf16.msra.mxu0 %v3020
    %3043 = vmatprep.subr.bf16.mxu0 0
    %3044 = vmatpush2.bf16.msra.mxu0 0
    %3045 = vmatprep.subr.bf16.mxu0 0
    %3046 = vmatpush2.bf16.msra.mxu0 0
    %3047 = vmatprep.subr.bf16.mxu0 0
    %3048 = vmatpush2.bf16.msra.mxu0 0
    %3049 = vmatprep.subr.bf16.mxu0 0
    %3050 = vmatpush2.bf16.msra.mxu0 0
    %3051 = vmatprep.subr.bf16.mxu0 0
    %3052 = vmatpush2.bf16.msra.mxu0 0
    %3053 = vmatprep.subr.bf16.mxu0 0
    %3054 = vmatpush2.bf16.msra.mxu0 0
    %3055 = vmatprep.subr.bf16.mxu0 0
    %3056 = vmatpush2.bf16.msra.mxu0 0
    %3057 = vmatprep.subr.bf16.mxu0 0
    %3058 = vmatpush2.bf16.msra.mxu0 0
    %3059 = vmatprep.mubr.bf16.mxu0 0
    %3060 = vmatmul.mubr.bf16.gmra.mxu0 %v3025
    %v3061 = vpop.f32.mrf.mxu0
    %v3062 = vadd.f32 0.0, %v3061
    %v3063 = vpop.f32.mrf.mxu0
    %v3064 = vadd.f32 0.0, %v3063
    %v3065 = vpop.f32.mrf.mxu0
    %v3066 = vpop.f32.mrf.mxu0
    %3067 = vdwg.mxu0
    %3068 = vmatprep.subr.bf16.mxu0 0
    %3069 = vmatpush1.bf16.msra.mxu0 0
    %3070 = vmatprep.subr.bf16.mxu0 0
    %3071 = vmatpush1.bf16.msra.mxu0 0
    %3072 = vmatprep.subr.bf16.mxu0 0
    %3073 = vmatpush1.bf16.msra.mxu0 0
    %3074 = vmatprep.subr.bf16.mxu0 0
    %3075 = vmatpush1.bf16.msra.mxu0 0
    %3076 = vmatprep.subr.bf16.mxu0 0
    %3077 = vmatpush1.bf16.msra.mxu0 0
    %3078 = vmatprep.subr.bf16.mxu0 0
    %3079 = vmatpush1.bf16.msra.mxu0 0
    %3080 = vmatprep.subr.bf16.mxu0 0
    %3081 = vmatpush1.bf16.msra.mxu0 0
    %3082 = vmatprep.subr.bf16.mxu0 %v3023
    %3083 = vmatpush1.bf16.msra.mxu0 %v3022
    %3084 = vmatprep.subr.bf16.mxu0 0
    %3085 = vmatpush2.bf16.msra.mxu0 0
    %3086 = vmatprep.subr.bf16.mxu0 0
    %3087 = vmatpush2.bf16.msra.mxu0 0
    %3088 = vmatprep.subr.bf16.mxu0 0
    %3089 = vmatpush2.bf16.msra.mxu0 0
    %3090 = vmatprep.subr.bf16.mxu0 0
    %3091 = vmatpush2.bf16.msra.mxu0 0
    %3092 = vmatprep.subr.bf16.mxu0 0
    %3093 = vmatpush2.bf16.msra.mxu0 0
    %3094 = vmatprep.subr.bf16.mxu0 0
    %3095 = vmatpush2.bf16.msra.mxu0 0
    %3096 = vmatprep.subr.bf16.mxu0 0
    %3097 = vmatpush2.bf16.msra.mxu0 0
    %3098 = vmatprep.subr.bf16.mxu0 0
    %3099 = vmatpush2.bf16.msra.mxu0 0
    %3100 = vmatprep.mubr.bf16.mxu0 0
    %3101 = vmatmul.mubr.bf16.gmra.mxu0 %v3025
    %v3102 = vpop.f32.mrf.mxu0
    %v3103 = vadd.f32 0.0, %v3102
    %v3104 = vpop.f32.mrf.mxu0
    %v3105 = vadd.f32 0.0, %v3104
    %v3106 = vpop.f32.mrf.mxu0
    %v3107 = vpop.f32.mrf.mxu0
    %3108 = vdwg.mxu0
    %v3113 = vcombine.low %v3062, %v3064
    %v3114 = vcombine.low %v3103, %v3105
    %v3116 = vunpack.c.l.s4 1983009808
    %v3117 = vunpack.c.0.s8 %v3116
    %v3118 = vlaneseq
    %v3119 = vshrl.u32 %v3118, 7
    %v3120 = vsub.s32 %v3117, %v3119
    %v3121 = vrot.slane %v3113, %v3120
    %v3123 = vunpack.c.l.s4 1983009808
    %v3124 = vunpack.c.0.s8 %v3123
    %v3125 = vlaneseq
    %v3126 = vshrl.u32 %v3125, 7
    %v3127 = vsub.s32 %v3124, %v3126
    %v3128 = vrot.slane %v3114, %v3127
    %v3129 = vcombine.low %v3121, %v3128
    %3131 = vst [vmem:[#allocation8] sm:$0xff] %v3129
    %v3132 = vpack.c.bf16 %v3062, %v3062
    %v3133 = vpack.c.bf16 %v3064, %v3064
    %v3134 = vpack.c.bf16 %v3103, %v3103
    %v3135 = vpack.c.bf16 %v3105, %v3105
    %v3136 = vld [vmem:[%s11] sm:$0xf]
    %v3137 = vld [vmem:[%s11 + $0x4] sm:$0xf]
    %v3138 = vld [vmem:[%s11 + $0x8] sm:$0xf]
    %v3139 = vld [vmem:[%s11 + $0xc] sm:$0xf]
    %v3140 = vld [vmem:[%s11 + $0x10] sm:$0xf]
    %v3141 = vld [vmem:[%s11 + $0x14] sm:$0xf]
    %v3142 = vld [vmem:[%s11 + $0x18] sm:$0xf]
    %v3143 = vld [vmem:[%s11 + $0x1c] sm:$0xf]
    %v3144 = vld [vmem:[%s11 + $0x20] sm:$0xf]
    %v3145 = vld [vmem:[%s11 + $0x24] sm:$0xf]
    %v3146 = vld [vmem:[%s11 + $0x28] sm:$0xf]
    %v3147 = vld [vmem:[%s11 + $0x2c] sm:$0xf]
    %v3148 = vld [vmem:[%s11 + $0x30] sm:$0xf]
    %v3149 = vld [vmem:[%s11 + $0x34] sm:$0xf]
    %v3150 = vld [vmem:[%s11 + $0x38] sm:$0xf]
    %v3151 = vld [vmem:[%s11 + $0x3c] sm:$0xf]
    %v3152 = vld [vmem:[%s11 + $0x40] sm:$0xf]
    %v3153 = vld [vmem:[%s11 + $0x44] sm:$0xf]
    %v3154 = vld [vmem:[%s11 + $0x48] sm:$0xf]
    %v3155 = vld [vmem:[%s11 + $0x4c] sm:$0xf]
    %v3156 = vld [vmem:[%s11 + $0x50] sm:$0xf]
    %v3157 = vld [vmem:[%s11 + $0x54] sm:$0xf]
    %v3158 = vld [vmem:[%s11 + $0x58] sm:$0xf]
    %v3159 = vld [vmem:[%s11 + $0x5c] sm:$0xf]
    %v3160 = vld [vmem:[%s11 + $0x60] sm:$0xf]
    %v3161 = vld [vmem:[%s11 + $0x64] sm:$0xf]
    %v3162 = vld [vmem:[%s11 + $0x68] sm:$0xf]
    %v3163 = vld [vmem:[%s11 + $0x6c] sm:$0xf]
    %v3164 = vld [vmem:[%s11 + $0x70] sm:$0xf]
    %v3165 = vld [vmem:[%s11 + $0x74] sm:$0xf]
    %v3166 = vld [vmem:[%s11 + $0x78] sm:$0xf]
    %v3167 = vld [vmem:[%s11 + $0x7c] sm:$0xf]
    %v3168 = vld [vmem:[%s11 + $0x80] sm:$0xf]
    %v3169 = vld [vmem:[%s11 + $0x84] sm:$0xf]
    %v3170 = vld [vmem:[%s11 + $0x88] sm:$0xf]
    %v3171 = vld [vmem:[%s11 + $0x8c] sm:$0xf]
    %v3172 = vld [vmem:[%s11 + $0x90] sm:$0xf]
    %v3173 = vld [vmem:[%s11 + $0x94] sm:$0xf]
    %v3174 = vld [vmem:[%s11 + $0x98] sm:$0xf]
    %v3175 = vld [vmem:[%s11 + $0x9c] sm:$0xf]
    %v3176 = vld [vmem:[%s11 + $0xa0] sm:$0xf]
    %v3177 = vld [vmem:[%s11 + $0xa4] sm:$0xf]
    %v3178 = vld [vmem:[%s11 + $0xa8] sm:$0xf]
    %v3179 = vld [vmem:[%s11 + $0xac] sm:$0xf]
    %v3180 = vld [vmem:[%s11 + $0xb0] sm:$0xf]
    %v3181 = vld [vmem:[%s11 + $0xb4] sm:$0xf]
    %v3182 = vld [vmem:[%s11 + $0xb8] sm:$0xf]
    %v3183 = vld [vmem:[%s11 + $0xbc] sm:$0xf]
    %v3184 = vld [vmem:[%s11 + $0xc0] sm:$0xf]
    %v3185 = vld [vmem:[%s11 + $0xc4] sm:$0xf]
    %v3186 = vld [vmem:[%s11 + $0xc8] sm:$0xf]
    %v3187 = vld [vmem:[%s11 + $0xcc] sm:$0xf]
    %v3188 = vld [vmem:[%s11 + $0xd0] sm:$0xf]
    %v3189 = vld [vmem:[%s11 + $0xd4] sm:$0xf]
    %v3190 = vld [vmem:[%s11 + $0xd8] sm:$0xf]
    %v3191 = vld [vmem:[%s11 + $0xdc] sm:$0xf]
    %v3192 = vld [vmem:[%s11 + $0xe0] sm:$0xf]
    %v3193 = vld [vmem:[%s11 + $0xe4] sm:$0xf]
    %v3194 = vld [vmem:[%s11 + $0xe8] sm:$0xf]
    %v3195 = vld [vmem:[%s11 + $0xec] sm:$0xf]
    %v3196 = vld [vmem:[%s11 + $0xf0] sm:$0xf]
    %v3197 = vld [vmem:[%s11 + $0xf4] sm:$0xf]
    %v3198 = vld [vmem:[%s11 + $0xf8] sm:$0xf]
    %v3199 = vld [vmem:[%s11 + $0xfc] sm:$0xf]
    %v3200 = vld [vmem:[%s12] sm:$0x1]
    %v3202 = vlaneseq
    %v3203 = vshrl.u32 %v3202, 7
    %v3204 = vsub.s32 0, %v3203
    %v3205 = vrot.slane %v3200, %v3204
    %v3271 = vunpack.c.l.b16 %v3136
    %v3272 = vunpack.c.l.b16 %v3137
    %v3273 = vunpack.c.l.b16 %v3138
    %v3274 = vunpack.c.l.b16 %v3139
    %v3275 = vunpack.c.l.b16 %v3140
    %v3276 = vunpack.c.l.b16 %v3141
    %v3277 = vunpack.c.l.b16 %v3142
    %v3278 = vunpack.c.l.b16 %v3143
    %v3279 = vunpack.c.l.b16 %v3144
    %v3280 = vunpack.c.l.b16 %v3145
    %v3281 = vunpack.c.l.b16 %v3146
    %v3282 = vunpack.c.l.b16 %v3147
    %v3283 = vunpack.c.l.b16 %v3148
    %v3284 = vunpack.c.l.b16 %v3149
    %v3285 = vunpack.c.l.b16 %v3150
    %v3286 = vunpack.c.l.b16 %v3151
    %v3287 = vunpack.c.l.b16 %v3152
    %v3288 = vunpack.c.l.b16 %v3153
    %v3289 = vunpack.c.l.b16 %v3154
    %v3290 = vunpack.c.l.b16 %v3155
    %v3291 = vunpack.c.l.b16 %v3156
    %v3292 = vunpack.c.l.b16 %v3157
    %v3293 = vunpack.c.l.b16 %v3158
    %v3294 = vunpack.c.l.b16 %v3159
    %v3295 = vunpack.c.l.b16 %v3160
    %v3296 = vunpack.c.l.b16 %v3161
    %v3297 = vunpack.c.l.b16 %v3162
    %v3298 = vunpack.c.l.b16 %v3163
    %v3299 = vunpack.c.l.b16 %v3164
    %v3300 = vunpack.c.l.b16 %v3165
    %v3301 = vunpack.c.l.b16 %v3166
    %v3302 = vunpack.c.l.b16 %v3167
    %v3303 = vunpack.c.l.b16 %v3168
    %v3304 = vunpack.c.l.b16 %v3169
    %v3305 = vunpack.c.l.b16 %v3170
    %v3306 = vunpack.c.l.b16 %v3171
    %v3307 = vunpack.c.l.b16 %v3172
    %v3308 = vunpack.c.l.b16 %v3173
    %v3309 = vunpack.c.l.b16 %v3174
    %v3310 = vunpack.c.l.b16 %v3175
    %v3311 = vunpack.c.l.b16 %v3176
    %v3312 = vunpack.c.l.b16 %v3177
    %v3313 = vunpack.c.l.b16 %v3178
    %v3314 = vunpack.c.l.b16 %v3179
    %v3315 = vunpack.c.l.b16 %v3180
    %v3316 = vunpack.c.l.b16 %v3181
    %v3317 = vunpack.c.l.b16 %v3182
    %v3318 = vunpack.c.l.b16 %v3183
    %v3319 = vunpack.c.l.b16 %v3184
    %v3320 = vunpack.c.l.b16 %v3185
    %v3321 = vunpack.c.l.b16 %v3186
    %v3322 = vunpack.c.l.b16 %v3187
    %v3323 = vunpack.c.l.b16 %v3188
    %v3324 = vunpack.c.l.b16 %v3189
    %v3325 = vunpack.c.l.b16 %v3190
    %v3326 = vunpack.c.l.b16 %v3191
    %v3327 = vunpack.c.l.b16 %v3192
    %v3328 = vunpack.c.l.b16 %v3193
    %v3329 = vunpack.c.l.b16 %v3194
    %v3330 = vunpack.c.l.b16 %v3195
    %v3331 = vunpack.c.l.b16 %v3196
    %v3332 = vunpack.c.l.b16 %v3197
    %v3333 = vunpack.c.l.b16 %v3198
    %v3334 = vunpack.c.l.b16 %v3199
    %v3335 = vpack.c.b16 %v3272, %v3271
    %v3336 = vpack.c.b16 %v3274, %v3273
    %v3337 = vpack.c.b16 %v3276, %v3275
    %v3338 = vpack.c.b16 %v3278, %v3277
    %v3339 = vpack.c.b16 %v3280, %v3279
    %v3340 = vpack.c.b16 %v3282, %v3281
    %v3341 = vpack.c.b16 %v3284, %v3283
    %v3342 = vpack.c.b16 %v3286, %v3285
    %v3343 = vpack.c.b16 %v3288, %v3287
    %v3344 = vpack.c.b16 %v3290, %v3289
    %v3345 = vpack.c.b16 %v3292, %v3291
    %v3346 = vpack.c.b16 %v3294, %v3293
    %v3347 = vpack.c.b16 %v3296, %v3295
    %v3348 = vpack.c.b16 %v3298, %v3297
    %v3349 = vpack.c.b16 %v3300, %v3299
    %v3350 = vpack.c.b16 %v3302, %v3301
    %v3351 = vpack.c.b16 %v3304, %v3303
    %v3352 = vpack.c.b16 %v3306, %v3305
    %v3353 = vpack.c.b16 %v3308, %v3307
    %v3354 = vpack.c.b16 %v3310, %v3309
    %v3355 = vpack.c.b16 %v3312, %v3311
    %v3356 = vpack.c.b16 %v3314, %v3313
    %v3357 = vpack.c.b16 %v3316, %v3315
    %v3358 = vpack.c.b16 %v3318, %v3317
    %v3359 = vpack.c.b16 %v3320, %v3319
    %v3360 = vpack.c.b16 %v3322, %v3321
    %v3361 = vpack.c.b16 %v3324, %v3323
    %v3362 = vpack.c.b16 %v3326, %v3325
    %v3363 = vpack.c.b16 %v3328, %v3327
    %v3364 = vpack.c.b16 %v3330, %v3329
    %v3365 = vpack.c.b16 %v3332, %v3331
    %v3366 = vpack.c.b16 %v3334, %v3333
    %3399 = vmatprep.subr.bf16.mxu0 0
    %3400 = vmatpush1.bf16.msra.mxu0 %v3342
    %3401 = vmatprep.subr.bf16.mxu0 0
    %3402 = vmatpush1.bf16.msra.mxu0 %v3341
    %3403 = vmatprep.subr.bf16.mxu0 0
    %3404 = vmatpush1.bf16.msra.mxu0 %v3340
    %3405 = vmatprep.subr.bf16.mxu0 0
    %3406 = vmatpush1.bf16.msra.mxu0 %v3339
    %3407 = vmatprep.subr.bf16.mxu0 0
    %3408 = vmatpush1.bf16.msra.mxu0 %v3338
    %3409 = vmatprep.subr.bf16.mxu0 0
    %3410 = vmatpush1.bf16.msra.mxu0 %v3337
    %3411 = vmatprep.subr.bf16.mxu0 0
    %3412 = vmatpush1.bf16.msra.mxu0 %v3336
    %3413 = vmatprep.subr.bf16.mxu0 0
    %3414 = vmatpush1.bf16.msra.mxu0 %v3335
    %3415 = vmatprep.subr.bf16.mxu0 0
    %3416 = vmatpush2.bf16.msra.mxu0 %v3350
    %3417 = vmatprep.subr.bf16.mxu0 0
    %3418 = vmatpush2.bf16.msra.mxu0 %v3349
    %3419 = vmatprep.subr.bf16.mxu0 0
    %3420 = vmatpush2.bf16.msra.mxu0 %v3348
    %3421 = vmatprep.subr.bf16.mxu0 0
    %3422 = vmatpush2.bf16.msra.mxu0 %v3347
    %3423 = vmatprep.subr.bf16.mxu0 0
    %3424 = vmatpush2.bf16.msra.mxu0 %v3346
    %3425 = vmatprep.subr.bf16.mxu0 0
    %3426 = vmatpush2.bf16.msra.mxu0 %v3345
    %3427 = vmatprep.subr.bf16.mxu0 0
    %3428 = vmatpush2.bf16.msra.mxu0 %v3344
    %3429 = vmatprep.subr.bf16.mxu0 0
    %3430 = vmatpush2.bf16.msra.mxu0 %v3343
    %3431 = vmatprep.mubr.bf16.mxu0 %v3133
    %3432 = vmatmul.mubr.bf16.gmra.mxu0 %v3132
    %v3433 = vpop.f32.mrf.mxu0
    %v3434 = vadd.f32 %v3205, %v3433
    %v3435 = vpop.f32.mrf.mxu0
    %v3436 = vpop.f32.mrf.mxu0
    %v3437 = vpop.f32.mrf.mxu0
    %3438 = vdwg.mxu0
    %3439 = vmatprep.subr.bf16.mxu0 0
    %3440 = vmatpush1.bf16.msra.mxu0 %v3358
    %3441 = vmatprep.subr.bf16.mxu0 0
    %3442 = vmatpush1.bf16.msra.mxu0 %v3357
    %3443 = vmatprep.subr.bf16.mxu0 0
    %3444 = vmatpush1.bf16.msra.mxu0 %v3356
    %3445 = vmatprep.subr.bf16.mxu0 0
    %3446 = vmatpush1.bf16.msra.mxu0 %v3355
    %3447 = vmatprep.subr.bf16.mxu0 0
    %3448 = vmatpush1.bf16.msra.mxu0 %v3354
    %3449 = vmatprep.subr.bf16.mxu0 0
    %3450 = vmatpush1.bf16.msra.mxu0 %v3353
    %3451 = vmatprep.subr.bf16.mxu0 0
    %3452 = vmatpush1.bf16.msra.mxu0 %v3352
    %3453 = vmatprep.subr.bf16.mxu0 0
    %3454 = vmatpush1.bf16.msra.mxu0 %v3351
    %3455 = vmatprep.subr.bf16.mxu0 0
    %3456 = vmatpush2.bf16.msra.mxu0 %v3366
    %3457 = vmatprep.subr.bf16.mxu0 0
    %3458 = vmatpush2.bf16.msra.mxu0 %v3365
    %3459 = vmatprep.subr.bf16.mxu0 0
    %3460 = vmatpush2.bf16.msra.mxu0 %v3364
    %3461 = vmatprep.subr.bf16.mxu0 0
    %3462 = vmatpush2.bf16.msra.mxu0 %v3363
    %3463 = vmatprep.subr.bf16.mxu0 0
    %3464 = vmatpush2.bf16.msra.mxu0 %v3362
    %3465 = vmatprep.subr.bf16.mxu0 0
    %3466 = vmatpush2.bf16.msra.mxu0 %v3361
    %3467 = vmatprep.subr.bf16.mxu0 0
    %3468 = vmatpush2.bf16.msra.mxu0 %v3360
    %3469 = vmatprep.subr.bf16.mxu0 0
    %3470 = vmatpush2.bf16.msra.mxu0 %v3359
    %3471 = vmatprep.mubr.bf16.mxu0 %v3135
    %3472 = vmatmul.mubr.bf16.gmra.mxu0 %v3134
    %v3473 = vpop.f32.mrf.mxu0
    %v3474 = vadd.f32 %v3434, %v3473
    %v3475 = vpop.f32.mrf.mxu0
    %v3476 = vpop.f32.mrf.mxu0
    %v3477 = vpop.f32.mrf.mxu0
    %3478 = vdwg.mxu0
    %v3479 = vmax.f32 %v3474, 0.0
    %v3480 = vpack.c.bf16 %v3479, %v3479
    %v3481 = vld [vmem:[%s13] sm:$0xf]
    %v3482 = vld [vmem:[%s13 + $0x4] sm:$0xf]
    %v3483 = vld [vmem:[%s13 + $0x8] sm:$0xf]
    %v3484 = vld [vmem:[%s13 + $0xc] sm:$0xf]
    %v3485 = vld [vmem:[%s13 + $0x10] sm:$0xf]
    %v3486 = vld [vmem:[%s13 + $0x14] sm:$0xf]
    %v3487 = vld [vmem:[%s13 + $0x18] sm:$0xf]
    %v3488 = vld [vmem:[%s13 + $0x1c] sm:$0xf]
    %v3489 = vld [vmem:[%s14] sm:$0x1]
    %v3491 = vlaneseq
    %v3492 = vshrl.u32 %v3491, 7
    %v3493 = vsub.s32 0, %v3492
    %v3494 = vrot.slane %v3489, %v3493
    %v3504 = vunpack.c.l.b16 %v3481
    %v3505 = vunpack.c.l.b16 %v3482
    %v3506 = vunpack.c.l.b16 %v3483
    %v3507 = vunpack.c.l.b16 %v3484
    %v3508 = vunpack.c.l.b16 %v3485
    %v3509 = vunpack.c.l.b16 %v3486
    %v3510 = vunpack.c.l.b16 %v3487
    %v3511 = vunpack.c.l.b16 %v3488
    %v3512 = vpack.c.b16 %v3505, %v3504
    %v3513 = vpack.c.b16 %v3507, %v3506
    %v3514 = vpack.c.b16 %v3509, %v3508
    %v3515 = vpack.c.b16 %v3511, %v3510
    %vm3520 = vcmask 523264
    %v3522 = vsel %vm3520, %v3480, 0
    %3524 = vmatprep.subr.bf16.mxu0 0
    %3525 = vmatpush1.bf16.msra.mxu0 0
    %3526 = vmatprep.subr.bf16.mxu0 0
    %3527 = vmatpush1.bf16.msra.mxu0 0
    %3528 = vmatprep.subr.bf16.mxu0 0
    %3529 = vmatpush1.bf16.msra.mxu0 0
    %3530 = vmatprep.subr.bf16.mxu0 0
    %3531 = vmatpush1.bf16.msra.mxu0 0
    %3532 = vmatprep.subr.bf16.mxu0 0
    %3533 = vmatpush1.bf16.msra.mxu0 %v3515
    %3534 = vmatprep.subr.bf16.mxu0 0
    %3535 = vmatpush1.bf16.msra.mxu0 %v3514
    %3536 = vmatprep.subr.bf16.mxu0 0
    %3537 = vmatpush1.bf16.msra.mxu0 %v3513
    %3538 = vmatprep.subr.bf16.mxu0 0
    %3539 = vmatpush1.bf16.msra.mxu0 %v3512
    %3540 = vmatprep.subr.bf16.mxu0 0
    %3541 = vmatpush2.bf16.msra.mxu0 0
    %3542 = vmatprep.subr.bf16.mxu0 0
    %3543 = vmatpush2.bf16.msra.mxu0 0
    %3544 = vmatprep.subr.bf16.mxu0 0
    %3545 = vmatpush2.bf16.msra.mxu0 0
    %3546 = vmatprep.subr.bf16.mxu0 0
    %3547 = vmatpush2.bf16.msra.mxu0 0
    %3548 = vmatprep.subr.bf16.mxu0 0
    %3549 = vmatpush2.bf16.msra.mxu0 0
    %3550 = vmatprep.subr.bf16.mxu0 0
    %3551 = vmatpush2.bf16.msra.mxu0 0
    %3552 = vmatprep.subr.bf16.mxu0 0
    %3553 = vmatpush2.bf16.msra.mxu0 0
    %3554 = vmatprep.subr.bf16.mxu0 0
    %3555 = vmatpush2.bf16.msra.mxu0 0
    %3556 = vmatprep.mubr.bf16.mxu0 0
    %3557 = vmatmul.mubr.bf16.gmra.mxu0 %v3522
    %v3558 = vpop.f32.mrf.mxu0
    %v3559 = vadd.f32 %v3494, %v3558
    %v3560 = vpop.f32.mrf.mxu0
    %v3561 = vpop.f32.mrf.mxu0
    %v3562 = vpop.f32.mrf.mxu0
    %3563 = vdwg.mxu0
    %v3564 = vmax.f32 %v3559, 0.0
    %v3565 = vpack.c.bf16 %v3564, %v3564
    %v3566 = vld [vmem:[%s15] sm:$0xf]
    %v3567 = vld [vmem:[%s15 + $0x4] sm:$0xf]
    %v3568 = vld [vmem:[#allocation2] sm:$0x1]
    %v3570 = vlaneseq
    %v3571 = vshrl.u32 %v3570, 7
    %v3572 = vsub.s32 0, %v3571
    %v3573 = vrot.slane %v3568, %v3572
    %v3577 = vunpack.c.l.b16 %v3566
    %v3578 = vunpack.c.l.b16 %v3567
    %v3579 = vpack.c.b16 %v3578, %v3577
    %v3582 = vsel %vm368, %v3565, 0
    %3584 = vmatprep.subr.bf16.mxu0 0
    %3585 = vmatpush1.bf16.msra.mxu0 0
    %3586 = vmatprep.subr.bf16.mxu0 0
    %3587 = vmatpush1.bf16.msra.mxu0 0
    %3588 = vmatprep.subr.bf16.mxu0 0
    %3589 = vmatpush1.bf16.msra.mxu0 0
    %3590 = vmatprep.subr.bf16.mxu0 0
    %3591 = vmatpush1.bf16.msra.mxu0 0
    %3592 = vmatprep.subr.bf16.mxu0 0
    %3593 = vmatpush1.bf16.msra.mxu0 0
    %3594 = vmatprep.subr.bf16.mxu0 0
    %3595 = vmatpush1.bf16.msra.mxu0 0
    %3596 = vmatprep.subr.bf16.mxu0 0
    %3597 = vmatpush1.bf16.msra.mxu0 0
    %3598 = vmatprep.subr.bf16.mxu0 0
    %3599 = vmatpush1.bf16.msra.mxu0 %v3579
    %3600 = vmatprep.subr.bf16.mxu0 0
    %3601 = vmatpush2.bf16.msra.mxu0 0
    %3602 = vmatprep.subr.bf16.mxu0 0
    %3603 = vmatpush2.bf16.msra.mxu0 0
    %3604 = vmatprep.subr.bf16.mxu0 0
    %3605 = vmatpush2.bf16.msra.mxu0 0
    %3606 = vmatprep.subr.bf16.mxu0 0
    %3607 = vmatpush2.bf16.msra.mxu0 0
    %3608 = vmatprep.subr.bf16.mxu0 0
    %3609 = vmatpush2.bf16.msra.mxu0 0
    %3610 = vmatprep.subr.bf16.mxu0 0
    %3611 = vmatpush2.bf16.msra.mxu0 0
    %3612 = vmatprep.subr.bf16.mxu0 0
    %3613 = vmatpush2.bf16.msra.mxu0 0
    %3614 = vmatprep.subr.bf16.mxu0 0
    %3615 = vmatpush2.bf16.msra.mxu0 0
    %3616 = vmatprep.mubr.bf16.mxu0 0
    %3617 = vmatmul.mubr.bf16.gmra.mxu0 %v3582
    %v3618 = vpop.f32.mrf.mxu0
    %v3619 = vadd.f32 %v3573, %v3618
    %v3620 = vpop.f32.mrf.mxu0
    %v3621 = vpop.f32.mrf.mxu0
    %v3622 = vpop.f32.mrf.mxu0
    %3623 = vdwg.mxu0
    %vm3624 = vcmask 1024
    %3625 = vst.msk [vmem:[%s17] sm:$0x3] %vm3624, %v3619
    // Predicated region
    $region78: #{gcnn_forward.1} parent=1 // pred_check
      _
    $region79: #{gcnn_forward.1} parent=1 // pred_check_branch
      %3627 = sbr.rel (0) target = $region81
    $region80: #{gcnn_forward.1} parent=1 // pred_region
      _
    $region81: #{gcnn_forward.1} parent=1 // pred_fallthru
      _
    // Predicated region
    $region82: #{gcnn_forward.1} parent=1 // pred_check
      _
    $region83: #{gcnn_forward.1} parent=1 // pred_check_branch
      %3629 = sbr.rel (0) target = $region85
    $region84: #{gcnn_forward.1} parent=1 // pred_region
      %s3631 = ssub.s32 128, 128
      %3632 = vsyncadd [#allocation5], %s3631
      %s3634 = sshll.u32 [#allocation8], 4
      %s3635 = int_to_ptr.vmem [resolvable:$true] %s3634
      %3637 = dma.vmem_to_hbm [thread:$0]  %s3635, 128, %s18, [#allocation5]
    $region85: #{gcnn_forward.1} parent=1 // pred_fallthru
      _
    // Predicated region
    $region86: #{gcnn_forward.1} parent=1 // pred_check
      _
    $region87: #{gcnn_forward.1} parent=1 // pred_check_branch
      %3639 = sbr.rel (0) target = $region89
    $region88: #{gcnn_forward.1} parent=1 // pred_region
      _
    $region89: #{gcnn_forward.1} parent=1 // pred_fallthru
      _
    // Predicated region
    $region90: #{gcnn_forward.1} parent=1 // pred_check
      _
    $region91: #{gcnn_forward.1} parent=1 // pred_check_branch
      %3641 = sbr.rel (0) target = $region93
    $region92: #{gcnn_forward.1} parent=1 // pred_region
      %3642 = dma.done [#allocation5], 128
    $region93: #{gcnn_forward.1} parent=1 // pred_fallthru
      _
    %3643 = vsyncpa [#allocation4], 1
    %3644 = vsyncpa [#allocation7], 1
    %3645 = vsyncpa [#allocation5], 1

</llo_original>
